<compile_context>
chip_gen: v7x
topology: tpu7x:2x2x1
jax: 0.10.0
libtpu: 0.0.40
codegen_flags: <defaults>
</compile_context>

<pallas_src>
import jax
import jax.numpy as jnp
from jax.experimental import pallas as pl
from jax.experimental.pallas import tpu as pltpu

KERNEL_SIZES = (3, 4, 5)
NUM_CHANNELS = (8, 8, 8)
NUM_CLASSES = 3

K_MIN = min(KERNEL_SIZES)
K_MAX = max(KERNEL_SIZES)
C_TOTAL = sum(NUM_CHANNELS)


def textcnn_kernel(x_ref, asp_ref, w_ref, b_ref, dw_ref, db_ref, out_ref):
    # Aspect gating: (Bt, L_pad, E) * (Bt, 1, E)
    x = x_ref[...] * asp_ref[...]
    bt, l_pad, _ = x.shape
    T = l_pad - K_MAX + 1          # == L - K_MIN + 1 (longest valid conv output)

    # Fused Conv1d for all three branches: K_MAX shifted matmuls on the MXU
    # into a single (Bt, T, C_TOTAL) accumulator.
    acc = jnp.zeros((bt, T, C_TOTAL), jnp.float32)
    for j in range(K_MAX):
        acc += jnp.einsum('bte,ec->btc', x[:, j:j + T, :], w_ref[j],
                          preferred_element_type=jnp.float32)

    # Mask time positions that are out of range for branches with k > K_MIN
    # (their taps beyond the true sequence read zero-padding) before the max.
    t_idx = jax.lax.broadcasted_iota(jnp.int32, (T, C_TOTAL), 0)
    c_idx = jax.lax.broadcasted_iota(jnp.int32, (T, C_TOTAL), 1)
    thr = jnp.zeros((T, C_TOTAL), jnp.int32)
    off = 0
    for k, c in zip(KERNEL_SIZES, NUM_CHANNELS):
        branch_valid_len = T - (k - K_MIN)        # == L - k + 1
        thr = jnp.where((c_idx >= off) & (c_idx < off + c), branch_valid_len, thr)
        off += c
    acc = jnp.where((t_idx < thr)[None, :, :], acc, -1e30)

    # Global max pool over time, bias after the max (equivalent), then ReLU.
    pooled = jnp.max(acc, axis=1)                 # (Bt, C_TOTAL)
    feat = jnp.maximum(pooled + b_ref[...], 0.0)

    # TODO(synk): Dropout(p=0.5) is a no-op in eval mode; training-mode RNG mask not implemented.
    out_ref[...] = (jnp.dot(feat, dw_ref[...], preferred_element_type=jnp.float32)
                    + db_ref[...])


def _pack_conv(params):
    """Fuse the three torch-layout conv weights into (K_MAX, E, C_TOTAL)."""
    ws, bs = [], []
    for i, k in enumerate(KERNEL_SIZES):
        w = jnp.transpose(params[f'conv_w{i}'], (2, 1, 0))   # (c,E,k) -> (k,E,c)
        if K_MAX - k:
            w = jnp.pad(w, ((0, K_MAX - k), (0, 0), (0, 0)))  # zero taps at the end
        ws.append(w)
        bs.append(params[f'conv_b{i}'])
    return jnp.concatenate(ws, axis=-1), jnp.concatenate(bs)[None, :]


def textcnn_forward(input_ids, aspect_ids, params, *, b_tile=8):
    # --- glue (plain JAX): embedding gathers + weight packing -------------
    emb = params['embedding']
    x_emb = jnp.take(emb, input_ids, axis=0).astype(jnp.float32)     # (B, L, E)
    asp_emb = jnp.take(emb, aspect_ids, axis=0)[:, None, :].astype(jnp.float32)
    B, L, E = x_emb.shape

    w_fused, b_fused = _pack_conv(params)                    # (K_MAX,E,C), (1,C)
    dec_w = params['dec_w'].T                                # (C_TOTAL, 3)
    dec_b = params['dec_b'][None, :]                         # (1, 3)

    # Pad time by (K_MAX - K_MIN) zeros so all K_MAX shifted matmuls are in-bounds.
    l_pad = L + (K_MAX - K_MIN)
    if l_pad != L:
        x_emb = jnp.pad(x_emb, ((0, 0), (0, l_pad - L), (0, 0)))

    # Batch tiling: b_tile must be a multiple of 8 (output sublane constraint).
    b_tile = max(8, 8 * (int(b_tile) // 8))
    B_pad = pl.cdiv(B, b_tile) * b_tile
    if B_pad != B:
        x_emb = jnp.pad(x_emb, ((0, B_pad - B), (0, 0), (0, 0)))
        asp_emb = jnp.pad(asp_emb, ((0, B_pad - B), (0, 0), (0, 0)))
    grid = (B_pad // b_tile,)

    # VMEM budget: double-buffered input tiles + accumulator + weights (+ slack).
    T = l_pad - K_MAX + 1
    tile_in = 4 * b_tile * (l_pad + 1) * E
    acc_bytes = 4 * b_tile * T * C_TOTAL
    wgt_bytes = 4 * (w_fused.size + b_fused.size + dec_w.size + dec_b.size)
    need = 2 * tile_in + 3 * acc_bytes + 2 * wgt_bytes + (2 << 20)
    vmem_limit = int(min(48 << 20, max(need, 32 << 20)))     # safe on v5e/v6e/v7x

    out = pl.pallas_call(
        textcnn_kernel,
        grid=grid,
        in_specs=[
            pl.BlockSpec((b_tile, l_pad, E), lambda b: (b, 0, 0)),
            pl.BlockSpec((b_tile, 1, E), lambda b: (b, 0, 0)),
            pl.BlockSpec(w_fused.shape, lambda b: (0, 0, 0)),
            pl.BlockSpec(b_fused.shape, lambda b: (0, 0)),
            pl.BlockSpec(dec_w.shape, lambda b: (0, 0)),
            pl.BlockSpec(dec_b.shape, lambda b: (0, 0)),
        ],
        out_specs=pl.BlockSpec((b_tile, NUM_CLASSES), lambda b: (b, 0)),
        out_shape=jax.ShapeDtypeStruct((B_pad, NUM_CLASSES), jnp.float32),
        compiler_params=pltpu.CompilerParams(
            dimension_semantics=("parallel",),
            vmem_limit_bytes=vmem_limit,
        ),
    )(x_emb, asp_emb, w_fused, b_fused, dec_w, dec_b)
    return out[:B]


def init_params(key, vocab, embed_size):
    """Parameters kept in torch layouts (Conv1d: (C_out,E,k); Linear: (3,sum_C))."""
    keys = jax.random.split(key, 9)
    params = {'embedding': jax.random.normal(keys[0], (vocab, embed_size),
                                             jnp.float32)}
    for i, (k, c) in enumerate(zip(KERNEL_SIZES, NUM_CHANNELS)):
        params[f'conv_w{i}'] = 0.1 * jax.random.normal(
            keys[1 + 2 * i], (c, embed_size, k), jnp.float32)
        params[f'conv_b{i}'] = 0.1 * jax.random.normal(
            keys[2 + 2 * i], (c,), jnp.float32)
    params['dec_w'] = 0.1 * jax.random.normal(
        keys[7], (NUM_CLASSES, C_TOTAL), jnp.float32)
    params['dec_b'] = 0.1 * jax.random.normal(keys[8], (NUM_CLASSES,), jnp.float32)
    return params


def reference_forward(input_ids, aspect_ids, params):
    """Pure-JAX reference mirroring the PyTorch forward (NCL conv)."""
    emb = params['embedding']
    x = jnp.take(emb, input_ids, axis=0) * \
        jnp.take(emb, aspect_ids, axis=0)[:, None, :]
    x = jnp.transpose(x, (0, 2, 1))                          # (B, E, L)
    feats = []
    for i in range(len(KERNEL_SIZES)):
        w = params[f'conv_w{i}']                             # (c, E, k)
        y = jax.lax.conv_general_dilated(
            x, w, (1,), 'VALID', dimension_numbers=('NCH', 'OIH', 'NCH'))
        y = y + params[f'conv_b{i}'][None, :, None]          # (B, c, T)
        feats.append(jnp.maximum(jnp.max(y, axis=-1), 0.0))  # relu(maxpool(conv))
    enc = jnp.concatenate(feats, axis=1)
    return enc @ params['dec_w'].T + params['dec_b'][None, :]


if __name__ == "__main__":
    key = jax.random.PRNGKey(0)
    vocab, embed_size, B, L = 50, 32, 12, 16                 # small demo shapes
    kp, ki, ka = jax.random.split(key, 3)

    params = init_params(kp, vocab, embed_size)
    input_ids = jax.random.randint(ki, (B, L), 0, vocab)
    aspect_ids = jax.random.randint(ka, (B,), 0, vocab)

    out = jax.block_until_ready(textcnn_forward(input_ids, aspect_ids, params))
    assert out.shape == (B, NUM_CLASSES)

    ref = reference_forward(input_ids, aspect_ids, params)
    assert jnp.allclose(out, ref, atol=1e-4, rtol=1e-4), (out, ref)

    print("KERNEL_OK")
</pallas_src>

<mosaic_0001>
module attributes {stable_mosaic.version = 11 : i64} {
  func.func @textcnn_kernel(%arg0: i32, %arg1: memref<8x18x32xf32, #tpu.memory_space<vmem>>, %arg2: memref<8x1x32xf32, #tpu.memory_space<vmem>>, %arg3: memref<5x32x24xf32, #tpu.memory_space<vmem>>, %arg4: memref<1x24xf32, #tpu.memory_space<vmem>>, %arg5: memref<24x3xf32, #tpu.memory_space<vmem>>, %arg6: memref<1x3xf32, #tpu.memory_space<vmem>>, %arg7: memref<8x3xf32, #tpu.memory_space<vmem>>) attributes {dimension_semantics = [#tpu.dimension_semantics<parallel>], iteration_bounds = array<i64: 2>, scalar_prefetch = 0 : i64, scratch_operands = 0 : i64, tpu.core_type = #tpu.core_type<tc>, window_params = [{transform_indices = @transform_0, window_bounds = array<i64: 8, 18, 32>}, {transform_indices = @transform_1, window_bounds = array<i64: 8, 1, 32>}, {pipeline_mode = #tpu.pipeline_mode<synchronous>, transform_indices = @transform_2, window_bounds = array<i64: 5, 32, 24>}, {pipeline_mode = #tpu.pipeline_mode<synchronous>, transform_indices = @transform_3, window_bounds = array<i64: 1, 24>}, {pipeline_mode = #tpu.pipeline_mode<synchronous>, transform_indices = @transform_4, window_bounds = array<i64: 24, 3>}, {pipeline_mode = #tpu.pipeline_mode<synchronous>, transform_indices = @transform_5, window_bounds = array<i64: 1, 3>}, {transform_indices = @transform_6, window_bounds = array<i64: 8, 3>}]} {
    %c0 = arith.constant 0 : index
    %c0_0 = arith.constant 0 : index
    %c0_1 = arith.constant 0 : index
    %0 = vector.load %arg1[%c0, %c0_0, %c0_1] : memref<8x18x32xf32, #tpu.memory_space<vmem>>, vector<8x18x32xf32>
    %c0_2 = arith.constant 0 : index
    %c0_3 = arith.constant 0 : index
    %c0_4 = arith.constant 0 : index
    %1 = vector.load %arg2[%c0_2, %c0_3, %c0_4] : memref<8x1x32xf32, #tpu.memory_space<vmem>>, vector<8x1x32xf32>
    %2 = vector.broadcast %1 : vector<8x1x32xf32> to vector<8x18x32xf32>
    %3 = arith.mulf %0, %2 : vector<8x18x32xf32>
    %cst = arith.constant 0.000000e+00 : f32
    %4 = vector.broadcast %cst : f32 to vector<8x14x24xf32>
    %5 = vector.extract_strided_slice %3 {offsets = [0, 0, 0], sizes = [8, 14, 32], strides = [1, 1, 1]} : vector<8x18x32xf32> to vector<8x14x32xf32>
    %c0_5 = arith.constant 0 : index
    %c0_6 = arith.constant 0 : index
    %c0_7 = arith.constant 0 : index
    %6 = vector.load %arg3[%c0_5, %c0_6, %c0_7] : memref<5x32x24xf32, #tpu.memory_space<vmem>>, vector<1x32x24xf32>
    %7 = vector.shape_cast %6 : vector<1x32x24xf32> to vector<32x24xf32>
    "tpu.trace_start"() <{level = 10 : i32, message = "bte,ec->btc"}> : () -> ()
    %cst_8 = arith.constant dense<0.000000e+00> : vector<8x14x24xf32>
    %8 = tpu.matmul %5, %7, %cst_8 {dimension_numbers = #tpu.dot_dimension_numbers<[2], [0], [0, 1], [1], [0, 0, 0, 1, 1, 1], [], []>} : vector<8x14x32xf32>, vector<32x24xf32>, vector<8x14x24xf32> -> vector<8x14x24xf32>
    "tpu.trace_stop"() : () -> ()
    %9 = arith.addf %4, %8 : vector<8x14x24xf32>
    %10 = vector.extract_strided_slice %3 {offsets = [0, 1, 0], sizes = [8, 14, 32], strides = [1, 1, 1]} : vector<8x18x32xf32> to vector<8x14x32xf32>
    %c1 = arith.constant 1 : index
    %c0_9 = arith.constant 0 : index
    %c0_10 = arith.constant 0 : index
    %11 = vector.load %arg3[%c1, %c0_9, %c0_10] : memref<5x32x24xf32, #tpu.memory_space<vmem>>, vector<1x32x24xf32>
    %12 = vector.shape_cast %11 : vector<1x32x24xf32> to vector<32x24xf32>
    "tpu.trace_start"() <{level = 10 : i32, message = "bte,ec->btc"}> : () -> ()
    %cst_11 = arith.constant dense<0.000000e+00> : vector<8x14x24xf32>
    %13 = tpu.matmul %10, %12, %cst_11 {dimension_numbers = #tpu.dot_dimension_numbers<[2], [0], [0, 1], [1], [0, 0, 0, 1, 1, 1], [], []>} : vector<8x14x32xf32>, vector<32x24xf32>, vector<8x14x24xf32> -> vector<8x14x24xf32>
    "tpu.trace_stop"() : () -> ()
    %14 = arith.addf %9, %13 : vector<8x14x24xf32>
    %15 = vector.extract_strided_slice %3 {offsets = [0, 2, 0], sizes = [8, 14, 32], strides = [1, 1, 1]} : vector<8x18x32xf32> to vector<8x14x32xf32>
    %c2 = arith.constant 2 : index
    %c0_12 = arith.constant 0 : index
    %c0_13 = arith.constant 0 : index
    %16 = vector.load %arg3[%c2, %c0_12, %c0_13] : memref<5x32x24xf32, #tpu.memory_space<vmem>>, vector<1x32x24xf32>
    %17 = vector.shape_cast %16 : vector<1x32x24xf32> to vector<32x24xf32>
    "tpu.trace_start"() <{level = 10 : i32, message = "bte,ec->btc"}> : () -> ()
    %cst_14 = arith.constant dense<0.000000e+00> : vector<8x14x24xf32>
    %18 = tpu.matmul %15, %17, %cst_14 {dimension_numbers = #tpu.dot_dimension_numbers<[2], [0], [0, 1], [1], [0, 0, 0, 1, 1, 1], [], []>} : vector<8x14x32xf32>, vector<32x24xf32>, vector<8x14x24xf32> -> vector<8x14x24xf32>
    "tpu.trace_stop"() : () -> ()
    %19 = arith.addf %14, %18 : vector<8x14x24xf32>
    %20 = vector.extract_strided_slice %3 {offsets = [0, 3, 0], sizes = [8, 14, 32], strides = [1, 1, 1]} : vector<8x18x32xf32> to vector<8x14x32xf32>
    %c3 = arith.constant 3 : index
    %c0_15 = arith.constant 0 : index
    %c0_16 = arith.constant 0 : index
    %21 = vector.load %arg3[%c3, %c0_15, %c0_16] : memref<5x32x24xf32, #tpu.memory_space<vmem>>, vector<1x32x24xf32>
    %22 = vector.shape_cast %21 : vector<1x32x24xf32> to vector<32x24xf32>
    "tpu.trace_start"() <{level = 10 : i32, message = "bte,ec->btc"}> : () -> ()
    %cst_17 = arith.constant dense<0.000000e+00> : vector<8x14x24xf32>
    %23 = tpu.matmul %20, %22, %cst_17 {dimension_numbers = #tpu.dot_dimension_numbers<[2], [0], [0, 1], [1], [0, 0, 0, 1, 1, 1], [], []>} : vector<8x14x32xf32>, vector<32x24xf32>, vector<8x14x24xf32> -> vector<8x14x24xf32>
    "tpu.trace_stop"() : () -> ()
    %24 = arith.addf %19, %23 : vector<8x14x24xf32>
    %25 = vector.extract_strided_slice %3 {offsets = [0, 4, 0], sizes = [8, 14, 32], strides = [1, 1, 1]} : vector<8x18x32xf32> to vector<8x14x32xf32>
    %c4 = arith.constant 4 : index
    %c0_18 = arith.constant 0 : index
    %c0_19 = arith.constant 0 : index
    %26 = vector.load %arg3[%c4, %c0_18, %c0_19] : memref<5x32x24xf32, #tpu.memory_space<vmem>>, vector<1x32x24xf32>
    %27 = vector.shape_cast %26 : vector<1x32x24xf32> to vector<32x24xf32>
    "tpu.trace_start"() <{level = 10 : i32, message = "bte,ec->btc"}> : () -> ()
    %cst_20 = arith.constant dense<0.000000e+00> : vector<8x14x24xf32>
    %28 = tpu.matmul %25, %27, %cst_20 {dimension_numbers = #tpu.dot_dimension_numbers<[2], [0], [0, 1], [1], [0, 0, 0, 1, 1, 1], [], []>} : vector<8x14x32xf32>, vector<32x24xf32>, vector<8x14x24xf32> -> vector<8x14x24xf32>
    "tpu.trace_stop"() : () -> ()
    %29 = arith.addf %24, %28 : vector<8x14x24xf32>
    %30 = tpu.iota {dimensions = array<i32: 0>} : vector<14x24xi32>
    %31 = tpu.iota {dimensions = array<i32: 1>} : vector<14x24xi32>
    %c0_i32 = arith.constant 0 : i32
    %32 = vector.broadcast %c0_i32 : i32 to vector<14x24xi32>
    %c0_i32_21 = arith.constant 0 : i32
    %33 = vector.broadcast %c0_i32_21 : i32 to vector<14x24xi32>
    %34 = arith.cmpi sge, %31, %33 : vector<14x24xi32>
    %c8_i32 = arith.constant 8 : i32
    %35 = vector.broadcast %c8_i32 : i32 to vector<14x24xi32>
    %36 = arith.cmpi slt, %31, %35 : vector<14x24xi32>
    %37 = arith.andi %34, %36 : vector<14x24xi1>
    %c14_i32 = arith.constant 14 : i32
    %38 = vector.broadcast %c14_i32 : i32 to vector<14x24xi32>
    %39 = arith.select %37, %38, %32 : vector<14x24xi1>, vector<14x24xi32>
    %c8_i32_22 = arith.constant 8 : i32
    %40 = vector.broadcast %c8_i32_22 : i32 to vector<14x24xi32>
    %41 = arith.cmpi sge, %31, %40 : vector<14x24xi32>
    %c16_i32 = arith.constant 16 : i32
    %42 = vector.broadcast %c16_i32 : i32 to vector<14x24xi32>
    %43 = arith.cmpi slt, %31, %42 : vector<14x24xi32>
    %44 = arith.andi %41, %43 : vector<14x24xi1>
    %c13_i32 = arith.constant 13 : i32
    %45 = vector.broadcast %c13_i32 : i32 to vector<14x24xi32>
    %46 = arith.select %44, %45, %39 : vector<14x24xi1>, vector<14x24xi32>
    %c16_i32_23 = arith.constant 16 : i32
    %47 = vector.broadcast %c16_i32_23 : i32 to vector<14x24xi32>
    %48 = arith.cmpi sge, %31, %47 : vector<14x24xi32>
    %c24_i32 = arith.constant 24 : i32
    %49 = vector.broadcast %c24_i32 : i32 to vector<14x24xi32>
    %50 = arith.cmpi slt, %31, %49 : vector<14x24xi32>
    %51 = arith.andi %48, %50 : vector<14x24xi1>
    %c12_i32 = arith.constant 12 : i32
    %52 = vector.broadcast %c12_i32 : i32 to vector<14x24xi32>
    %53 = arith.select %51, %52, %46 : vector<14x24xi1>, vector<14x24xi32>
    %54 = arith.cmpi slt, %30, %53 : vector<14x24xi32>
    %55 = vector.shape_cast %54 : vector<14x24xi1> to vector<1x14x24xi1>
    %cst_24 = arith.constant -1.000000e+30 : f32
    %56 = vector.shape_cast %55 : vector<1x14x24xi1> to vector<1x14x24xi1>
    %57 = vector.broadcast %56 : vector<1x14x24xi1> to vector<8x14x24xi1>
    %58 = vector.broadcast %cst_24 : f32 to vector<8x14x24xf32>
    %59 = arith.select %57, %29, %58 : vector<8x14x24xi1>, vector<8x14x24xf32>
    %cst_25 = arith.constant dense<0xFF800000> : vector<8x24xf32>
    %60 = vector.multi_reduction <maximumf>, %59, %cst_25 [1] : vector<8x14x24xf32> to vector<8x24xf32>
    %c0_26 = arith.constant 0 : index
    %c0_27 = arith.constant 0 : index
    %61 = vector.load %arg4[%c0_26, %c0_27] : memref<1x24xf32, #tpu.memory_space<vmem>>, vector<1x24xf32>
    %62 = vector.broadcast %61 : vector<1x24xf32> to vector<8x24xf32>
    %63 = arith.addf %60, %62 : vector<8x24xf32>
    %cst_28 = arith.constant 0.000000e+00 : f32
    %64 = vector.broadcast %cst_28 : f32 to vector<8x24xf32>
    %65 = arith.maximumf %63, %64 : vector<8x24xf32>
    %c0_29 = arith.constant 0 : index
    %c0_30 = arith.constant 0 : index
    %66 = vector.load %arg5[%c0_29, %c0_30] : memref<24x3xf32, #tpu.memory_space<vmem>>, vector<24x3xf32>
    %cst_31 = arith.constant dense<0.000000e+00> : vector<8x3xf32>
    %67 = tpu.matmul %65, %66, %cst_31 {dimension_numbers = #tpu.dot_dimension_numbers<[1], [0], [0], [1], [0, 0, 1, 1], [], []>} : vector<8x24xf32>, vector<24x3xf32>, vector<8x3xf32> -> vector<8x3xf32>
    %c0_32 = arith.constant 0 : index
    %c0_33 = arith.constant 0 : index
    %68 = vector.load %arg6[%c0_32, %c0_33] : memref<1x3xf32, #tpu.memory_space<vmem>>, vector<1x3xf32>
    %69 = vector.broadcast %68 : vector<1x3xf32> to vector<8x3xf32>
    %70 = arith.addf %67, %69 : vector<8x3xf32>
    %c0_34 = arith.constant 0 : index
    %c0_35 = arith.constant 0 : index
    %71 = vector.load %arg7[%c0_34, %c0_35] : memref<8x3xf32, #tpu.memory_space<vmem>>, vector<8x3xf32>
    tpu.vector_store %arg7[%c0_34, %c0_35], %70 {strides = array<i32>} : memref<8x3xf32, #tpu.memory_space<vmem>>, vector<8x3xf32>,
    return
  }
  func.func @transform_0(%arg0: i32) -> (i32, i32, i32) {
    %c0_i32 = arith.constant 0 : i32
    %c0_i32_0 = arith.constant 0 : i32
    %c0_i32_1 = arith.constant 0 : i32
    return %arg0, %c0_i32, %c0_i32_0 : i32, i32, i32
  }
  func.func @transform_1(%arg0: i32) -> (i32, i32, i32) {
    %c0_i32 = arith.constant 0 : i32
    %c0_i32_0 = arith.constant 0 : i32
    %c0_i32_1 = arith.constant 0 : i32
    return %arg0, %c0_i32, %c0_i32_0 : i32, i32, i32
  }
  func.func @transform_2(%arg0: i32) -> (i32, i32, i32) {
    %c0_i32 = arith.constant 0 : i32
    %c0_i32_0 = arith.constant 0 : i32
    %c0_i32_1 = arith.constant 0 : i32
    %c0_i32_2 = arith.constant 0 : i32
    return %c0_i32, %c0_i32_0, %c0_i32_1 : i32, i32, i32
  }
  func.func @transform_3(%arg0: i32) -> (i32, i32) {
    %c0_i32 = arith.constant 0 : i32
    %c0_i32_0 = arith.constant 0 : i32
    %c0_i32_1 = arith.constant 0 : i32
    return %c0_i32, %c0_i32_0 : i32, i32
  }
  func.func @transform_4(%arg0: i32) -> (i32, i32) {
    %c0_i32 = arith.constant 0 : i32
    %c0_i32_0 = arith.constant 0 : i32
    %c0_i32_1 = arith.constant 0 : i32
    return %c0_i32, %c0_i32_0 : i32, i32
  }
  func.func @transform_5(%arg0: i32) -> (i32, i32) {
    %c0_i32 = arith.constant 0 : i32
    %c0_i32_0 = arith.constant 0 : i32
    %c0_i32_1 = arith.constant 0 : i32
    return %c0_i32, %c0_i32_0 : i32, i32
  }
  func.func @transform_6(%arg0: i32) -> (i32, i32) {
    %c0_i32 = arith.constant 0 : i32
    %c0_i32_0 = arith.constant 0 : i32
    return %arg0, %c0_i32 : i32, i32
  }
}

</mosaic_0001>

<llo_original>
// kernel: tpu_custom_call.1
$region0: #{tpu_custom_call.1}
  #allocation0 [shape = 'u32[]', space=smem, size = 0x4, offset = 0x4, fixed_abs, tag = 'smem constant byte address 0x4 - core index']
  #allocation1 [shape = 'u32[144,128]{1,0:T(1,128)}', space=vmem, size = 0x12000, scoped, tag = 'internal scratch']
  %s0 = inlined_call_operand.vmem [shape: f32[16,18,32], index: 0, kind: input, shape index: {}]
  %s1 = inlined_call_operand.vmem [shape: f32[16,1,32], index: 1, kind: input, shape index: {}]
  %s2 = inlined_call_operand.vmem [shape: f32[5,32,24], index: 2, kind: input, shape index: {}]
  %s3 = inlined_call_operand.vmem [shape: f32[1,24], index: 3, kind: input, shape index: {}]
  %s4 = inlined_call_operand.vmem [shape: f32[24,3], index: 4, kind: input, shape index: {}]
  %s5 = inlined_call_operand.vmem [shape: f32[1,3], index: 5, kind: input, shape index: {}]
  %s6 = inlined_call_operand.vmem [shape: f32[16,3], index: 6, kind: output, shape index: {}]
  %s7 = sld [smem:[#allocation0]]
  $region57: #{tpu_custom_call.1} parent=0
    _
  %s9 = ssub.s32 1, %s7
  %s10 = scalar_select 0, %s9, %s7
  loop: start=0, step=1, limit=4
  $region2: #{tpu_custom_call.1} parent=0 // loop_pre_header
    _
  $region3: #{tpu_custom_call.1} parent=0 // loop_header
    %s12 = sphi 0, %s16
    %p13 = scmp.ge.s32.totalorder %s12, 4
    %s22 = sphi 0, %s24
    %s25 = sphi 0, %s22
    %s26 = sphi 0, %s25
    %s42 = sphi 0, %s26
    %s48 = sphi 0, %s50
    %s51 = sphi 0, %s48
    %s52 = sphi 0, %s51
    %s68 = sphi 0, %s52
    %s72 = sphi 0, %s72
    %s74 = sphi 0, %s72
    %s75 = sphi 0, %s74
    %s89 = sphi 0, %s75
    %s93 = sphi 0, %s93
    %s95 = sphi 0, %s93
    %s96 = sphi 0, %s95
    %s110 = sphi 0, %s96
    %s114 = sphi 0, %s114
    %s116 = sphi 0, %s114
    %s117 = sphi 0, %s116
    %s131 = sphi 0, %s117
    %s135 = sphi 0, %s135
    %s137 = sphi 0, %s135
    %s138 = sphi 0, %s137
    %s152 = sphi 0, %s138
    %s158 = sphi 0, %s160
    %s161 = sphi 0, %s158
    %s162 = sphi 0, %s161
    %s178 = sphi 0, %s162
  $region4: #{tpu_custom_call.1} parent=0 // loop_header_branch
    %15 = sbr.rel (%p13) target = $region8
  $region5: #{tpu_custom_call.1} parent=0 // loop_body
    %s17 = ssub.s32 %s12, 1
    %s18 = ssub.s32 %s12, 2
    %s19 = sadd.s32 %s12, 1
    %s20 = ssub.s32 %s12, %s19
    %p21 = scmp.eq.s32.totalorder %s20, 0
    %s23 = sadd.s32 %s22, 1
    %s24 = scalar_select %p21, %s22, %s23
    %p27 = pneg %p21
    %p28 = scmp.eq.s32.totalorder %s12, 1
    %p29 = por %p27, %p28
    %p30 = scmp.ne.s32.totalorder %s22, %s25
    %p31 = scmp.eq.s32.totalorder %s12, 0
    %p32 = por %p30, %p31
    %p33 = scmp.ne.s32.totalorder %s22, %s25
    %p34 = scmp.eq.s32.totalorder %s17, 1
    %p35 = por %p33, %p34
    %p36 = scmp.ne.s32.totalorder %s25, %s26
    %p37 = scmp.eq.s32.totalorder %s17, 0
    %p38 = por %p36, %p37
    %p39 = scmp.ne.s32.totalorder %s25, %s26
    %p40 = scmp.eq.s32.totalorder %s18, 1
    %p41 = por %p39, %p40
    %p43 = scmp.ne.s32.totalorder %s26, %s42
    %p44 = scmp.eq.s32.totalorder %s18, 0
    %p45 = por %p43, %p44
    %s46 = ssub.s32 %s12, %s19
    %p47 = scmp.eq.s32.totalorder %s46, 0
    %s49 = sadd.s32 %s48, 1
    %s50 = scalar_select %p47, %s48, %s49
    %p53 = pneg %p47
    %p54 = scmp.eq.s32.totalorder %s12, 1
    %p55 = por %p53, %p54
    %p56 = scmp.ne.s32.totalorder %s48, %s51
    %p57 = scmp.eq.s32.totalorder %s12, 0
    %p58 = por %p56, %p57
    %p59 = scmp.ne.s32.totalorder %s48, %s51
    %p60 = scmp.eq.s32.totalorder %s17, 1
    %p61 = por %p59, %p60
    %p62 = scmp.ne.s32.totalorder %s51, %s52
    %p63 = scmp.eq.s32.totalorder %s17, 0
    %p64 = por %p62, %p63
    %p65 = scmp.ne.s32.totalorder %s51, %s52
    %p66 = scmp.eq.s32.totalorder %s18, 1
    %p67 = por %p65, %p66
    %p69 = scmp.ne.s32.totalorder %s52, %s68
    %p70 = scmp.eq.s32.totalorder %s18, 0
    %p71 = por %p69, %p70
    %s73 = sadd.s32 %s72, 1
    %p76 = scmp.eq.s32.totalorder %s12, 1
    %p77 = scmp.ne.s32.totalorder %s72, %s74
    %p78 = scmp.eq.s32.totalorder %s12, 0
    %p79 = por %p77, %p78
    %p80 = scmp.ne.s32.totalorder %s72, %s74
    %p81 = scmp.eq.s32.totalorder %s17, 1
    %p82 = por %p80, %p81
    %p83 = scmp.ne.s32.totalorder %s74, %s75
    %p84 = scmp.eq.s32.totalorder %s17, 0
    %p85 = por %p83, %p84
    %p86 = scmp.ne.s32.totalorder %s74, %s75
    %p87 = scmp.eq.s32.totalorder %s18, 1
    %p88 = por %p86, %p87
    %p90 = scmp.ne.s32.totalorder %s75, %s89
    %p91 = scmp.eq.s32.totalorder %s18, 0
    %p92 = por %p90, %p91
    %s94 = sadd.s32 %s93, 1
    %p97 = scmp.eq.s32.totalorder %s12, 1
    %p98 = scmp.ne.s32.totalorder %s93, %s95
    %p99 = scmp.eq.s32.totalorder %s12, 0
    %p100 = por %p98, %p99
    %p101 = scmp.ne.s32.totalorder %s93, %s95
    %p102 = scmp.eq.s32.totalorder %s17, 1
    %p103 = por %p101, %p102
    %p104 = scmp.ne.s32.totalorder %s95, %s96
    %p105 = scmp.eq.s32.totalorder %s17, 0
    %p106 = por %p104, %p105
    %p107 = scmp.ne.s32.totalorder %s95, %s96
    %p108 = scmp.eq.s32.totalorder %s18, 1
    %p109 = por %p107, %p108
    %p111 = scmp.ne.s32.totalorder %s96, %s110
    %p112 = scmp.eq.s32.totalorder %s18, 0
    %p113 = por %p111, %p112
    %s115 = sadd.s32 %s114, 1
    %p118 = scmp.eq.s32.totalorder %s12, 1
    %p119 = scmp.ne.s32.totalorder %s114, %s116
    %p120 = scmp.eq.s32.totalorder %s12, 0
    %p121 = por %p119, %p120
    %p122 = scmp.ne.s32.totalorder %s114, %s116
    %p123 = scmp.eq.s32.totalorder %s17, 1
    %p124 = por %p122, %p123
    %p125 = scmp.ne.s32.totalorder %s116, %s117
    %p126 = scmp.eq.s32.totalorder %s17, 0
    %p127 = por %p125, %p126
    %p128 = scmp.ne.s32.totalorder %s116, %s117
    %p129 = scmp.eq.s32.totalorder %s18, 1
    %p130 = por %p128, %p129
    %p132 = scmp.ne.s32.totalorder %s117, %s131
    %p133 = scmp.eq.s32.totalorder %s18, 0
    %p134 = por %p132, %p133
    %s136 = sadd.s32 %s135, 1
    %p139 = scmp.eq.s32.totalorder %s12, 1
    %p140 = scmp.ne.s32.totalorder %s135, %s137
    %p141 = scmp.eq.s32.totalorder %s12, 0
    %p142 = por %p140, %p141
    %p143 = scmp.ne.s32.totalorder %s135, %s137
    %p144 = scmp.eq.s32.totalorder %s17, 1
    %p145 = por %p143, %p144
    %p146 = scmp.ne.s32.totalorder %s137, %s138
    %p147 = scmp.eq.s32.totalorder %s17, 0
    %p148 = por %p146, %p147
    %p149 = scmp.ne.s32.totalorder %s137, %s138
    %p150 = scmp.eq.s32.totalorder %s18, 1
    %p151 = por %p149, %p150
    %p153 = scmp.ne.s32.totalorder %s138, %s152
    %p154 = scmp.eq.s32.totalorder %s18, 0
    %p155 = por %p153, %p154
    %s156 = ssub.s32 %s12, %s19
    %p157 = scmp.eq.s32.totalorder %s156, 0
    %s159 = sadd.s32 %s158, 1
    %s160 = scalar_select %p157, %s158, %s159
    %p163 = pneg %p157
    %p164 = scmp.eq.s32.totalorder %s12, 1
    %p165 = por %p163, %p164
    %p166 = scmp.ne.s32.totalorder %s158, %s161
    %p167 = scmp.eq.s32.totalorder %s12, 0
    %p168 = por %p166, %p167
    %p169 = scmp.ne.s32.totalorder %s158, %s161
    %p170 = scmp.eq.s32.totalorder %s17, 1
    %p171 = por %p169, %p170
    %p172 = scmp.ne.s32.totalorder %s161, %s162
    %p173 = scmp.eq.s32.totalorder %s17, 0
    %p174 = por %p172, %p173
    %p175 = scmp.ne.s32.totalorder %s161, %s162
    %p176 = scmp.eq.s32.totalorder %s18, 1
    %p177 = por %p175, %p176
    %p179 = scmp.ne.s32.totalorder %s162, %s178
    %p180 = scmp.eq.s32.totalorder %s18, 0
    %p181 = por %p179, %p180
    %p182 = scmp.le.s32.totalorder 1, %s12
    %p183 = scmp.lt.s32.totalorder %s12, 3
    %p184 = pnand %p182, %p183
    %p185 = pneg %p184
    // Predicated region
    $region9: #{tpu_custom_call.1} parent=5 // pred_check
      _
    $region10: #{tpu_custom_call.1} parent=5 // pred_check_branch
      %187 = sbr.rel (%p184) target = $region12
    $region11: #{tpu_custom_call.1} parent=5 // pred_region
      %s188 = ssub.s32 %s12, 1
      // Predicated region
      $region13: #{tpu_custom_call.1} parent=11 // pred_check
        %p189 = pneg %p85
      $region14: #{tpu_custom_call.1} parent=11 // pred_check_branch
        %191 = sbr.rel (%p189) target = $region16
      $region15: #{tpu_custom_call.1} parent=11 // pred_region
        _
      $region16: #{tpu_custom_call.1} parent=11 // pred_fallthru
        _
      // Predicated region
      $region17: #{tpu_custom_call.1} parent=11 // pred_check
        %p192 = pneg %p106
      $region18: #{tpu_custom_call.1} parent=11 // pred_check_branch
        %194 = sbr.rel (%p192) target = $region20
      $region19: #{tpu_custom_call.1} parent=11 // pred_region
        _
      $region20: #{tpu_custom_call.1} parent=11 // pred_fallthru
        _
      // Predicated region
      $region21: #{tpu_custom_call.1} parent=11 // pred_check
        %p195 = pneg %p127
      $region22: #{tpu_custom_call.1} parent=11 // pred_check_branch
        %197 = sbr.rel (%p195) target = $region24
      $region23: #{tpu_custom_call.1} parent=11 // pred_region
        _
      $region24: #{tpu_custom_call.1} parent=11 // pred_fallthru
        _
      // Predicated region
      $region25: #{tpu_custom_call.1} parent=11 // pred_check
        %p198 = pneg %p148
      $region26: #{tpu_custom_call.1} parent=11 // pred_check_branch
        %200 = sbr.rel (%p198) target = $region28
      $region27: #{tpu_custom_call.1} parent=11 // pred_region
        _
      $region28: #{tpu_custom_call.1} parent=11 // pred_fallthru
        _
    $region12: #{tpu_custom_call.1} parent=5 // pred_fallthru
      _
    %p201 = scmp.lt.s32.totalorder %s12, 2
    // Predicated region
    $region29: #{tpu_custom_call.1} parent=5 // pred_check
      %p202 = pneg %p201
    $region30: #{tpu_custom_call.1} parent=5 // pred_check_branch
      %204 = sbr.rel (%p202) target = $region32
    $region31: #{tpu_custom_call.1} parent=5 // pred_region
      // Predicated region
      $region33: #{tpu_custom_call.1} parent=31 // pred_check
        %p205 = pneg %p32
      $region34: #{tpu_custom_call.1} parent=31 // pred_check_branch
        %207 = sbr.rel (%p205) target = $region36
      $region35: #{tpu_custom_call.1} parent=31 // pred_region
        %s208 = smul.u32 8, %s12
        %p209 = scmp.lt.s32.totalorder %s208, 15
        %s210 = scalar_select %p209, %s208, 15
        %s211 = smul.addr %s210, 3
        %s212 = smul.addr %s211, 8
        %s213 = scalar_lea.vmem %s0, %s212
        %s214 = smul.u32 8, %s12
      $region36: #{tpu_custom_call.1} parent=31 // pred_fallthru
        _
      // Predicated region
      $region37: #{tpu_custom_call.1} parent=31 // pred_check
        %p215 = pneg %p58
      $region38: #{tpu_custom_call.1} parent=31 // pred_check_branch
        %217 = sbr.rel (%p215) target = $region40
      $region39: #{tpu_custom_call.1} parent=31 // pred_region
        %s218 = smul.u32 8, %s12
        %p219 = scmp.lt.s32.totalorder %s218, 15
        %s220 = scalar_select %p219, %s218, 15
        %s221 = scalar_lea.vmem %s1, %s220
        %s222 = smul.u32 8, %s12
      $region40: #{tpu_custom_call.1} parent=31 // pred_fallthru
        _
    $region32: #{tpu_custom_call.1} parent=5 // pred_fallthru
      _
    %p223 = scmp.le.s32.totalorder 1, %s12
    %p224 = scmp.lt.s32.totalorder %s12, 3
    %p225 = pnand %p223, %p224
    %p226 = pneg %p225
    // Predicated region
    $region41: #{tpu_custom_call.1} parent=5 // pred_check
      _
    $region42: #{tpu_custom_call.1} parent=5 // pred_check_branch
      %228 = sbr.rel (%p225) target = $region44
    $region43: #{tpu_custom_call.1} parent=5 // pred_region
      %s229 = ssub.s32 %s12, 1
      %s230 = smul.u32 8, %s17
      %p231 = scmp.lt.s32.totalorder %s230, 15
      %s232 = scalar_select %p231, %s230, 15
      %s233 = smul.addr %s232, 3
      %s234 = smul.addr %s233, 8
      %s235 = scalar_lea.vmem %s0, %s234
      %p236 = pneg %p38
      %p237 = pneg %p35
      %s238 = smul.u32 8, %s17
      %p239 = scmp.lt.s32.totalorder %s238, 15
      %s240 = scalar_select %p239, %s238, 15
      %s241 = scalar_lea.vmem %s1, %s240
      %p242 = pneg %p64
      %p243 = pneg %p61
      %p244 = pneg %p85
      %p245 = pneg %p82
      %p246 = pneg %p106
      %p247 = pneg %p103
      %p248 = pneg %p127
      %p249 = pneg %p124
      %p250 = pneg %p148
      %p251 = pneg %p145
      %p252 = pneg %p174
      %p253 = pneg %p171
      %p254 = scmp.lt.s32.totalorder %s17, 1
      %s255 = scalar_select %p254, %s17, 1
      %s256 = smul.addr %s255, 8
      %s257 = scalar_lea.vmem %s6, %s256
      %s258 = smul.u32 8, %s17
      %p259 = scmp.lt.s32.totalorder %s258, 15
      %s260 = scalar_select %p259, %s258, 15
      %s261 = smul.addr %s260, 3
      %s262 = smul.addr %s261, 8
      %s263 = scalar_lea.vmem %s0, %s262
      %s264 = smul.u32 8, %s17
      %s265 = smul.u32 8, %s17
      %p266 = scmp.lt.s32.totalorder %s265, 15
      %s267 = scalar_select %p266, %s265, 15
      %s268 = scalar_lea.vmem %s1, %s267
      %s269 = smul.u32 8, %s17
      %p270 = scmp.lt.s32.totalorder %s17, 1
      %s271 = scalar_select %p270, %s17, 1
      %s272 = smul.addr %s271, 8
      %s273 = scalar_lea.vmem %s6, %s272
      %v274 = vld [vmem:[%s263] sm:$0xff]
      %v275 = vld [vmem:[%s263 + $0x8] sm:$0xff]
      %v276 = vld [vmem:[%s263 + $0x10] sm:$0x3]
      %v277 = vld [vmem:[%s263 + $0x18] sm:$0xff]
      %v278 = vld [vmem:[%s263 + $0x20] sm:$0xff]
      %v279 = vld [vmem:[%s263 + $0x28] sm:$0x3]
      %v280 = vld [vmem:[%s263 + $0x30] sm:$0xff]
      %v281 = vld [vmem:[%s263 + $0x38] sm:$0xff]
      %v282 = vld [vmem:[%s263 + $0x40] sm:$0x3]
      %v283 = vld [vmem:[%s263 + $0x48] sm:$0xff]
      %v284 = vld [vmem:[%s263 + $0x50] sm:$0xff]
      %v285 = vld [vmem:[%s263 + $0x58] sm:$0x3]
      %v286 = vld [vmem:[%s263 + $0x60] sm:$0xff]
      %v287 = vld [vmem:[%s263 + $0x68] sm:$0xff]
      %v288 = vld [vmem:[%s263 + $0x70] sm:$0x3]
      %v289 = vld [vmem:[%s263 + $0x78] sm:$0xff]
      %v290 = vld [vmem:[%s263 + $0x80] sm:$0xff]
      %v291 = vld [vmem:[%s263 + $0x88] sm:$0x3]
      %v292 = vld [vmem:[%s263 + $0x90] sm:$0xff]
      %v293 = vld [vmem:[%s263 + $0x98] sm:$0xff]
      %v294 = vld [vmem:[%s263 + $0xa0] sm:$0x3]
      %v295 = vld [vmem:[%s263 + $0xa8] sm:$0xff]
      %v296 = vld [vmem:[%s263 + $0xb0] sm:$0xff]
      %v297 = vld [vmem:[%s263 + $0xb8] sm:$0x3]
      %v298 = vld [vmem:[%s268] sm:$0x1]
      %v299 = vld [vmem:[%s268 + $0x1] sm:$0x1]
      %v300 = vld [vmem:[%s268 + $0x2] sm:$0x1]
      %v301 = vld [vmem:[%s268 + $0x3] sm:$0x1]
      %v302 = vld [vmem:[%s268 + $0x4] sm:$0x1]
      %v303 = vld [vmem:[%s268 + $0x5] sm:$0x1]
      %v304 = vld [vmem:[%s268 + $0x6] sm:$0x1]
      %v305 = vld [vmem:[%s268 + $0x7] sm:$0x1]
      %v314 = vlaneseq
      %v315 = vshrl.u32 %v314, 7
      %v316 = vsub.s32 0, %v315
      %v317 = vrot.slane %v298, %v316
      %v318 = vlaneseq
      %v319 = vshrl.u32 %v318, 7
      %v320 = vsub.s32 0, %v319
      %v321 = vrot.slane %v299, %v320
      %v322 = vlaneseq
      %v323 = vshrl.u32 %v322, 7
      %v324 = vsub.s32 0, %v323
      %v325 = vrot.slane %v300, %v324
      %v326 = vlaneseq
      %v327 = vshrl.u32 %v326, 7
      %v328 = vsub.s32 0, %v327
      %v329 = vrot.slane %v301, %v328
      %v330 = vlaneseq
      %v331 = vshrl.u32 %v330, 7
      %v332 = vsub.s32 0, %v331
      %v333 = vrot.slane %v302, %v332
      %v334 = vlaneseq
      %v335 = vshrl.u32 %v334, 7
      %v336 = vsub.s32 0, %v335
      %v337 = vrot.slane %v303, %v336
      %v338 = vlaneseq
      %v339 = vshrl.u32 %v338, 7
      %v340 = vsub.s32 0, %v339
      %v341 = vrot.slane %v304, %v340
      %v342 = vlaneseq
      %v343 = vshrl.u32 %v342, 7
      %v344 = vsub.s32 0, %v343
      %v345 = vrot.slane %v305, %v344
      %v354 = vmul.f32 %v274, %v317
      %v355 = vmul.f32 %v275, %v317
      %v356 = vmul.f32 %v276, %v317
      %v357 = vmul.f32 %v277, %v321
      %v358 = vmul.f32 %v278, %v321
      %v359 = vmul.f32 %v279, %v321
      %v360 = vmul.f32 %v280, %v325
      %v361 = vmul.f32 %v281, %v325
      %v362 = vmul.f32 %v282, %v325
      %v363 = vmul.f32 %v283, %v329
      %v364 = vmul.f32 %v284, %v329
      %v365 = vmul.f32 %v285, %v329
      %v366 = vmul.f32 %v286, %v333
      %v367 = vmul.f32 %v287, %v333
      %v368 = vmul.f32 %v288, %v333
      %v369 = vmul.f32 %v289, %v337
      %v370 = vmul.f32 %v290, %v337
      %v371 = vmul.f32 %v291, %v337
      %v372 = vmul.f32 %v292, %v341
      %v373 = vmul.f32 %v293, %v341
      %v374 = vmul.f32 %v294, %v341
      %v375 = vmul.f32 %v295, %v345
      %v376 = vmul.f32 %v296, %v345
      %v377 = vmul.f32 %v297, %v345
      %v378 = vld [vmem:[%s2] sm:$0xff]
      %v379 = vld [vmem:[%s2 + $0x8] sm:$0xff]
      %v380 = vld [vmem:[%s2 + $0x10] sm:$0xff]
      %v381 = vld [vmem:[%s2 + $0x18] sm:$0xff]
      %s382 = scalar_lea.vmem %s2, 32
      %v383 = vld [vmem:[%s382] sm:$0xff]
      %v384 = vld [vmem:[%s382 + $0x8] sm:$0xff]
      %v385 = vld [vmem:[%s382 + $0x10] sm:$0xff]
      %v386 = vld [vmem:[%s382 + $0x18] sm:$0xff]
      %v403 = vcombine.high %v354, %v354
      %v405 = vunpack.c.l.s4 1983009808
      %v406 = vunpack.c.0.s8 %v405
      %v407 = vlaneseq
      %v408 = vshrl.u32 %v407, 7
      %v409 = vsub.s32 %v406, %v408
      %v410 = vrot.slane %v354, %v409
      %v412 = vunpack.c.l.s4 1983009808
      %v413 = vunpack.c.0.s8 %v412
      %v414 = vlaneseq
      %v415 = vshrl.u32 %v414, 7
      %v416 = vsub.s32 %v413, %v415
      %v417 = vrot.slane %v403, %v416
      %v418 = vcombine.high %v410, %v410
      %v419 = vcombine.high %v417, %v417
      %v420 = vcombine.high %v355, %v355
      %v422 = vunpack.c.l.s4 1983009808
      %v423 = vunpack.c.0.s8 %v422
      %v424 = vlaneseq
      %v425 = vshrl.u32 %v424, 7
      %v426 = vsub.s32 %v423, %v425
      %v427 = vrot.slane %v355, %v426
      %v429 = vunpack.c.l.s4 1983009808
      %v430 = vunpack.c.0.s8 %v429
      %v431 = vlaneseq
      %v432 = vshrl.u32 %v431, 7
      %v433 = vsub.s32 %v430, %v432
      %v434 = vrot.slane %v420, %v433
      %v435 = vcombine.high %v427, %v427
      %v436 = vcombine.high %v434, %v434
      %v437 = vcombine.high %v357, %v357
      %v439 = vunpack.c.l.s4 1983009808
      %v440 = vunpack.c.0.s8 %v439
      %v441 = vlaneseq
      %v442 = vshrl.u32 %v441, 7
      %v443 = vsub.s32 %v440, %v442
      %v444 = vrot.slane %v357, %v443
      %v446 = vunpack.c.l.s4 1983009808
      %v447 = vunpack.c.0.s8 %v446
      %v448 = vlaneseq
      %v449 = vshrl.u32 %v448, 7
      %v450 = vsub.s32 %v447, %v449
      %v451 = vrot.slane %v437, %v450
      %v452 = vcombine.high %v444, %v444
      %v453 = vcombine.high %v451, %v451
      %v454 = vcombine.high %v358, %v358
      %v456 = vunpack.c.l.s4 1983009808
      %v457 = vunpack.c.0.s8 %v456
      %v458 = vlaneseq
      %v459 = vshrl.u32 %v458, 7
      %v460 = vsub.s32 %v457, %v459
      %v461 = vrot.slane %v358, %v460
      %v463 = vunpack.c.l.s4 1983009808
      %v464 = vunpack.c.0.s8 %v463
      %v465 = vlaneseq
      %v466 = vshrl.u32 %v465, 7
      %v467 = vsub.s32 %v464, %v466
      %v468 = vrot.slane %v454, %v467
      %v469 = vcombine.high %v461, %v461
      %v470 = vcombine.high %v468, %v468
      %v471 = vcombine.high %v360, %v360
      %v473 = vunpack.c.l.s4 1983009808
      %v474 = vunpack.c.0.s8 %v473
      %v475 = vlaneseq
      %v476 = vshrl.u32 %v475, 7
      %v477 = vsub.s32 %v474, %v476
      %v478 = vrot.slane %v360, %v477
      %v480 = vunpack.c.l.s4 1983009808
      %v481 = vunpack.c.0.s8 %v480
      %v482 = vlaneseq
      %v483 = vshrl.u32 %v482, 7
      %v484 = vsub.s32 %v481, %v483
      %v485 = vrot.slane %v471, %v484
      %v486 = vcombine.high %v478, %v478
      %v487 = vcombine.high %v485, %v485
      %v488 = vcombine.high %v361, %v361
      %v490 = vunpack.c.l.s4 1983009808
      %v491 = vunpack.c.0.s8 %v490
      %v492 = vlaneseq
      %v493 = vshrl.u32 %v492, 7
      %v494 = vsub.s32 %v491, %v493
      %v495 = vrot.slane %v361, %v494
      %v497 = vunpack.c.l.s4 1983009808
      %v498 = vunpack.c.0.s8 %v497
      %v499 = vlaneseq
      %v500 = vshrl.u32 %v499, 7
      %v501 = vsub.s32 %v498, %v500
      %v502 = vrot.slane %v488, %v501
      %v503 = vcombine.high %v495, %v495
      %v504 = vcombine.high %v502, %v502
      %v505 = vcombine.high %v363, %v363
      %v507 = vunpack.c.l.s4 1983009808
      %v508 = vunpack.c.0.s8 %v507
      %v509 = vlaneseq
      %v510 = vshrl.u32 %v509, 7
      %v511 = vsub.s32 %v508, %v510
      %v512 = vrot.slane %v363, %v511
      %v514 = vunpack.c.l.s4 1983009808
      %v515 = vunpack.c.0.s8 %v514
      %v516 = vlaneseq
      %v517 = vshrl.u32 %v516, 7
      %v518 = vsub.s32 %v515, %v517
      %v519 = vrot.slane %v505, %v518
      %v520 = vcombine.high %v512, %v512
      %v521 = vcombine.high %v519, %v519
      %v522 = vcombine.high %v364, %v364
      %v524 = vunpack.c.l.s4 1983009808
      %v525 = vunpack.c.0.s8 %v524
      %v526 = vlaneseq
      %v527 = vshrl.u32 %v526, 7
      %v528 = vsub.s32 %v525, %v527
      %v529 = vrot.slane %v364, %v528
      %v531 = vunpack.c.l.s4 1983009808
      %v532 = vunpack.c.0.s8 %v531
      %v533 = vlaneseq
      %v534 = vshrl.u32 %v533, 7
      %v535 = vsub.s32 %v532, %v534
      %v536 = vrot.slane %v522, %v535
      %v537 = vcombine.high %v529, %v529
      %v538 = vcombine.high %v536, %v536
      %v539 = vcombine.high %v366, %v366
      %v541 = vunpack.c.l.s4 1983009808
      %v542 = vunpack.c.0.s8 %v541
      %v543 = vlaneseq
      %v544 = vshrl.u32 %v543, 7
      %v545 = vsub.s32 %v542, %v544
      %v546 = vrot.slane %v366, %v545
      %v548 = vunpack.c.l.s4 1983009808
      %v549 = vunpack.c.0.s8 %v548
      %v550 = vlaneseq
      %v551 = vshrl.u32 %v550, 7
      %v552 = vsub.s32 %v549, %v551
      %v553 = vrot.slane %v539, %v552
      %v554 = vcombine.high %v546, %v546
      %v555 = vcombine.high %v553, %v553
      %v556 = vcombine.high %v367, %v367
      %v558 = vunpack.c.l.s4 1983009808
      %v559 = vunpack.c.0.s8 %v558
      %v560 = vlaneseq
      %v561 = vshrl.u32 %v560, 7
      %v562 = vsub.s32 %v559, %v561
      %v563 = vrot.slane %v367, %v562
      %v565 = vunpack.c.l.s4 1983009808
      %v566 = vunpack.c.0.s8 %v565
      %v567 = vlaneseq
      %v568 = vshrl.u32 %v567, 7
      %v569 = vsub.s32 %v566, %v568
      %v570 = vrot.slane %v556, %v569
      %v571 = vcombine.high %v563, %v563
      %v572 = vcombine.high %v570, %v570
      %v573 = vcombine.high %v369, %v369
      %v575 = vunpack.c.l.s4 1983009808
      %v576 = vunpack.c.0.s8 %v575
      %v577 = vlaneseq
      %v578 = vshrl.u32 %v577, 7
      %v579 = vsub.s32 %v576, %v578
      %v580 = vrot.slane %v369, %v579
      %v582 = vunpack.c.l.s4 1983009808
      %v583 = vunpack.c.0.s8 %v582
      %v584 = vlaneseq
      %v585 = vshrl.u32 %v584, 7
      %v586 = vsub.s32 %v583, %v585
      %v587 = vrot.slane %v573, %v586
      %v588 = vcombine.high %v580, %v580
      %v589 = vcombine.high %v587, %v587
      %v590 = vcombine.high %v370, %v370
      %v592 = vunpack.c.l.s4 1983009808
      %v593 = vunpack.c.0.s8 %v592
      %v594 = vlaneseq
      %v595 = vshrl.u32 %v594, 7
      %v596 = vsub.s32 %v593, %v595
      %v597 = vrot.slane %v370, %v596
      %v599 = vunpack.c.l.s4 1983009808
      %v600 = vunpack.c.0.s8 %v599
      %v601 = vlaneseq
      %v602 = vshrl.u32 %v601, 7
      %v603 = vsub.s32 %v600, %v602
      %v604 = vrot.slane %v590, %v603
      %v605 = vcombine.high %v597, %v597
      %v606 = vcombine.high %v604, %v604
      %v607 = vcombine.high %v372, %v372
      %v609 = vunpack.c.l.s4 1983009808
      %v610 = vunpack.c.0.s8 %v609
      %v611 = vlaneseq
      %v612 = vshrl.u32 %v611, 7
      %v613 = vsub.s32 %v610, %v612
      %v614 = vrot.slane %v372, %v613
      %v616 = vunpack.c.l.s4 1983009808
      %v617 = vunpack.c.0.s8 %v616
      %v618 = vlaneseq
      %v619 = vshrl.u32 %v618, 7
      %v620 = vsub.s32 %v617, %v619
      %v621 = vrot.slane %v607, %v620
      %v622 = vcombine.high %v614, %v614
      %v623 = vcombine.high %v621, %v621
      %v624 = vcombine.high %v373, %v373
      %v626 = vunpack.c.l.s4 1983009808
      %v627 = vunpack.c.0.s8 %v626
      %v628 = vlaneseq
      %v629 = vshrl.u32 %v628, 7
      %v630 = vsub.s32 %v627, %v629
      %v631 = vrot.slane %v373, %v630
      %v633 = vunpack.c.l.s4 1983009808
      %v634 = vunpack.c.0.s8 %v633
      %v635 = vlaneseq
      %v636 = vshrl.u32 %v635, 7
      %v637 = vsub.s32 %v634, %v636
      %v638 = vrot.slane %v624, %v637
      %v639 = vcombine.high %v631, %v631
      %v640 = vcombine.high %v638, %v638
      %v641 = vcombine.high %v375, %v375
      %v643 = vunpack.c.l.s4 1983009808
      %v644 = vunpack.c.0.s8 %v643
      %v645 = vlaneseq
      %v646 = vshrl.u32 %v645, 7
      %v647 = vsub.s32 %v644, %v646
      %v648 = vrot.slane %v375, %v647
      %v650 = vunpack.c.l.s4 1983009808
      %v651 = vunpack.c.0.s8 %v650
      %v652 = vlaneseq
      %v653 = vshrl.u32 %v652, 7
      %v654 = vsub.s32 %v651, %v653
      %v655 = vrot.slane %v641, %v654
      %v656 = vcombine.high %v648, %v648
      %v657 = vcombine.high %v655, %v655
      %v658 = vcombine.high %v376, %v376
      %v660 = vunpack.c.l.s4 1983009808
      %v661 = vunpack.c.0.s8 %v660
      %v662 = vlaneseq
      %v663 = vshrl.u32 %v662, 7
      %v664 = vsub.s32 %v661, %v663
      %v665 = vrot.slane %v376, %v664
      %v667 = vunpack.c.l.s4 1983009808
      %v668 = vunpack.c.0.s8 %v667
      %v669 = vlaneseq
      %v670 = vshrl.u32 %v669, 7
      %v671 = vsub.s32 %v668, %v670
      %v672 = vrot.slane %v658, %v671
      %v673 = vcombine.high %v665, %v665
      %v674 = vcombine.high %v672, %v672
      %vm675 = vcmask 1040384
      %vm676 = vcmask 1042434
      %vm677 = vmor %vm675, %vm676
      %vm678 = vcmask 1044484
      %vm679 = vmor %vm677, %vm678
      %vm680 = vcmask 1046534
      %vm681 = vmor %vm679, %vm680
      %v682 = vrot.slane %v410, 7
      %v683 = vrot.slane %v682, 2
      %v684 = vrot.slane %v418, 7
      %v685 = vsel %vm681, %v683, %v684
      %v686 = vrot.slane %v684, 2
      %v687 = vrot.slane %v417, 7
      %v688 = vsel %vm681, %v686, %v687
      %v689 = vrot.slane %v687, 2
      %v690 = vrot.slane %v419, 7
      %v691 = vsel %vm681, %v689, %v690
      %v692 = vrot.slane %v690, 2
      %v693 = vrot.slane %v427, 7
      %v694 = vsel %vm681, %v692, %v693
      %v695 = vrot.slane %v693, 2
      %v696 = vrot.slane %v435, 7
      %v697 = vsel %vm681, %v695, %v696
      %v698 = vrot.slane %v696, 2
      %v699 = vrot.slane %v434, 7
      %v700 = vsel %vm681, %v698, %v699
      %v701 = vrot.slane %v699, 2
      %v702 = vrot.slane %v436, 7
      %v703 = vsel %vm681, %v701, %v702
      %v704 = vrot.slane %v444, 7
      %v705 = vrot.slane %v704, 2
      %v706 = vrot.slane %v452, 7
      %v707 = vsel %vm681, %v705, %v706
      %v708 = vrot.slane %v706, 2
      %v709 = vrot.slane %v451, 7
      %v710 = vsel %vm681, %v708, %v709
      %v711 = vrot.slane %v709, 2
      %v712 = vrot.slane %v453, 7
      %v713 = vsel %vm681, %v711, %v712
      %v714 = vrot.slane %v712, 2
      %v715 = vrot.slane %v461, 7
      %v716 = vsel %vm681, %v714, %v715
      %v717 = vrot.slane %v715, 2
      %v718 = vrot.slane %v469, 7
      %v719 = vsel %vm681, %v717, %v718
      %v720 = vrot.slane %v718, 2
      %v721 = vrot.slane %v468, 7
      %v722 = vsel %vm681, %v720, %v721
      %v723 = vrot.slane %v721, 2
      %v724 = vrot.slane %v470, 7
      %v725 = vsel %vm681, %v723, %v724
      %v726 = vrot.slane %v478, 7
      %v727 = vrot.slane %v726, 2
      %v728 = vrot.slane %v486, 7
      %v729 = vsel %vm681, %v727, %v728
      %v730 = vrot.slane %v728, 2
      %v731 = vrot.slane %v485, 7
      %v732 = vsel %vm681, %v730, %v731
      %v733 = vrot.slane %v731, 2
      %v734 = vrot.slane %v487, 7
      %v735 = vsel %vm681, %v733, %v734
      %v736 = vrot.slane %v734, 2
      %v737 = vrot.slane %v495, 7
      %v738 = vsel %vm681, %v736, %v737
      %v739 = vrot.slane %v737, 2
      %v740 = vrot.slane %v503, 7
      %v741 = vsel %vm681, %v739, %v740
      %v742 = vrot.slane %v740, 2
      %v743 = vrot.slane %v502, 7
      %v744 = vsel %vm681, %v742, %v743
      %v745 = vrot.slane %v743, 2
      %v746 = vrot.slane %v504, 7
      %v747 = vsel %vm681, %v745, %v746
      %v748 = vrot.slane %v512, 7
      %v749 = vrot.slane %v748, 2
      %v750 = vrot.slane %v520, 7
      %v751 = vsel %vm681, %v749, %v750
      %v752 = vrot.slane %v750, 2
      %v753 = vrot.slane %v519, 7
      %v754 = vsel %vm681, %v752, %v753
      %v755 = vrot.slane %v753, 2
      %v756 = vrot.slane %v521, 7
      %v757 = vsel %vm681, %v755, %v756
      %v758 = vrot.slane %v756, 2
      %v759 = vrot.slane %v529, 7
      %v760 = vsel %vm681, %v758, %v759
      %v761 = vrot.slane %v759, 2
      %v762 = vrot.slane %v537, 7
      %v763 = vsel %vm681, %v761, %v762
      %v764 = vrot.slane %v762, 2
      %v765 = vrot.slane %v536, 7
      %v766 = vsel %vm681, %v764, %v765
      %v767 = vrot.slane %v765, 2
      %v768 = vrot.slane %v538, 7
      %v769 = vsel %vm681, %v767, %v768
      %v770 = vrot.slane %v546, 7
      %v771 = vrot.slane %v770, 2
      %v772 = vrot.slane %v554, 7
      %v773 = vsel %vm681, %v771, %v772
      %v774 = vrot.slane %v772, 2
      %v775 = vrot.slane %v553, 7
      %v776 = vsel %vm681, %v774, %v775
      %v777 = vrot.slane %v775, 2
      %v778 = vrot.slane %v555, 7
      %v779 = vsel %vm681, %v777, %v778
      %v780 = vrot.slane %v778, 2
      %v781 = vrot.slane %v563, 7
      %v782 = vsel %vm681, %v780, %v781
      %v783 = vrot.slane %v781, 2
      %v784 = vrot.slane %v571, 7
      %v785 = vsel %vm681, %v783, %v784
      %v786 = vrot.slane %v784, 2
      %v787 = vrot.slane %v570, 7
      %v788 = vsel %vm681, %v786, %v787
      %v789 = vrot.slane %v787, 2
      %v790 = vrot.slane %v572, 7
      %v791 = vsel %vm681, %v789, %v790
      %v792 = vrot.slane %v580, 7
      %v793 = vrot.slane %v792, 2
      %v794 = vrot.slane %v588, 7
      %v795 = vsel %vm681, %v793, %v794
      %v796 = vrot.slane %v794, 2
      %v797 = vrot.slane %v587, 7
      %v798 = vsel %vm681, %v796, %v797
      %v799 = vrot.slane %v797, 2
      %v800 = vrot.slane %v589, 7
      %v801 = vsel %vm681, %v799, %v800
      %v802 = vrot.slane %v800, 2
      %v803 = vrot.slane %v597, 7
      %v804 = vsel %vm681, %v802, %v803
      %v805 = vrot.slane %v803, 2
      %v806 = vrot.slane %v605, 7
      %v807 = vsel %vm681, %v805, %v806
      %v808 = vrot.slane %v806, 2
      %v809 = vrot.slane %v604, 7
      %v810 = vsel %vm681, %v808, %v809
      %v811 = vrot.slane %v809, 2
      %v812 = vrot.slane %v606, 7
      %v813 = vsel %vm681, %v811, %v812
      %v814 = vrot.slane %v614, 7
      %v815 = vrot.slane %v814, 2
      %v816 = vrot.slane %v622, 7
      %v817 = vsel %vm681, %v815, %v816
      %v818 = vrot.slane %v816, 2
      %v819 = vrot.slane %v621, 7
      %v820 = vsel %vm681, %v818, %v819
      %v821 = vrot.slane %v819, 2
      %v822 = vrot.slane %v623, 7
      %v823 = vsel %vm681, %v821, %v822
      %v824 = vrot.slane %v822, 2
      %v825 = vrot.slane %v631, 7
      %v826 = vsel %vm681, %v824, %v825
      %v827 = vrot.slane %v825, 2
      %v828 = vrot.slane %v639, 7
      %v829 = vsel %vm681, %v827, %v828
      %v830 = vrot.slane %v828, 2
      %v831 = vrot.slane %v638, 7
      %v832 = vsel %vm681, %v830, %v831
      %v833 = vrot.slane %v831, 2
      %v834 = vrot.slane %v640, 7
      %v835 = vsel %vm681, %v833, %v834
      %v836 = vrot.slane %v648, 7
      %v837 = vrot.slane %v836, 2
      %v838 = vrot.slane %v656, 7
      %v839 = vsel %vm681, %v837, %v838
      %v840 = vrot.slane %v838, 2
      %v841 = vrot.slane %v655, 7
      %v842 = vsel %vm681, %v840, %v841
      %v843 = vrot.slane %v841, 2
      %v844 = vrot.slane %v657, 7
      %v845 = vsel %vm681, %v843, %v844
      %v846 = vrot.slane %v844, 2
      %v847 = vrot.slane %v665, 7
      %v848 = vsel %vm681, %v846, %v847
      %v849 = vrot.slane %v847, 2
      %v850 = vrot.slane %v673, 7
      %v851 = vsel %vm681, %v849, %v850
      %v852 = vrot.slane %v850, 2
      %v853 = vrot.slane %v672, 7
      %v854 = vsel %vm681, %v852, %v853
      %v855 = vrot.slane %v853, 2
      %v856 = vrot.slane %v674, 7
      %v857 = vsel %vm681, %v855, %v856
      %v858 = vcombine.low %v685, %v688
      %v859 = vcombine.low %v691, %v694
      %v861 = vunpack.c.l.s4 1983009808
      %v862 = vunpack.c.0.s8 %v861
      %v863 = vlaneseq
      %v864 = vshrl.u32 %v863, 7
      %v865 = vsub.s32 %v862, %v864
      %v866 = vrot.slane %v858, %v865
      %v868 = vunpack.c.l.s4 1983009808
      %v869 = vunpack.c.0.s8 %v868
      %v870 = vlaneseq
      %v871 = vshrl.u32 %v870, 7
      %v872 = vsub.s32 %v869, %v871
      %v873 = vrot.slane %v859, %v872
      %v874 = vcombine.low %v866, %v873
      %v875 = vcombine.low %v697, %v700
      %v876 = vcombine.low %v703, %v707
      %v878 = vunpack.c.l.s4 1983009808
      %v879 = vunpack.c.0.s8 %v878
      %v880 = vlaneseq
      %v881 = vshrl.u32 %v880, 7
      %v882 = vsub.s32 %v879, %v881
      %v883 = vrot.slane %v875, %v882
      %v885 = vunpack.c.l.s4 1983009808
      %v886 = vunpack.c.0.s8 %v885
      %v887 = vlaneseq
      %v888 = vshrl.u32 %v887, 7
      %v889 = vsub.s32 %v886, %v888
      %v890 = vrot.slane %v876, %v889
      %v891 = vcombine.low %v883, %v890
      %v892 = vcombine.low %v710, %v713
      %v893 = vcombine.low %v716, %v719
      %v895 = vunpack.c.l.s4 1983009808
      %v896 = vunpack.c.0.s8 %v895
      %v897 = vlaneseq
      %v898 = vshrl.u32 %v897, 7
      %v899 = vsub.s32 %v896, %v898
      %v900 = vrot.slane %v892, %v899
      %v902 = vunpack.c.l.s4 1983009808
      %v903 = vunpack.c.0.s8 %v902
      %v904 = vlaneseq
      %v905 = vshrl.u32 %v904, 7
      %v906 = vsub.s32 %v903, %v905
      %v907 = vrot.slane %v893, %v906
      %v908 = vcombine.low %v900, %v907
      %v909 = vcombine.low %v722, %v725
      %v910 = vcombine.low %v729, %v732
      %v912 = vunpack.c.l.s4 1983009808
      %v913 = vunpack.c.0.s8 %v912
      %v914 = vlaneseq
      %v915 = vshrl.u32 %v914, 7
      %v916 = vsub.s32 %v913, %v915
      %v917 = vrot.slane %v909, %v916
      %v919 = vunpack.c.l.s4 1983009808
      %v920 = vunpack.c.0.s8 %v919
      %v921 = vlaneseq
      %v922 = vshrl.u32 %v921, 7
      %v923 = vsub.s32 %v920, %v922
      %v924 = vrot.slane %v910, %v923
      %v925 = vcombine.low %v917, %v924
      %v926 = vcombine.low %v735, %v738
      %v927 = vcombine.low %v741, %v744
      %v929 = vunpack.c.l.s4 1983009808
      %v930 = vunpack.c.0.s8 %v929
      %v931 = vlaneseq
      %v932 = vshrl.u32 %v931, 7
      %v933 = vsub.s32 %v930, %v932
      %v934 = vrot.slane %v926, %v933
      %v936 = vunpack.c.l.s4 1983009808
      %v937 = vunpack.c.0.s8 %v936
      %v938 = vlaneseq
      %v939 = vshrl.u32 %v938, 7
      %v940 = vsub.s32 %v937, %v939
      %v941 = vrot.slane %v927, %v940
      %v942 = vcombine.low %v934, %v941
      %v943 = vcombine.low %v747, %v751
      %v944 = vcombine.low %v754, %v757
      %v946 = vunpack.c.l.s4 1983009808
      %v947 = vunpack.c.0.s8 %v946
      %v948 = vlaneseq
      %v949 = vshrl.u32 %v948, 7
      %v950 = vsub.s32 %v947, %v949
      %v951 = vrot.slane %v943, %v950
      %v953 = vunpack.c.l.s4 1983009808
      %v954 = vunpack.c.0.s8 %v953
      %v955 = vlaneseq
      %v956 = vshrl.u32 %v955, 7
      %v957 = vsub.s32 %v954, %v956
      %v958 = vrot.slane %v944, %v957
      %v959 = vcombine.low %v951, %v958
      %v960 = vcombine.low %v760, %v763
      %v961 = vcombine.low %v766, %v769
      %v963 = vunpack.c.l.s4 1983009808
      %v964 = vunpack.c.0.s8 %v963
      %v965 = vlaneseq
      %v966 = vshrl.u32 %v965, 7
      %v967 = vsub.s32 %v964, %v966
      %v968 = vrot.slane %v960, %v967
      %v970 = vunpack.c.l.s4 1983009808
      %v971 = vunpack.c.0.s8 %v970
      %v972 = vlaneseq
      %v973 = vshrl.u32 %v972, 7
      %v974 = vsub.s32 %v971, %v973
      %v975 = vrot.slane %v961, %v974
      %v976 = vcombine.low %v968, %v975
      %v977 = vcombine.low %v773, %v776
      %v978 = vcombine.low %v779, %v782
      %v980 = vunpack.c.l.s4 1983009808
      %v981 = vunpack.c.0.s8 %v980
      %v982 = vlaneseq
      %v983 = vshrl.u32 %v982, 7
      %v984 = vsub.s32 %v981, %v983
      %v985 = vrot.slane %v977, %v984
      %v987 = vunpack.c.l.s4 1983009808
      %v988 = vunpack.c.0.s8 %v987
      %v989 = vlaneseq
      %v990 = vshrl.u32 %v989, 7
      %v991 = vsub.s32 %v988, %v990
      %v992 = vrot.slane %v978, %v991
      %v993 = vcombine.low %v985, %v992
      %v994 = vcombine.low %v785, %v788
      %v995 = vcombine.low %v791, %v795
      %v997 = vunpack.c.l.s4 1983009808
      %v998 = vunpack.c.0.s8 %v997
      %v999 = vlaneseq
      %v1000 = vshrl.u32 %v999, 7
      %v1001 = vsub.s32 %v998, %v1000
      %v1002 = vrot.slane %v994, %v1001
      %v1004 = vunpack.c.l.s4 1983009808
      %v1005 = vunpack.c.0.s8 %v1004
      %v1006 = vlaneseq
      %v1007 = vshrl.u32 %v1006, 7
      %v1008 = vsub.s32 %v1005, %v1007
      %v1009 = vrot.slane %v995, %v1008
      %v1010 = vcombine.low %v1002, %v1009
      %v1011 = vcombine.low %v798, %v801
      %v1012 = vcombine.low %v804, %v807
      %v1014 = vunpack.c.l.s4 1983009808
      %v1015 = vunpack.c.0.s8 %v1014
      %v1016 = vlaneseq
      %v1017 = vshrl.u32 %v1016, 7
      %v1018 = vsub.s32 %v1015, %v1017
      %v1019 = vrot.slane %v1011, %v1018
      %v1021 = vunpack.c.l.s4 1983009808
      %v1022 = vunpack.c.0.s8 %v1021
      %v1023 = vlaneseq
      %v1024 = vshrl.u32 %v1023, 7
      %v1025 = vsub.s32 %v1022, %v1024
      %v1026 = vrot.slane %v1012, %v1025
      %v1027 = vcombine.low %v1019, %v1026
      %v1028 = vcombine.low %v810, %v813
      %v1029 = vcombine.low %v817, %v820
      %v1031 = vunpack.c.l.s4 1983009808
      %v1032 = vunpack.c.0.s8 %v1031
      %v1033 = vlaneseq
      %v1034 = vshrl.u32 %v1033, 7
      %v1035 = vsub.s32 %v1032, %v1034
      %v1036 = vrot.slane %v1028, %v1035
      %v1038 = vunpack.c.l.s4 1983009808
      %v1039 = vunpack.c.0.s8 %v1038
      %v1040 = vlaneseq
      %v1041 = vshrl.u32 %v1040, 7
      %v1042 = vsub.s32 %v1039, %v1041
      %v1043 = vrot.slane %v1029, %v1042
      %v1044 = vcombine.low %v1036, %v1043
      %v1045 = vcombine.low %v823, %v826
      %v1046 = vcombine.low %v829, %v832
      %v1048 = vunpack.c.l.s4 1983009808
      %v1049 = vunpack.c.0.s8 %v1048
      %v1050 = vlaneseq
      %v1051 = vshrl.u32 %v1050, 7
      %v1052 = vsub.s32 %v1049, %v1051
      %v1053 = vrot.slane %v1045, %v1052
      %v1055 = vunpack.c.l.s4 1983009808
      %v1056 = vunpack.c.0.s8 %v1055
      %v1057 = vlaneseq
      %v1058 = vshrl.u32 %v1057, 7
      %v1059 = vsub.s32 %v1056, %v1058
      %v1060 = vrot.slane %v1046, %v1059
      %v1061 = vcombine.low %v1053, %v1060
      %v1062 = vcombine.low %v835, %v839
      %v1063 = vcombine.low %v842, %v845
      %v1065 = vunpack.c.l.s4 1983009808
      %v1066 = vunpack.c.0.s8 %v1065
      %v1067 = vlaneseq
      %v1068 = vshrl.u32 %v1067, 7
      %v1069 = vsub.s32 %v1066, %v1068
      %v1070 = vrot.slane %v1062, %v1069
      %v1072 = vunpack.c.l.s4 1983009808
      %v1073 = vunpack.c.0.s8 %v1072
      %v1074 = vlaneseq
      %v1075 = vshrl.u32 %v1074, 7
      %v1076 = vsub.s32 %v1073, %v1075
      %v1077 = vrot.slane %v1063, %v1076
      %v1078 = vcombine.low %v1070, %v1077
      %v1079 = vcombine.low %v848, %v851
      %v1080 = vcombine.low %v854, %v857
      %v1082 = vunpack.c.l.s4 1983009808
      %v1083 = vunpack.c.0.s8 %v1082
      %v1084 = vlaneseq
      %v1085 = vshrl.u32 %v1084, 7
      %v1086 = vsub.s32 %v1083, %v1085
      %v1087 = vrot.slane %v1079, %v1086
      %v1089 = vunpack.c.l.s4 1983009808
      %v1090 = vunpack.c.0.s8 %v1089
      %v1091 = vlaneseq
      %v1092 = vshrl.u32 %v1091, 7
      %v1093 = vsub.s32 %v1090, %v1092
      %v1094 = vrot.slane %v1080, %v1093
      %v1095 = vcombine.low %v1087, %v1094
      %vm1096 = vcmask 261120
      %v1097 = vsel %vm1096, %v874, 0
      %v1099 = vsel %vm1096, %v891, 0
      %v1101 = vsel %vm1096, %v908, 0
      %v1103 = vsel %vm1096, %v925, 0
      %v1105 = vsel %vm1096, %v942, 0
      %v1107 = vsel %vm1096, %v959, 0
      %v1109 = vsel %vm1096, %v976, 0
      %v1111 = vsel %vm1096, %v993, 0
      %v1113 = vsel %vm1096, %v1010, 0
      %v1115 = vsel %vm1096, %v1027, 0
      %v1117 = vsel %vm1096, %v1044, 0
      %v1119 = vsel %vm1096, %v1061, 0
      %v1121 = vsel %vm1096, %v1078, 0
      %v1123 = vsel %vm1096, %v1095, 0
      %1125 = vmatprep.subr.mxu0 0.0
      %1126 = vmatpush1.msra.mxu0 %v383
      %1127 = vmatprep.subr.mxu0 0.0
      %1128 = vmatpush1.msra.mxu0 %v384
      %1129 = vmatprep.subr.mxu0 0.0
      %1130 = vmatpush1.msra.mxu0 %v385
      %1131 = vmatprep.subr.mxu0 0.0
      %1132 = vmatpush1.msra.mxu0 %v386
      %1133 = vmatprep.subr.mxu0 0.0
      %1134 = vmatpush1.msra.mxu0 0.0
      %1135 = vmatprep.subr.mxu0 0.0
      %1136 = vmatpush1.msra.mxu0 0.0
      %1137 = vmatprep.subr.mxu0 0.0
      %1138 = vmatpush1.msra.mxu0 0.0
      %1139 = vmatprep.subr.mxu0 0.0
      %1140 = vmatpush1.msra.mxu0 0.0
      %1141 = vmatprep.subr.mxu0 0.0
      %1142 = vmatpush1.msra.mxu0 0.0
      %1143 = vmatprep.subr.mxu0 0.0
      %1144 = vmatpush1.msra.mxu0 0.0
      %1145 = vmatprep.subr.mxu0 0.0
      %1146 = vmatpush1.msra.mxu0 0.0
      %1147 = vmatprep.subr.mxu0 0.0
      %1148 = vmatpush1.msra.mxu0 0.0
      %1149 = vmatprep.subr.mxu0 0.0
      %1150 = vmatpush1.msra.mxu0 0.0
      %1151 = vmatprep.subr.mxu0 0.0
      %1152 = vmatpush1.msra.mxu0 0.0
      %1153 = vmatprep.subr.mxu0 0.0
      %1154 = vmatpush1.msra.mxu0 0.0
      %1155 = vmatprep.subr.mxu0 0.0
      %1156 = vmatpush1.msra.mxu0 0.0
      %1157 = vmatprep.subr.mxu0 0.0
      %1158 = vmatpush1.msra.mxu0 0.0
      %1159 = vmatprep.subr.mxu0 0.0
      %1160 = vmatpush1.msra.mxu0 0.0
      %1161 = vmatprep.subr.mxu0 0.0
      %1162 = vmatpush1.msra.mxu0 0.0
      %1163 = vmatprep.subr.mxu0 0.0
      %1164 = vmatpush1.msra.mxu0 0.0
      %1165 = vmatprep.subr.mxu0 0.0
      %1166 = vmatpush1.msra.mxu0 0.0
      %1167 = vmatprep.subr.mxu0 0.0
      %1168 = vmatpush1.msra.mxu0 0.0
      %1169 = vmatprep.subr.mxu0 0.0
      %1170 = vmatpush1.msra.mxu0 0.0
      %1171 = vmatprep.subr.mxu0 0.0
      %1172 = vmatpush1.msra.mxu0 0.0
      %1173 = vmatprep.subr.mxu0 0.0
      %1174 = vmatpush1.msra.mxu0 0.0
      %1175 = vmatprep.subr.mxu0 0.0
      %1176 = vmatpush1.msra.mxu0 0.0
      %1177 = vmatprep.subr.mxu0 0.0
      %1178 = vmatpush1.msra.mxu0 0.0
      %1179 = vmatprep.subr.mxu0 0.0
      %1180 = vmatpush1.msra.mxu0 0.0
      %1181 = vmatprep.subr.mxu0 0.0
      %1182 = vmatpush1.msra.mxu0 0.0
      %1183 = vmatprep.subr.mxu0 0.0
      %1184 = vmatpush1.msra.mxu0 0.0
      %1185 = vmatprep.subr.mxu0 0.0
      %1186 = vmatpush1.msra.mxu0 0.0
      %1187 = vmatprep.subr.mxu0 0.0
      %1188 = vmatpush1.msra.mxu0 0.0
      %1189 = vmatprep.mubr.f32.mxu0 0.0
      %1190 = vmatmul.mubr.f32.gmra.mrb[0].mxu0 %v1097
      %v1191 = vpop.f32.mrb[0].mxu0
      %v1192 = vadd.f32 0.0, %v1191
      %v1193 = vpop.f32.mrb[0].mxu0
      %1194 = vmatprep.mubr.f32.mxu0 0.0
      %1195 = vmatmul.mubr.f32.gmra.mrb[0].mxu0 %v1099
      %v1196 = vpop.f32.mrb[0].mxu0
      %v1197 = vadd.f32 0.0, %v1196
      %v1198 = vpop.f32.mrb[0].mxu0
      %1199 = vmatprep.mubr.f32.mxu0 0.0
      %1200 = vmatmul.mubr.f32.gmra.mrb[0].mxu0 %v1101
      %v1201 = vpop.f32.mrb[0].mxu0
      %v1202 = vadd.f32 0.0, %v1201
      %v1203 = vpop.f32.mrb[0].mxu0
      %1204 = vmatprep.mubr.f32.mxu0 0.0
      %1205 = vmatmul.mubr.f32.gmra.mrb[0].mxu0 %v1103
      %v1206 = vpop.f32.mrb[0].mxu0
      %v1207 = vadd.f32 0.0, %v1206
      %v1208 = vpop.f32.mrb[0].mxu0
      %1209 = vmatprep.mubr.f32.mxu0 0.0
      %1210 = vmatmul.mubr.f32.gmra.mrb[0].mxu0 %v1105
      %v1211 = vpop.f32.mrb[0].mxu0
      %v1212 = vadd.f32 0.0, %v1211
      %v1213 = vpop.f32.mrb[0].mxu0
      %1214 = vmatprep.mubr.f32.mxu0 0.0
      %1215 = vmatmul.mubr.f32.gmra.mrb[0].mxu0 %v1107
      %v1216 = vpop.f32.mrb[0].mxu0
      %v1217 = vadd.f32 0.0, %v1216
      %v1218 = vpop.f32.mrb[0].mxu0
      %1219 = vmatprep.mubr.f32.mxu0 0.0
      %1220 = vmatmul.mubr.f32.gmra.mrb[0].mxu0 %v1109
      %v1221 = vpop.f32.mrb[0].mxu0
      %v1222 = vadd.f32 0.0, %v1221
      %v1223 = vpop.f32.mrb[0].mxu0
      %1224 = vmatprep.mubr.f32.mxu0 0.0
      %1225 = vmatmul.mubr.f32.gmra.mrb[0].mxu0 %v1111
      %v1226 = vpop.f32.mrb[0].mxu0
      %v1227 = vadd.f32 0.0, %v1226
      %v1228 = vpop.f32.mrb[0].mxu0
      %1229 = vmatprep.mubr.f32.mxu0 0.0
      %1230 = vmatmul.mubr.f32.gmra.mrb[0].mxu0 %v1113
      %v1231 = vpop.f32.mrb[0].mxu0
      %v1232 = vadd.f32 0.0, %v1231
      %v1233 = vpop.f32.mrb[0].mxu0
      %1234 = vmatprep.mubr.f32.mxu0 0.0
      %1235 = vmatmul.mubr.f32.gmra.mrb[0].mxu0 %v1115
      %v1236 = vpop.f32.mrb[0].mxu0
      %v1237 = vadd.f32 0.0, %v1236
      %v1238 = vpop.f32.mrb[0].mxu0
      %1239 = vmatprep.mubr.f32.mxu0 0.0
      %1240 = vmatmul.mubr.f32.gmra.mrb[0].mxu0 %v1117
      %v1241 = vpop.f32.mrb[0].mxu0
      %v1242 = vadd.f32 0.0, %v1241
      %v1243 = vpop.f32.mrb[0].mxu0
      %1244 = vmatprep.mubr.f32.mxu0 0.0
      %1245 = vmatmul.mubr.f32.gmra.mrb[0].mxu0 %v1119
      %v1246 = vpop.f32.mrb[0].mxu0
      %v1247 = vadd.f32 0.0, %v1246
      %v1248 = vpop.f32.mrb[0].mxu0
      %1249 = vmatprep.mubr.f32.mxu0 0.0
      %1250 = vmatmul.mubr.f32.gmra.mrb[0].mxu0 %v1121
      %v1251 = vpop.f32.mrb[0].mxu0
      %v1252 = vadd.f32 0.0, %v1251
      %v1253 = vpop.f32.mrb[0].mxu0
      %1254 = vmatprep.mubr.f32.mxu0 0.0
      %1255 = vmatmul.mubr.f32.gmra.mrb[0].mxu0 %v1123
      %v1256 = vpop.f32.mrb[0].mxu0
      %v1257 = vadd.f32 0.0, %v1256
      %v1258 = vpop.f32.mrb[0].mxu0
      %1259 = vdwg.mxu0
      %v1260 = vcombine.low %v410, %v418
      %v1261 = vcombine.low %v417, %v419
      %v1263 = vunpack.c.l.s4 1983009808
      %v1264 = vunpack.c.0.s8 %v1263
      %v1265 = vlaneseq
      %v1266 = vshrl.u32 %v1265, 7
      %v1267 = vsub.s32 %v1264, %v1266
      %v1268 = vrot.slane %v1260, %v1267
      %v1270 = vunpack.c.l.s4 1983009808
      %v1271 = vunpack.c.0.s8 %v1270
      %v1272 = vlaneseq
      %v1273 = vshrl.u32 %v1272, 7
      %v1274 = vsub.s32 %v1271, %v1273
      %v1275 = vrot.slane %v1261, %v1274
      %v1276 = vcombine.low %v1268, %v1275
      %v1277 = vcombine.low %v427, %v435
      %v1278 = vcombine.low %v434, %v444
      %v1280 = vunpack.c.l.s4 1983009808
      %v1281 = vunpack.c.0.s8 %v1280
      %v1282 = vlaneseq
      %v1283 = vshrl.u32 %v1282, 7
      %v1284 = vsub.s32 %v1281, %v1283
      %v1285 = vrot.slane %v1277, %v1284
      %v1287 = vunpack.c.l.s4 1983009808
      %v1288 = vunpack.c.0.s8 %v1287
      %v1289 = vlaneseq
      %v1290 = vshrl.u32 %v1289, 7
      %v1291 = vsub.s32 %v1288, %v1290
      %v1292 = vrot.slane %v1278, %v1291
      %v1293 = vcombine.low %v1285, %v1292
      %v1294 = vcombine.low %v452, %v451
      %v1295 = vcombine.low %v453, %v461
      %v1297 = vunpack.c.l.s4 1983009808
      %v1298 = vunpack.c.0.s8 %v1297
      %v1299 = vlaneseq
      %v1300 = vshrl.u32 %v1299, 7
      %v1301 = vsub.s32 %v1298, %v1300
      %v1302 = vrot.slane %v1294, %v1301
      %v1304 = vunpack.c.l.s4 1983009808
      %v1305 = vunpack.c.0.s8 %v1304
      %v1306 = vlaneseq
      %v1307 = vshrl.u32 %v1306, 7
      %v1308 = vsub.s32 %v1305, %v1307
      %v1309 = vrot.slane %v1295, %v1308
      %v1310 = vcombine.low %v1302, %v1309
      %v1311 = vcombine.low %v469, %v468
      %v1312 = vcombine.low %v478, %v486
      %v1314 = vunpack.c.l.s4 1983009808
      %v1315 = vunpack.c.0.s8 %v1314
      %v1316 = vlaneseq
      %v1317 = vshrl.u32 %v1316, 7
      %v1318 = vsub.s32 %v1315, %v1317
      %v1319 = vrot.slane %v1311, %v1318
      %v1321 = vunpack.c.l.s4 1983009808
      %v1322 = vunpack.c.0.s8 %v1321
      %v1323 = vlaneseq
      %v1324 = vshrl.u32 %v1323, 7
      %v1325 = vsub.s32 %v1322, %v1324
      %v1326 = vrot.slane %v1312, %v1325
      %v1327 = vcombine.low %v1319, %v1326
      %v1328 = vcombine.low %v485, %v487
      %v1329 = vcombine.low %v495, %v503
      %v1331 = vunpack.c.l.s4 1983009808
      %v1332 = vunpack.c.0.s8 %v1331
      %v1333 = vlaneseq
      %v1334 = vshrl.u32 %v1333, 7
      %v1335 = vsub.s32 %v1332, %v1334
      %v1336 = vrot.slane %v1328, %v1335
      %v1338 = vunpack.c.l.s4 1983009808
      %v1339 = vunpack.c.0.s8 %v1338
      %v1340 = vlaneseq
      %v1341 = vshrl.u32 %v1340, 7
      %v1342 = vsub.s32 %v1339, %v1341
      %v1343 = vrot.slane %v1329, %v1342
      %v1344 = vcombine.low %v1336, %v1343
      %v1345 = vcombine.low %v502, %v512
      %v1346 = vcombine.low %v520, %v519
      %v1348 = vunpack.c.l.s4 1983009808
      %v1349 = vunpack.c.0.s8 %v1348
      %v1350 = vlaneseq
      %v1351 = vshrl.u32 %v1350, 7
      %v1352 = vsub.s32 %v1349, %v1351
      %v1353 = vrot.slane %v1345, %v1352
      %v1355 = vunpack.c.l.s4 1983009808
      %v1356 = vunpack.c.0.s8 %v1355
      %v1357 = vlaneseq
      %v1358 = vshrl.u32 %v1357, 7
      %v1359 = vsub.s32 %v1356, %v1358
      %v1360 = vrot.slane %v1346, %v1359
      %v1361 = vcombine.low %v1353, %v1360
      %v1362 = vcombine.low %v521, %v529
      %v1363 = vcombine.low %v537, %v536
      %v1365 = vunpack.c.l.s4 1983009808
      %v1366 = vunpack.c.0.s8 %v1365
      %v1367 = vlaneseq
      %v1368 = vshrl.u32 %v1367, 7
      %v1369 = vsub.s32 %v1366, %v1368
      %v1370 = vrot.slane %v1362, %v1369
      %v1372 = vunpack.c.l.s4 1983009808
      %v1373 = vunpack.c.0.s8 %v1372
      %v1374 = vlaneseq
      %v1375 = vshrl.u32 %v1374, 7
      %v1376 = vsub.s32 %v1373, %v1375
      %v1377 = vrot.slane %v1363, %v1376
      %v1378 = vcombine.low %v1370, %v1377
      %v1379 = vcombine.low %v546, %v554
      %v1380 = vcombine.low %v553, %v555
      %v1382 = vunpack.c.l.s4 1983009808
      %v1383 = vunpack.c.0.s8 %v1382
      %v1384 = vlaneseq
      %v1385 = vshrl.u32 %v1384, 7
      %v1386 = vsub.s32 %v1383, %v1385
      %v1387 = vrot.slane %v1379, %v1386
      %v1389 = vunpack.c.l.s4 1983009808
      %v1390 = vunpack.c.0.s8 %v1389
      %v1391 = vlaneseq
      %v1392 = vshrl.u32 %v1391, 7
      %v1393 = vsub.s32 %v1390, %v1392
      %v1394 = vrot.slane %v1380, %v1393
      %v1395 = vcombine.low %v1387, %v1394
      %v1396 = vcombine.low %v563, %v571
      %v1397 = vcombine.low %v570, %v580
      %v1399 = vunpack.c.l.s4 1983009808
      %v1400 = vunpack.c.0.s8 %v1399
      %v1401 = vlaneseq
      %v1402 = vshrl.u32 %v1401, 7
      %v1403 = vsub.s32 %v1400, %v1402
      %v1404 = vrot.slane %v1396, %v1403
      %v1406 = vunpack.c.l.s4 1983009808
      %v1407 = vunpack.c.0.s8 %v1406
      %v1408 = vlaneseq
      %v1409 = vshrl.u32 %v1408, 7
      %v1410 = vsub.s32 %v1407, %v1409
      %v1411 = vrot.slane %v1397, %v1410
      %v1412 = vcombine.low %v1404, %v1411
      %v1413 = vcombine.low %v588, %v587
      %v1414 = vcombine.low %v589, %v597
      %v1416 = vunpack.c.l.s4 1983009808
      %v1417 = vunpack.c.0.s8 %v1416
      %v1418 = vlaneseq
      %v1419 = vshrl.u32 %v1418, 7
      %v1420 = vsub.s32 %v1417, %v1419
      %v1421 = vrot.slane %v1413, %v1420
      %v1423 = vunpack.c.l.s4 1983009808
      %v1424 = vunpack.c.0.s8 %v1423
      %v1425 = vlaneseq
      %v1426 = vshrl.u32 %v1425, 7
      %v1427 = vsub.s32 %v1424, %v1426
      %v1428 = vrot.slane %v1414, %v1427
      %v1429 = vcombine.low %v1421, %v1428
      %v1430 = vcombine.low %v605, %v604
      %v1431 = vcombine.low %v614, %v622
      %v1433 = vunpack.c.l.s4 1983009808
      %v1434 = vunpack.c.0.s8 %v1433
      %v1435 = vlaneseq
      %v1436 = vshrl.u32 %v1435, 7
      %v1437 = vsub.s32 %v1434, %v1436
      %v1438 = vrot.slane %v1430, %v1437
      %v1440 = vunpack.c.l.s4 1983009808
      %v1441 = vunpack.c.0.s8 %v1440
      %v1442 = vlaneseq
      %v1443 = vshrl.u32 %v1442, 7
      %v1444 = vsub.s32 %v1441, %v1443
      %v1445 = vrot.slane %v1431, %v1444
      %v1446 = vcombine.low %v1438, %v1445
      %v1447 = vcombine.low %v621, %v623
      %v1448 = vcombine.low %v631, %v639
      %v1450 = vunpack.c.l.s4 1983009808
      %v1451 = vunpack.c.0.s8 %v1450
      %v1452 = vlaneseq
      %v1453 = vshrl.u32 %v1452, 7
      %v1454 = vsub.s32 %v1451, %v1453
      %v1455 = vrot.slane %v1447, %v1454
      %v1457 = vunpack.c.l.s4 1983009808
      %v1458 = vunpack.c.0.s8 %v1457
      %v1459 = vlaneseq
      %v1460 = vshrl.u32 %v1459, 7
      %v1461 = vsub.s32 %v1458, %v1460
      %v1462 = vrot.slane %v1448, %v1461
      %v1463 = vcombine.low %v1455, %v1462
      %v1464 = vcombine.low %v638, %v648
      %v1465 = vcombine.low %v656, %v655
      %v1467 = vunpack.c.l.s4 1983009808
      %v1468 = vunpack.c.0.s8 %v1467
      %v1469 = vlaneseq
      %v1470 = vshrl.u32 %v1469, 7
      %v1471 = vsub.s32 %v1468, %v1470
      %v1472 = vrot.slane %v1464, %v1471
      %v1474 = vunpack.c.l.s4 1983009808
      %v1475 = vunpack.c.0.s8 %v1474
      %v1476 = vlaneseq
      %v1477 = vshrl.u32 %v1476, 7
      %v1478 = vsub.s32 %v1475, %v1477
      %v1479 = vrot.slane %v1465, %v1478
      %v1480 = vcombine.low %v1472, %v1479
      %v1481 = vcombine.low %v657, %v665
      %v1482 = vcombine.low %v673, %v672
      %v1484 = vunpack.c.l.s4 1983009808
      %v1485 = vunpack.c.0.s8 %v1484
      %v1486 = vlaneseq
      %v1487 = vshrl.u32 %v1486, 7
      %v1488 = vsub.s32 %v1485, %v1487
      %v1489 = vrot.slane %v1481, %v1488
      %v1491 = vunpack.c.l.s4 1983009808
      %v1492 = vunpack.c.0.s8 %v1491
      %v1493 = vlaneseq
      %v1494 = vshrl.u32 %v1493, 7
      %v1495 = vsub.s32 %v1492, %v1494
      %v1496 = vrot.slane %v1482, %v1495
      %v1497 = vcombine.low %v1489, %v1496
      %v1498 = vsel %vm1096, %v1276, 0
      %v1500 = vsel %vm1096, %v1293, 0
      %v1502 = vsel %vm1096, %v1310, 0
      %v1504 = vsel %vm1096, %v1327, 0
      %v1506 = vsel %vm1096, %v1344, 0
      %v1508 = vsel %vm1096, %v1361, 0
      %v1510 = vsel %vm1096, %v1378, 0
      %v1512 = vsel %vm1096, %v1395, 0
      %v1514 = vsel %vm1096, %v1412, 0
      %v1516 = vsel %vm1096, %v1429, 0
      %v1518 = vsel %vm1096, %v1446, 0
      %v1520 = vsel %vm1096, %v1463, 0
      %v1522 = vsel %vm1096, %v1480, 0
      %v1524 = vsel %vm1096, %v1497, 0
      %1526 = vmatprep.subr.mxu0 0.0
      %1527 = vmatpush1.msra.mxu0 %v378
      %1528 = vmatprep.subr.mxu0 0.0
      %1529 = vmatpush1.msra.mxu0 %v379
      %1530 = vmatprep.subr.mxu0 0.0
      %1531 = vmatpush1.msra.mxu0 %v380
      %1532 = vmatprep.subr.mxu0 0.0
      %1533 = vmatpush1.msra.mxu0 %v381
      %1534 = vmatprep.subr.mxu0 0.0
      %1535 = vmatpush1.msra.mxu0 0.0
      %1536 = vmatprep.subr.mxu0 0.0
      %1537 = vmatpush1.msra.mxu0 0.0
      %1538 = vmatprep.subr.mxu0 0.0
      %1539 = vmatpush1.msra.mxu0 0.0
      %1540 = vmatprep.subr.mxu0 0.0
      %1541 = vmatpush1.msra.mxu0 0.0
      %1542 = vmatprep.subr.mxu0 0.0
      %1543 = vmatpush1.msra.mxu0 0.0
      %1544 = vmatprep.subr.mxu0 0.0
      %1545 = vmatpush1.msra.mxu0 0.0
      %1546 = vmatprep.subr.mxu0 0.0
      %1547 = vmatpush1.msra.mxu0 0.0
      %1548 = vmatprep.subr.mxu0 0.0
      %1549 = vmatpush1.msra.mxu0 0.0
      %1550 = vmatprep.subr.mxu0 0.0
      %1551 = vmatpush1.msra.mxu0 0.0
      %1552 = vmatprep.subr.mxu0 0.0
      %1553 = vmatpush1.msra.mxu0 0.0
      %1554 = vmatprep.subr.mxu0 0.0
      %1555 = vmatpush1.msra.mxu0 0.0
      %1556 = vmatprep.subr.mxu0 0.0
      %1557 = vmatpush1.msra.mxu0 0.0
      %1558 = vmatprep.subr.mxu0 0.0
      %1559 = vmatpush1.msra.mxu0 0.0
      %1560 = vmatprep.subr.mxu0 0.0
      %1561 = vmatpush1.msra.mxu0 0.0
      %1562 = vmatprep.subr.mxu0 0.0
      %1563 = vmatpush1.msra.mxu0 0.0
      %1564 = vmatprep.subr.mxu0 0.0
      %1565 = vmatpush1.msra.mxu0 0.0
      %1566 = vmatprep.subr.mxu0 0.0
      %1567 = vmatpush1.msra.mxu0 0.0
      %1568 = vmatprep.subr.mxu0 0.0
      %1569 = vmatpush1.msra.mxu0 0.0
      %1570 = vmatprep.subr.mxu0 0.0
      %1571 = vmatpush1.msra.mxu0 0.0
      %1572 = vmatprep.subr.mxu0 0.0
      %1573 = vmatpush1.msra.mxu0 0.0
      %1574 = vmatprep.subr.mxu0 0.0
      %1575 = vmatpush1.msra.mxu0 0.0
      %1576 = vmatprep.subr.mxu0 0.0
      %1577 = vmatpush1.msra.mxu0 0.0
      %1578 = vmatprep.subr.mxu0 0.0
      %1579 = vmatpush1.msra.mxu0 0.0
      %1580 = vmatprep.subr.mxu0 0.0
      %1581 = vmatpush1.msra.mxu0 0.0
      %1582 = vmatprep.subr.mxu0 0.0
      %1583 = vmatpush1.msra.mxu0 0.0
      %1584 = vmatprep.subr.mxu0 0.0
      %1585 = vmatpush1.msra.mxu0 0.0
      %1586 = vmatprep.subr.mxu0 0.0
      %1587 = vmatpush1.msra.mxu0 0.0
      %1588 = vmatprep.subr.mxu0 0.0
      %1589 = vmatpush1.msra.mxu0 0.0
      %1590 = vmatprep.mubr.f32.mxu0 0.0
      %1591 = vmatmul.mubr.f32.gmra.mrb[0].mxu0 %v1498
      %v1592 = vpop.f32.mrb[0].mxu0
      %v1593 = vadd.f32 %v1192, %v1592
      %v1594 = vpop.f32.mrb[0].mxu0
      %1595 = vmatprep.mubr.f32.mxu0 0.0
      %1596 = vmatmul.mubr.f32.gmra.mrb[0].mxu0 %v1500
      %v1597 = vpop.f32.mrb[0].mxu0
      %v1598 = vadd.f32 %v1197, %v1597
      %v1599 = vpop.f32.mrb[0].mxu0
      %1600 = vmatprep.mubr.f32.mxu0 0.0
      %1601 = vmatmul.mubr.f32.gmra.mrb[0].mxu0 %v1502
      %v1602 = vpop.f32.mrb[0].mxu0
      %v1603 = vadd.f32 %v1202, %v1602
      %v1604 = vpop.f32.mrb[0].mxu0
      %1605 = vmatprep.mubr.f32.mxu0 0.0
      %1606 = vmatmul.mubr.f32.gmra.mrb[0].mxu0 %v1504
      %v1607 = vpop.f32.mrb[0].mxu0
      %v1608 = vadd.f32 %v1207, %v1607
      %v1609 = vpop.f32.mrb[0].mxu0
      %1610 = vmatprep.mubr.f32.mxu0 0.0
      %1611 = vmatmul.mubr.f32.gmra.mrb[0].mxu0 %v1506
      %v1612 = vpop.f32.mrb[0].mxu0
      %v1613 = vadd.f32 %v1212, %v1612
      %v1614 = vpop.f32.mrb[0].mxu0
      %1615 = vmatprep.mubr.f32.mxu0 0.0
      %1616 = vmatmul.mubr.f32.gmra.mrb[0].mxu0 %v1508
      %v1617 = vpop.f32.mrb[0].mxu0
      %v1618 = vadd.f32 %v1217, %v1617
      %v1619 = vpop.f32.mrb[0].mxu0
      %1620 = vmatprep.mubr.f32.mxu0 0.0
      %1621 = vmatmul.mubr.f32.gmra.mrb[0].mxu0 %v1510
      %v1622 = vpop.f32.mrb[0].mxu0
      %v1623 = vadd.f32 %v1222, %v1622
      %v1624 = vpop.f32.mrb[0].mxu0
      %1625 = vmatprep.mubr.f32.mxu0 0.0
      %1626 = vmatmul.mubr.f32.gmra.mrb[0].mxu0 %v1512
      %v1627 = vpop.f32.mrb[0].mxu0
      %v1628 = vadd.f32 %v1227, %v1627
      %v1629 = vpop.f32.mrb[0].mxu0
      %1630 = vmatprep.mubr.f32.mxu0 0.0
      %1631 = vmatmul.mubr.f32.gmra.mrb[0].mxu0 %v1514
      %v1632 = vpop.f32.mrb[0].mxu0
      %v1633 = vadd.f32 %v1232, %v1632
      %v1634 = vpop.f32.mrb[0].mxu0
      %1635 = vmatprep.mubr.f32.mxu0 0.0
      %1636 = vmatmul.mubr.f32.gmra.mrb[0].mxu0 %v1516
      %v1637 = vpop.f32.mrb[0].mxu0
      %v1638 = vadd.f32 %v1237, %v1637
      %v1639 = vpop.f32.mrb[0].mxu0
      %1640 = vmatprep.mubr.f32.mxu0 0.0
      %1641 = vmatmul.mubr.f32.gmra.mrb[0].mxu0 %v1518
      %v1642 = vpop.f32.mrb[0].mxu0
      %v1643 = vadd.f32 %v1242, %v1642
      %v1644 = vpop.f32.mrb[0].mxu0
      %1645 = vmatprep.mubr.f32.mxu0 0.0
      %1646 = vmatmul.mubr.f32.gmra.mrb[0].mxu0 %v1520
      %v1647 = vpop.f32.mrb[0].mxu0
      %v1648 = vadd.f32 %v1247, %v1647
      %v1649 = vpop.f32.mrb[0].mxu0
      %1650 = vmatprep.mubr.f32.mxu0 0.0
      %1651 = vmatmul.mubr.f32.gmra.mrb[0].mxu0 %v1522
      %v1652 = vpop.f32.mrb[0].mxu0
      %v1653 = vadd.f32 %v1252, %v1652
      %v1654 = vpop.f32.mrb[0].mxu0
      %1655 = vmatprep.mubr.f32.mxu0 0.0
      %1656 = vmatmul.mubr.f32.gmra.mrb[0].mxu0 %v1524
      %v1657 = vpop.f32.mrb[0].mxu0
      %v1658 = vadd.f32 %v1257, %v1657
      %v1659 = vpop.f32.mrb[0].mxu0
      %1660 = vdwg.mxu0
      %v1675 = vcombine.high %v1593, %v1593
      %v1677 = vunpack.c.l.s4 1983009808
      %v1678 = vunpack.c.0.s8 %v1677
      %v1679 = vlaneseq
      %v1680 = vshrl.u32 %v1679, 7
      %v1681 = vsub.s32 %v1678, %v1680
      %v1682 = vrot.slane %v1593, %v1681
      %v1684 = vunpack.c.l.s4 1983009808
      %v1685 = vunpack.c.0.s8 %v1684
      %v1686 = vlaneseq
      %v1687 = vshrl.u32 %v1686, 7
      %v1688 = vsub.s32 %v1685, %v1687
      %v1689 = vrot.slane %v1675, %v1688
      %v1690 = vcombine.high %v1682, %v1682
      %v1691 = vcombine.high %v1689, %v1689
      %v1692 = vcombine.high %v1598, %v1598
      %v1694 = vunpack.c.l.s4 1983009808
      %v1695 = vunpack.c.0.s8 %v1694
      %v1696 = vlaneseq
      %v1697 = vshrl.u32 %v1696, 7
      %v1698 = vsub.s32 %v1695, %v1697
      %v1699 = vrot.slane %v1598, %v1698
      %v1701 = vunpack.c.l.s4 1983009808
      %v1702 = vunpack.c.0.s8 %v1701
      %v1703 = vlaneseq
      %v1704 = vshrl.u32 %v1703, 7
      %v1705 = vsub.s32 %v1702, %v1704
      %v1706 = vrot.slane %v1692, %v1705
      %v1707 = vcombine.high %v1699, %v1699
      %v1708 = vcombine.high %v1706, %v1706
      %v1709 = vcombine.high %v1603, %v1603
      %v1711 = vunpack.c.l.s4 1983009808
      %v1712 = vunpack.c.0.s8 %v1711
      %v1713 = vlaneseq
      %v1714 = vshrl.u32 %v1713, 7
      %v1715 = vsub.s32 %v1712, %v1714
      %v1716 = vrot.slane %v1603, %v1715
      %v1718 = vunpack.c.l.s4 1983009808
      %v1719 = vunpack.c.0.s8 %v1718
      %v1720 = vlaneseq
      %v1721 = vshrl.u32 %v1720, 7
      %v1722 = vsub.s32 %v1719, %v1721
      %v1723 = vrot.slane %v1709, %v1722
      %v1724 = vcombine.high %v1716, %v1716
      %v1725 = vcombine.high %v1723, %v1723
      %v1726 = vcombine.high %v1608, %v1608
      %v1728 = vunpack.c.l.s4 1983009808
      %v1729 = vunpack.c.0.s8 %v1728
      %v1730 = vlaneseq
      %v1731 = vshrl.u32 %v1730, 7
      %v1732 = vsub.s32 %v1729, %v1731
      %v1733 = vrot.slane %v1608, %v1732
      %v1735 = vunpack.c.l.s4 1983009808
      %v1736 = vunpack.c.0.s8 %v1735
      %v1737 = vlaneseq
      %v1738 = vshrl.u32 %v1737, 7
      %v1739 = vsub.s32 %v1736, %v1738
      %v1740 = vrot.slane %v1726, %v1739
      %v1741 = vcombine.high %v1733, %v1733
      %v1742 = vcombine.high %v1740, %v1740
      %v1743 = vcombine.high %v1613, %v1613
      %v1745 = vunpack.c.l.s4 1983009808
      %v1746 = vunpack.c.0.s8 %v1745
      %v1747 = vlaneseq
      %v1748 = vshrl.u32 %v1747, 7
      %v1749 = vsub.s32 %v1746, %v1748
      %v1750 = vrot.slane %v1613, %v1749
      %v1752 = vunpack.c.l.s4 1983009808
      %v1753 = vunpack.c.0.s8 %v1752
      %v1754 = vlaneseq
      %v1755 = vshrl.u32 %v1754, 7
      %v1756 = vsub.s32 %v1753, %v1755
      %v1757 = vrot.slane %v1743, %v1756
      %v1758 = vcombine.high %v1750, %v1750
      %v1759 = vcombine.high %v1757, %v1757
      %v1760 = vcombine.high %v1618, %v1618
      %v1762 = vunpack.c.l.s4 1983009808
      %v1763 = vunpack.c.0.s8 %v1762
      %v1764 = vlaneseq
      %v1765 = vshrl.u32 %v1764, 7
      %v1766 = vsub.s32 %v1763, %v1765
      %v1767 = vrot.slane %v1618, %v1766
      %v1769 = vunpack.c.l.s4 1983009808
      %v1770 = vunpack.c.0.s8 %v1769
      %v1771 = vlaneseq
      %v1772 = vshrl.u32 %v1771, 7
      %v1773 = vsub.s32 %v1770, %v1772
      %v1774 = vrot.slane %v1760, %v1773
      %v1775 = vcombine.high %v1767, %v1767
      %v1776 = vcombine.high %v1774, %v1774
      %v1777 = vcombine.high %v1623, %v1623
      %v1779 = vunpack.c.l.s4 1983009808
      %v1780 = vunpack.c.0.s8 %v1779
      %v1781 = vlaneseq
      %v1782 = vshrl.u32 %v1781, 7
      %v1783 = vsub.s32 %v1780, %v1782
      %v1784 = vrot.slane %v1623, %v1783
      %v1786 = vunpack.c.l.s4 1983009808
      %v1787 = vunpack.c.0.s8 %v1786
      %v1788 = vlaneseq
      %v1789 = vshrl.u32 %v1788, 7
      %v1790 = vsub.s32 %v1787, %v1789
      %v1791 = vrot.slane %v1777, %v1790
      %v1792 = vcombine.high %v1784, %v1784
      %v1793 = vcombine.high %v1791, %v1791
      %v1794 = vcombine.high %v1628, %v1628
      %v1796 = vunpack.c.l.s4 1983009808
      %v1797 = vunpack.c.0.s8 %v1796
      %v1798 = vlaneseq
      %v1799 = vshrl.u32 %v1798, 7
      %v1800 = vsub.s32 %v1797, %v1799
      %v1801 = vrot.slane %v1628, %v1800
      %v1803 = vunpack.c.l.s4 1983009808
      %v1804 = vunpack.c.0.s8 %v1803
      %v1805 = vlaneseq
      %v1806 = vshrl.u32 %v1805, 7
      %v1807 = vsub.s32 %v1804, %v1806
      %v1808 = vrot.slane %v1794, %v1807
      %v1809 = vcombine.high %v1801, %v1801
      %v1810 = vcombine.high %v1808, %v1808
      %v1811 = vcombine.high %v1633, %v1633
      %v1813 = vunpack.c.l.s4 1983009808
      %v1814 = vunpack.c.0.s8 %v1813
      %v1815 = vlaneseq
      %v1816 = vshrl.u32 %v1815, 7
      %v1817 = vsub.s32 %v1814, %v1816
      %v1818 = vrot.slane %v1633, %v1817
      %v1820 = vunpack.c.l.s4 1983009808
      %v1821 = vunpack.c.0.s8 %v1820
      %v1822 = vlaneseq
      %v1823 = vshrl.u32 %v1822, 7
      %v1824 = vsub.s32 %v1821, %v1823
      %v1825 = vrot.slane %v1811, %v1824
      %v1826 = vcombine.high %v1818, %v1818
      %v1827 = vcombine.high %v1825, %v1825
      %v1828 = vcombine.high %v1638, %v1638
      %v1830 = vunpack.c.l.s4 1983009808
      %v1831 = vunpack.c.0.s8 %v1830
      %v1832 = vlaneseq
      %v1833 = vshrl.u32 %v1832, 7
      %v1834 = vsub.s32 %v1831, %v1833
      %v1835 = vrot.slane %v1638, %v1834
      %v1837 = vunpack.c.l.s4 1983009808
      %v1838 = vunpack.c.0.s8 %v1837
      %v1839 = vlaneseq
      %v1840 = vshrl.u32 %v1839, 7
      %v1841 = vsub.s32 %v1838, %v1840
      %v1842 = vrot.slane %v1828, %v1841
      %v1843 = vcombine.high %v1835, %v1835
      %v1844 = vcombine.high %v1842, %v1842
      %v1845 = vcombine.high %v1643, %v1643
      %v1847 = vunpack.c.l.s4 1983009808
      %v1848 = vunpack.c.0.s8 %v1847
      %v1849 = vlaneseq
      %v1850 = vshrl.u32 %v1849, 7
      %v1851 = vsub.s32 %v1848, %v1850
      %v1852 = vrot.slane %v1643, %v1851
      %v1854 = vunpack.c.l.s4 1983009808
      %v1855 = vunpack.c.0.s8 %v1854
      %v1856 = vlaneseq
      %v1857 = vshrl.u32 %v1856, 7
      %v1858 = vsub.s32 %v1855, %v1857
      %v1859 = vrot.slane %v1845, %v1858
      %v1860 = vcombine.high %v1852, %v1852
      %v1861 = vcombine.high %v1859, %v1859
      %v1862 = vcombine.high %v1648, %v1648
      %v1864 = vunpack.c.l.s4 1983009808
      %v1865 = vunpack.c.0.s8 %v1864
      %v1866 = vlaneseq
      %v1867 = vshrl.u32 %v1866, 7
      %v1868 = vsub.s32 %v1865, %v1867
      %v1869 = vrot.slane %v1648, %v1868
      %v1871 = vunpack.c.l.s4 1983009808
      %v1872 = vunpack.c.0.s8 %v1871
      %v1873 = vlaneseq
      %v1874 = vshrl.u32 %v1873, 7
      %v1875 = vsub.s32 %v1872, %v1874
      %v1876 = vrot.slane %v1862, %v1875
      %v1877 = vcombine.high %v1869, %v1869
      %v1878 = vcombine.high %v1876, %v1876
      %v1879 = vcombine.high %v1653, %v1653
      %v1881 = vunpack.c.l.s4 1983009808
      %v1882 = vunpack.c.0.s8 %v1881
      %v1883 = vlaneseq
      %v1884 = vshrl.u32 %v1883, 7
      %v1885 = vsub.s32 %v1882, %v1884
      %v1886 = vrot.slane %v1653, %v1885
      %v1888 = vunpack.c.l.s4 1983009808
      %v1889 = vunpack.c.0.s8 %v1888
      %v1890 = vlaneseq
      %v1891 = vshrl.u32 %v1890, 7
      %v1892 = vsub.s32 %v1889, %v1891
      %v1893 = vrot.slane %v1879, %v1892
      %v1894 = vcombine.high %v1886, %v1886
      %v1895 = vcombine.high %v1893, %v1893
      %v1896 = vcombine.high %v1658, %v1658
      %v1898 = vunpack.c.l.s4 1983009808
      %v1899 = vunpack.c.0.s8 %v1898
      %v1900 = vlaneseq
      %v1901 = vshrl.u32 %v1900, 7
      %v1902 = vsub.s32 %v1899, %v1901
      %v1903 = vrot.slane %v1658, %v1902
      %v1905 = vunpack.c.l.s4 1983009808
      %v1906 = vunpack.c.0.s8 %v1905
      %v1907 = vlaneseq
      %v1908 = vshrl.u32 %v1907, 7
      %v1909 = vsub.s32 %v1906, %v1908
      %v1910 = vrot.slane %v1896, %v1909
      %v1911 = vcombine.high %v1903, %v1903
      %v1912 = vcombine.high %v1910, %v1910
      %s1969 = scalar_lea.vmem %s2, 64
      %v1970 = vld [vmem:[%s1969] sm:$0xff]
      %v1971 = vld [vmem:[%s1969 + $0x8] sm:$0xff]
      %v1972 = vld [vmem:[%s1969 + $0x10] sm:$0xff]
      %v1973 = vld [vmem:[%s1969 + $0x18] sm:$0xff]
      %v1974 = vcombine.low %v418, %v417
      %v1975 = vcombine.low %v419, %v427
      %v1977 = vunpack.c.l.s4 1983009808
      %v1978 = vunpack.c.0.s8 %v1977
      %v1979 = vlaneseq
      %v1980 = vshrl.u32 %v1979, 7
      %v1981 = vsub.s32 %v1978, %v1980
      %v1982 = vrot.slane %v1974, %v1981
      %v1984 = vunpack.c.l.s4 1983009808
      %v1985 = vunpack.c.0.s8 %v1984
      %v1986 = vlaneseq
      %v1987 = vshrl.u32 %v1986, 7
      %v1988 = vsub.s32 %v1985, %v1987
      %v1989 = vrot.slane %v1975, %v1988
      %v1990 = vcombine.low %v1982, %v1989
      %v1991 = vcombine.low %v435, %v434
      %v1992 = vcombine.low %v436, %v452
      %v1994 = vunpack.c.l.s4 1983009808
      %v1995 = vunpack.c.0.s8 %v1994
      %v1996 = vlaneseq
      %v1997 = vshrl.u32 %v1996, 7
      %v1998 = vsub.s32 %v1995, %v1997
      %v1999 = vrot.slane %v1991, %v1998
      %v2001 = vunpack.c.l.s4 1983009808
      %v2002 = vunpack.c.0.s8 %v2001
      %v2003 = vlaneseq
      %v2004 = vshrl.u32 %v2003, 7
      %v2005 = vsub.s32 %v2002, %v2004
      %v2006 = vrot.slane %v1992, %v2005
      %v2007 = vcombine.low %v1999, %v2006
      %v2008 = vcombine.low %v451, %v453
      %v2009 = vcombine.low %v461, %v469
      %v2011 = vunpack.c.l.s4 1983009808
      %v2012 = vunpack.c.0.s8 %v2011
      %v2013 = vlaneseq
      %v2014 = vshrl.u32 %v2013, 7
      %v2015 = vsub.s32 %v2012, %v2014
      %v2016 = vrot.slane %v2008, %v2015
      %v2018 = vunpack.c.l.s4 1983009808
      %v2019 = vunpack.c.0.s8 %v2018
      %v2020 = vlaneseq
      %v2021 = vshrl.u32 %v2020, 7
      %v2022 = vsub.s32 %v2019, %v2021
      %v2023 = vrot.slane %v2009, %v2022
      %v2024 = vcombine.low %v2016, %v2023
      %v2025 = vcombine.low %v468, %v470
      %v2026 = vcombine.low %v486, %v485
      %v2028 = vunpack.c.l.s4 1983009808
      %v2029 = vunpack.c.0.s8 %v2028
      %v2030 = vlaneseq
      %v2031 = vshrl.u32 %v2030, 7
      %v2032 = vsub.s32 %v2029, %v2031
      %v2033 = vrot.slane %v2025, %v2032
      %v2035 = vunpack.c.l.s4 1983009808
      %v2036 = vunpack.c.0.s8 %v2035
      %v2037 = vlaneseq
      %v2038 = vshrl.u32 %v2037, 7
      %v2039 = vsub.s32 %v2036, %v2038
      %v2040 = vrot.slane %v2026, %v2039
      %v2041 = vcombine.low %v2033, %v2040
      %v2042 = vcombine.low %v487, %v495
      %v2043 = vcombine.low %v503, %v502
      %v2045 = vunpack.c.l.s4 1983009808
      %v2046 = vunpack.c.0.s8 %v2045
      %v2047 = vlaneseq
      %v2048 = vshrl.u32 %v2047, 7
      %v2049 = vsub.s32 %v2046, %v2048
      %v2050 = vrot.slane %v2042, %v2049
      %v2052 = vunpack.c.l.s4 1983009808
      %v2053 = vunpack.c.0.s8 %v2052
      %v2054 = vlaneseq
      %v2055 = vshrl.u32 %v2054, 7
      %v2056 = vsub.s32 %v2053, %v2055
      %v2057 = vrot.slane %v2043, %v2056
      %v2058 = vcombine.low %v2050, %v2057
      %v2059 = vcombine.low %v504, %v520
      %v2060 = vcombine.low %v519, %v521
      %v2062 = vunpack.c.l.s4 1983009808
      %v2063 = vunpack.c.0.s8 %v2062
      %v2064 = vlaneseq
      %v2065 = vshrl.u32 %v2064, 7
      %v2066 = vsub.s32 %v2063, %v2065
      %v2067 = vrot.slane %v2059, %v2066
      %v2069 = vunpack.c.l.s4 1983009808
      %v2070 = vunpack.c.0.s8 %v2069
      %v2071 = vlaneseq
      %v2072 = vshrl.u32 %v2071, 7
      %v2073 = vsub.s32 %v2070, %v2072
      %v2074 = vrot.slane %v2060, %v2073
      %v2075 = vcombine.low %v2067, %v2074
      %v2076 = vcombine.low %v529, %v537
      %v2077 = vcombine.low %v536, %v538
      %v2079 = vunpack.c.l.s4 1983009808
      %v2080 = vunpack.c.0.s8 %v2079
      %v2081 = vlaneseq
      %v2082 = vshrl.u32 %v2081, 7
      %v2083 = vsub.s32 %v2080, %v2082
      %v2084 = vrot.slane %v2076, %v2083
      %v2086 = vunpack.c.l.s4 1983009808
      %v2087 = vunpack.c.0.s8 %v2086
      %v2088 = vlaneseq
      %v2089 = vshrl.u32 %v2088, 7
      %v2090 = vsub.s32 %v2087, %v2089
      %v2091 = vrot.slane %v2077, %v2090
      %v2092 = vcombine.low %v2084, %v2091
      %v2093 = vcombine.low %v554, %v553
      %v2094 = vcombine.low %v555, %v563
      %v2096 = vunpack.c.l.s4 1983009808
      %v2097 = vunpack.c.0.s8 %v2096
      %v2098 = vlaneseq
      %v2099 = vshrl.u32 %v2098, 7
      %v2100 = vsub.s32 %v2097, %v2099
      %v2101 = vrot.slane %v2093, %v2100
      %v2103 = vunpack.c.l.s4 1983009808
      %v2104 = vunpack.c.0.s8 %v2103
      %v2105 = vlaneseq
      %v2106 = vshrl.u32 %v2105, 7
      %v2107 = vsub.s32 %v2104, %v2106
      %v2108 = vrot.slane %v2094, %v2107
      %v2109 = vcombine.low %v2101, %v2108
      %v2110 = vcombine.low %v571, %v570
      %v2111 = vcombine.low %v572, %v588
      %v2113 = vunpack.c.l.s4 1983009808
      %v2114 = vunpack.c.0.s8 %v2113
      %v2115 = vlaneseq
      %v2116 = vshrl.u32 %v2115, 7
      %v2117 = vsub.s32 %v2114, %v2116
      %v2118 = vrot.slane %v2110, %v2117
      %v2120 = vunpack.c.l.s4 1983009808
      %v2121 = vunpack.c.0.s8 %v2120
      %v2122 = vlaneseq
      %v2123 = vshrl.u32 %v2122, 7
      %v2124 = vsub.s32 %v2121, %v2123
      %v2125 = vrot.slane %v2111, %v2124
      %v2126 = vcombine.low %v2118, %v2125
      %v2127 = vcombine.low %v587, %v589
      %v2128 = vcombine.low %v597, %v605
      %v2130 = vunpack.c.l.s4 1983009808
      %v2131 = vunpack.c.0.s8 %v2130
      %v2132 = vlaneseq
      %v2133 = vshrl.u32 %v2132, 7
      %v2134 = vsub.s32 %v2131, %v2133
      %v2135 = vrot.slane %v2127, %v2134
      %v2137 = vunpack.c.l.s4 1983009808
      %v2138 = vunpack.c.0.s8 %v2137
      %v2139 = vlaneseq
      %v2140 = vshrl.u32 %v2139, 7
      %v2141 = vsub.s32 %v2138, %v2140
      %v2142 = vrot.slane %v2128, %v2141
      %v2143 = vcombine.low %v2135, %v2142
      %v2144 = vcombine.low %v604, %v606
      %v2145 = vcombine.low %v622, %v621
      %v2147 = vunpack.c.l.s4 1983009808
      %v2148 = vunpack.c.0.s8 %v2147
      %v2149 = vlaneseq
      %v2150 = vshrl.u32 %v2149, 7
      %v2151 = vsub.s32 %v2148, %v2150
      %v2152 = vrot.slane %v2144, %v2151
      %v2154 = vunpack.c.l.s4 1983009808
      %v2155 = vunpack.c.0.s8 %v2154
      %v2156 = vlaneseq
      %v2157 = vshrl.u32 %v2156, 7
      %v2158 = vsub.s32 %v2155, %v2157
      %v2159 = vrot.slane %v2145, %v2158
      %v2160 = vcombine.low %v2152, %v2159
      %v2161 = vcombine.low %v623, %v631
      %v2162 = vcombine.low %v639, %v638
      %v2164 = vunpack.c.l.s4 1983009808
      %v2165 = vunpack.c.0.s8 %v2164
      %v2166 = vlaneseq
      %v2167 = vshrl.u32 %v2166, 7
      %v2168 = vsub.s32 %v2165, %v2167
      %v2169 = vrot.slane %v2161, %v2168
      %v2171 = vunpack.c.l.s4 1983009808
      %v2172 = vunpack.c.0.s8 %v2171
      %v2173 = vlaneseq
      %v2174 = vshrl.u32 %v2173, 7
      %v2175 = vsub.s32 %v2172, %v2174
      %v2176 = vrot.slane %v2162, %v2175
      %v2177 = vcombine.low %v2169, %v2176
      %v2178 = vcombine.low %v640, %v656
      %v2179 = vcombine.low %v655, %v657
      %v2181 = vunpack.c.l.s4 1983009808
      %v2182 = vunpack.c.0.s8 %v2181
      %v2183 = vlaneseq
      %v2184 = vshrl.u32 %v2183, 7
      %v2185 = vsub.s32 %v2182, %v2184
      %v2186 = vrot.slane %v2178, %v2185
      %v2188 = vunpack.c.l.s4 1983009808
      %v2189 = vunpack.c.0.s8 %v2188
      %v2190 = vlaneseq
      %v2191 = vshrl.u32 %v2190, 7
      %v2192 = vsub.s32 %v2189, %v2191
      %v2193 = vrot.slane %v2179, %v2192
      %v2194 = vcombine.low %v2186, %v2193
      %v2195 = vcombine.low %v665, %v673
      %v2196 = vcombine.low %v672, %v674
      %v2198 = vunpack.c.l.s4 1983009808
      %v2199 = vunpack.c.0.s8 %v2198
      %v2200 = vlaneseq
      %v2201 = vshrl.u32 %v2200, 7
      %v2202 = vsub.s32 %v2199, %v2201
      %v2203 = vrot.slane %v2195, %v2202
      %v2205 = vunpack.c.l.s4 1983009808
      %v2206 = vunpack.c.0.s8 %v2205
      %v2207 = vlaneseq
      %v2208 = vshrl.u32 %v2207, 7
      %v2209 = vsub.s32 %v2206, %v2208
      %v2210 = vrot.slane %v2196, %v2209
      %v2211 = vcombine.low %v2203, %v2210
      %v2212 = vsel %vm1096, %v1990, 0
      %v2214 = vsel %vm1096, %v2007, 0
      %v2216 = vsel %vm1096, %v2024, 0
      %v2218 = vsel %vm1096, %v2041, 0
      %v2220 = vsel %vm1096, %v2058, 0
      %v2222 = vsel %vm1096, %v2075, 0
      %v2224 = vsel %vm1096, %v2092, 0
      %v2226 = vsel %vm1096, %v2109, 0
      %v2228 = vsel %vm1096, %v2126, 0
      %v2230 = vsel %vm1096, %v2143, 0
      %v2232 = vsel %vm1096, %v2160, 0
      %v2234 = vsel %vm1096, %v2177, 0
      %v2236 = vsel %vm1096, %v2194, 0
      %v2238 = vsel %vm1096, %v2211, 0
      %2240 = vmatprep.subr.mxu0 0.0
      %2241 = vmatpush1.msra.mxu0 %v1970
      %2242 = vmatprep.subr.mxu0 0.0
      %2243 = vmatpush1.msra.mxu0 %v1971
      %2244 = vmatprep.subr.mxu0 0.0
      %2245 = vmatpush1.msra.mxu0 %v1972
      %2246 = vmatprep.subr.mxu0 0.0
      %2247 = vmatpush1.msra.mxu0 %v1973
      %2248 = vmatprep.subr.mxu0 0.0
      %2249 = vmatpush1.msra.mxu0 0.0
      %2250 = vmatprep.subr.mxu0 0.0
      %2251 = vmatpush1.msra.mxu0 0.0
      %2252 = vmatprep.subr.mxu0 0.0
      %2253 = vmatpush1.msra.mxu0 0.0
      %2254 = vmatprep.subr.mxu0 0.0
      %2255 = vmatpush1.msra.mxu0 0.0
      %2256 = vmatprep.subr.mxu0 0.0
      %2257 = vmatpush1.msra.mxu0 0.0
      %2258 = vmatprep.subr.mxu0 0.0
      %2259 = vmatpush1.msra.mxu0 0.0
      %2260 = vmatprep.subr.mxu0 0.0
      %2261 = vmatpush1.msra.mxu0 0.0
      %2262 = vmatprep.subr.mxu0 0.0
      %2263 = vmatpush1.msra.mxu0 0.0
      %2264 = vmatprep.subr.mxu0 0.0
      %2265 = vmatpush1.msra.mxu0 0.0
      %2266 = vmatprep.subr.mxu0 0.0
      %2267 = vmatpush1.msra.mxu0 0.0
      %2268 = vmatprep.subr.mxu0 0.0
      %2269 = vmatpush1.msra.mxu0 0.0
      %2270 = vmatprep.subr.mxu0 0.0
      %2271 = vmatpush1.msra.mxu0 0.0
      %2272 = vmatprep.subr.mxu0 0.0
      %2273 = vmatpush1.msra.mxu0 0.0
      %2274 = vmatprep.subr.mxu0 0.0
      %2275 = vmatpush1.msra.mxu0 0.0
      %2276 = vmatprep.subr.mxu0 0.0
      %2277 = vmatpush1.msra.mxu0 0.0
      %2278 = vmatprep.subr.mxu0 0.0
      %2279 = vmatpush1.msra.mxu0 0.0
      %2280 = vmatprep.subr.mxu0 0.0
      %2281 = vmatpush1.msra.mxu0 0.0
      %2282 = vmatprep.subr.mxu0 0.0
      %2283 = vmatpush1.msra.mxu0 0.0
      %2284 = vmatprep.subr.mxu0 0.0
      %2285 = vmatpush1.msra.mxu0 0.0
      %2286 = vmatprep.subr.mxu0 0.0
      %2287 = vmatpush1.msra.mxu0 0.0
      %2288 = vmatprep.subr.mxu0 0.0
      %2289 = vmatpush1.msra.mxu0 0.0
      %2290 = vmatprep.subr.mxu0 0.0
      %2291 = vmatpush1.msra.mxu0 0.0
      %2292 = vmatprep.subr.mxu0 0.0
      %2293 = vmatpush1.msra.mxu0 0.0
      %2294 = vmatprep.subr.mxu0 0.0
      %2295 = vmatpush1.msra.mxu0 0.0
      %2296 = vmatprep.subr.mxu0 0.0
      %2297 = vmatpush1.msra.mxu0 0.0
      %2298 = vmatprep.subr.mxu0 0.0
      %2299 = vmatpush1.msra.mxu0 0.0
      %2300 = vmatprep.subr.mxu0 0.0
      %2301 = vmatpush1.msra.mxu0 0.0
      %2302 = vmatprep.subr.mxu0 0.0
      %2303 = vmatpush1.msra.mxu0 0.0
      %2304 = vmatprep.mubr.f32.mxu0 0.0
      %2305 = vmatmul.mubr.f32.gmra.mrb[0].mxu0 %v2212
      %v2306 = vpop.f32.mrb[0].mxu0
      %v2307 = vadd.f32 0.0, %v2306
      %v2308 = vpop.f32.mrb[0].mxu0
      %2309 = vmatprep.mubr.f32.mxu0 0.0
      %2310 = vmatmul.mubr.f32.gmra.mrb[0].mxu0 %v2214
      %v2311 = vpop.f32.mrb[0].mxu0
      %v2312 = vadd.f32 0.0, %v2311
      %v2313 = vpop.f32.mrb[0].mxu0
      %2314 = vmatprep.mubr.f32.mxu0 0.0
      %2315 = vmatmul.mubr.f32.gmra.mrb[0].mxu0 %v2216
      %v2316 = vpop.f32.mrb[0].mxu0
      %v2317 = vadd.f32 0.0, %v2316
      %v2318 = vpop.f32.mrb[0].mxu0
      %2319 = vmatprep.mubr.f32.mxu0 0.0
      %2320 = vmatmul.mubr.f32.gmra.mrb[0].mxu0 %v2218
      %v2321 = vpop.f32.mrb[0].mxu0
      %v2322 = vadd.f32 0.0, %v2321
      %v2323 = vpop.f32.mrb[0].mxu0
      %2324 = vmatprep.mubr.f32.mxu0 0.0
      %2325 = vmatmul.mubr.f32.gmra.mrb[0].mxu0 %v2220
      %v2326 = vpop.f32.mrb[0].mxu0
      %v2327 = vadd.f32 0.0, %v2326
      %v2328 = vpop.f32.mrb[0].mxu0
      %2329 = vmatprep.mubr.f32.mxu0 0.0
      %2330 = vmatmul.mubr.f32.gmra.mrb[0].mxu0 %v2222
      %v2331 = vpop.f32.mrb[0].mxu0
      %v2332 = vadd.f32 0.0, %v2331
      %v2333 = vpop.f32.mrb[0].mxu0
      %2334 = vmatprep.mubr.f32.mxu0 0.0
      %2335 = vmatmul.mubr.f32.gmra.mrb[0].mxu0 %v2224
      %v2336 = vpop.f32.mrb[0].mxu0
      %v2337 = vadd.f32 0.0, %v2336
      %v2338 = vpop.f32.mrb[0].mxu0
      %2339 = vmatprep.mubr.f32.mxu0 0.0
      %2340 = vmatmul.mubr.f32.gmra.mrb[0].mxu0 %v2226
      %v2341 = vpop.f32.mrb[0].mxu0
      %v2342 = vadd.f32 0.0, %v2341
      %v2343 = vpop.f32.mrb[0].mxu0
      %2344 = vmatprep.mubr.f32.mxu0 0.0
      %2345 = vmatmul.mubr.f32.gmra.mrb[0].mxu0 %v2228
      %v2346 = vpop.f32.mrb[0].mxu0
      %v2347 = vadd.f32 0.0, %v2346
      %v2348 = vpop.f32.mrb[0].mxu0
      %2349 = vmatprep.mubr.f32.mxu0 0.0
      %2350 = vmatmul.mubr.f32.gmra.mrb[0].mxu0 %v2230
      %v2351 = vpop.f32.mrb[0].mxu0
      %v2352 = vadd.f32 0.0, %v2351
      %v2353 = vpop.f32.mrb[0].mxu0
      %2354 = vmatprep.mubr.f32.mxu0 0.0
      %2355 = vmatmul.mubr.f32.gmra.mrb[0].mxu0 %v2232
      %v2356 = vpop.f32.mrb[0].mxu0
      %v2357 = vadd.f32 0.0, %v2356
      %v2358 = vpop.f32.mrb[0].mxu0
      %2359 = vmatprep.mubr.f32.mxu0 0.0
      %2360 = vmatmul.mubr.f32.gmra.mrb[0].mxu0 %v2234
      %v2361 = vpop.f32.mrb[0].mxu0
      %v2362 = vadd.f32 0.0, %v2361
      %v2363 = vpop.f32.mrb[0].mxu0
      %2364 = vmatprep.mubr.f32.mxu0 0.0
      %2365 = vmatmul.mubr.f32.gmra.mrb[0].mxu0 %v2236
      %v2366 = vpop.f32.mrb[0].mxu0
      %v2367 = vadd.f32 0.0, %v2366
      %v2368 = vpop.f32.mrb[0].mxu0
      %2369 = vmatprep.mubr.f32.mxu0 0.0
      %2370 = vmatmul.mubr.f32.gmra.mrb[0].mxu0 %v2238
      %v2371 = vpop.f32.mrb[0].mxu0
      %v2372 = vadd.f32 0.0, %v2371
      %v2373 = vpop.f32.mrb[0].mxu0
      %2374 = vdwg.mxu0
      %v2389 = vcombine.high %v2307, %v2307
      %v2391 = vunpack.c.l.s4 1983009808
      %v2392 = vunpack.c.0.s8 %v2391
      %v2393 = vlaneseq
      %v2394 = vshrl.u32 %v2393, 7
      %v2395 = vsub.s32 %v2392, %v2394
      %v2396 = vrot.slane %v2307, %v2395
      %v2398 = vunpack.c.l.s4 1983009808
      %v2399 = vunpack.c.0.s8 %v2398
      %v2400 = vlaneseq
      %v2401 = vshrl.u32 %v2400, 7
      %v2402 = vsub.s32 %v2399, %v2401
      %v2403 = vrot.slane %v2389, %v2402
      %v2404 = vcombine.high %v2396, %v2396
      %v2405 = vcombine.high %v2403, %v2403
      %v2406 = vcombine.high %v2312, %v2312
      %v2408 = vunpack.c.l.s4 1983009808
      %v2409 = vunpack.c.0.s8 %v2408
      %v2410 = vlaneseq
      %v2411 = vshrl.u32 %v2410, 7
      %v2412 = vsub.s32 %v2409, %v2411
      %v2413 = vrot.slane %v2312, %v2412
      %v2415 = vunpack.c.l.s4 1983009808
      %v2416 = vunpack.c.0.s8 %v2415
      %v2417 = vlaneseq
      %v2418 = vshrl.u32 %v2417, 7
      %v2419 = vsub.s32 %v2416, %v2418
      %v2420 = vrot.slane %v2406, %v2419
      %v2421 = vcombine.high %v2413, %v2413
      %v2422 = vcombine.high %v2420, %v2420
      %v2423 = vcombine.high %v2317, %v2317
      %v2425 = vunpack.c.l.s4 1983009808
      %v2426 = vunpack.c.0.s8 %v2425
      %v2427 = vlaneseq
      %v2428 = vshrl.u32 %v2427, 7
      %v2429 = vsub.s32 %v2426, %v2428
      %v2430 = vrot.slane %v2317, %v2429
      %v2432 = vunpack.c.l.s4 1983009808
      %v2433 = vunpack.c.0.s8 %v2432
      %v2434 = vlaneseq
      %v2435 = vshrl.u32 %v2434, 7
      %v2436 = vsub.s32 %v2433, %v2435
      %v2437 = vrot.slane %v2423, %v2436
      %v2438 = vcombine.high %v2430, %v2430
      %v2439 = vcombine.high %v2437, %v2437
      %v2440 = vcombine.high %v2322, %v2322
      %v2442 = vunpack.c.l.s4 1983009808
      %v2443 = vunpack.c.0.s8 %v2442
      %v2444 = vlaneseq
      %v2445 = vshrl.u32 %v2444, 7
      %v2446 = vsub.s32 %v2443, %v2445
      %v2447 = vrot.slane %v2322, %v2446
      %v2449 = vunpack.c.l.s4 1983009808
      %v2450 = vunpack.c.0.s8 %v2449
      %v2451 = vlaneseq
      %v2452 = vshrl.u32 %v2451, 7
      %v2453 = vsub.s32 %v2450, %v2452
      %v2454 = vrot.slane %v2440, %v2453
      %v2455 = vcombine.high %v2447, %v2447
      %v2456 = vcombine.high %v2454, %v2454
      %v2457 = vcombine.high %v2327, %v2327
      %v2459 = vunpack.c.l.s4 1983009808
      %v2460 = vunpack.c.0.s8 %v2459
      %v2461 = vlaneseq
      %v2462 = vshrl.u32 %v2461, 7
      %v2463 = vsub.s32 %v2460, %v2462
      %v2464 = vrot.slane %v2327, %v2463
      %v2466 = vunpack.c.l.s4 1983009808
      %v2467 = vunpack.c.0.s8 %v2466
      %v2468 = vlaneseq
      %v2469 = vshrl.u32 %v2468, 7
      %v2470 = vsub.s32 %v2467, %v2469
      %v2471 = vrot.slane %v2457, %v2470
      %v2472 = vcombine.high %v2464, %v2464
      %v2473 = vcombine.high %v2471, %v2471
      %v2474 = vcombine.high %v2332, %v2332
      %v2476 = vunpack.c.l.s4 1983009808
      %v2477 = vunpack.c.0.s8 %v2476
      %v2478 = vlaneseq
      %v2479 = vshrl.u32 %v2478, 7
      %v2480 = vsub.s32 %v2477, %v2479
      %v2481 = vrot.slane %v2332, %v2480
      %v2483 = vunpack.c.l.s4 1983009808
      %v2484 = vunpack.c.0.s8 %v2483
      %v2485 = vlaneseq
      %v2486 = vshrl.u32 %v2485, 7
      %v2487 = vsub.s32 %v2484, %v2486
      %v2488 = vrot.slane %v2474, %v2487
      %v2489 = vcombine.high %v2481, %v2481
      %v2490 = vcombine.high %v2488, %v2488
      %v2491 = vcombine.high %v2337, %v2337
      %v2493 = vunpack.c.l.s4 1983009808
      %v2494 = vunpack.c.0.s8 %v2493
      %v2495 = vlaneseq
      %v2496 = vshrl.u32 %v2495, 7
      %v2497 = vsub.s32 %v2494, %v2496
      %v2498 = vrot.slane %v2337, %v2497
      %v2500 = vunpack.c.l.s4 1983009808
      %v2501 = vunpack.c.0.s8 %v2500
      %v2502 = vlaneseq
      %v2503 = vshrl.u32 %v2502, 7
      %v2504 = vsub.s32 %v2501, %v2503
      %v2505 = vrot.slane %v2491, %v2504
      %v2506 = vcombine.high %v2498, %v2498
      %v2507 = vcombine.high %v2505, %v2505
      %v2508 = vcombine.high %v2342, %v2342
      %v2510 = vunpack.c.l.s4 1983009808
      %v2511 = vunpack.c.0.s8 %v2510
      %v2512 = vlaneseq
      %v2513 = vshrl.u32 %v2512, 7
      %v2514 = vsub.s32 %v2511, %v2513
      %v2515 = vrot.slane %v2342, %v2514
      %v2517 = vunpack.c.l.s4 1983009808
      %v2518 = vunpack.c.0.s8 %v2517
      %v2519 = vlaneseq
      %v2520 = vshrl.u32 %v2519, 7
      %v2521 = vsub.s32 %v2518, %v2520
      %v2522 = vrot.slane %v2508, %v2521
      %v2523 = vcombine.high %v2515, %v2515
      %v2524 = vcombine.high %v2522, %v2522
      %v2525 = vcombine.high %v2347, %v2347
      %v2527 = vunpack.c.l.s4 1983009808
      %v2528 = vunpack.c.0.s8 %v2527
      %v2529 = vlaneseq
      %v2530 = vshrl.u32 %v2529, 7
      %v2531 = vsub.s32 %v2528, %v2530
      %v2532 = vrot.slane %v2347, %v2531
      %v2534 = vunpack.c.l.s4 1983009808
      %v2535 = vunpack.c.0.s8 %v2534
      %v2536 = vlaneseq
      %v2537 = vshrl.u32 %v2536, 7
      %v2538 = vsub.s32 %v2535, %v2537
      %v2539 = vrot.slane %v2525, %v2538
      %v2540 = vcombine.high %v2532, %v2532
      %v2541 = vcombine.high %v2539, %v2539
      %v2542 = vcombine.high %v2352, %v2352
      %v2544 = vunpack.c.l.s4 1983009808
      %v2545 = vunpack.c.0.s8 %v2544
      %v2546 = vlaneseq
      %v2547 = vshrl.u32 %v2546, 7
      %v2548 = vsub.s32 %v2545, %v2547
      %v2549 = vrot.slane %v2352, %v2548
      %v2551 = vunpack.c.l.s4 1983009808
      %v2552 = vunpack.c.0.s8 %v2551
      %v2553 = vlaneseq
      %v2554 = vshrl.u32 %v2553, 7
      %v2555 = vsub.s32 %v2552, %v2554
      %v2556 = vrot.slane %v2542, %v2555
      %v2557 = vcombine.high %v2549, %v2549
      %v2558 = vcombine.high %v2556, %v2556
      %v2559 = vcombine.high %v2357, %v2357
      %v2561 = vunpack.c.l.s4 1983009808
      %v2562 = vunpack.c.0.s8 %v2561
      %v2563 = vlaneseq
      %v2564 = vshrl.u32 %v2563, 7
      %v2565 = vsub.s32 %v2562, %v2564
      %v2566 = vrot.slane %v2357, %v2565
      %v2568 = vunpack.c.l.s4 1983009808
      %v2569 = vunpack.c.0.s8 %v2568
      %v2570 = vlaneseq
      %v2571 = vshrl.u32 %v2570, 7
      %v2572 = vsub.s32 %v2569, %v2571
      %v2573 = vrot.slane %v2559, %v2572
      %v2574 = vcombine.high %v2566, %v2566
      %v2575 = vcombine.high %v2573, %v2573
      %v2576 = vcombine.high %v2362, %v2362
      %v2578 = vunpack.c.l.s4 1983009808
      %v2579 = vunpack.c.0.s8 %v2578
      %v2580 = vlaneseq
      %v2581 = vshrl.u32 %v2580, 7
      %v2582 = vsub.s32 %v2579, %v2581
      %v2583 = vrot.slane %v2362, %v2582
      %v2585 = vunpack.c.l.s4 1983009808
      %v2586 = vunpack.c.0.s8 %v2585
      %v2587 = vlaneseq
      %v2588 = vshrl.u32 %v2587, 7
      %v2589 = vsub.s32 %v2586, %v2588
      %v2590 = vrot.slane %v2576, %v2589
      %v2591 = vcombine.high %v2583, %v2583
      %v2592 = vcombine.high %v2590, %v2590
      %v2593 = vcombine.high %v2367, %v2367
      %v2595 = vunpack.c.l.s4 1983009808
      %v2596 = vunpack.c.0.s8 %v2595
      %v2597 = vlaneseq
      %v2598 = vshrl.u32 %v2597, 7
      %v2599 = vsub.s32 %v2596, %v2598
      %v2600 = vrot.slane %v2367, %v2599
      %v2602 = vunpack.c.l.s4 1983009808
      %v2603 = vunpack.c.0.s8 %v2602
      %v2604 = vlaneseq
      %v2605 = vshrl.u32 %v2604, 7
      %v2606 = vsub.s32 %v2603, %v2605
      %v2607 = vrot.slane %v2593, %v2606
      %v2608 = vcombine.high %v2600, %v2600
      %v2609 = vcombine.high %v2607, %v2607
      %v2610 = vcombine.high %v2372, %v2372
      %v2612 = vunpack.c.l.s4 1983009808
      %v2613 = vunpack.c.0.s8 %v2612
      %v2614 = vlaneseq
      %v2615 = vshrl.u32 %v2614, 7
      %v2616 = vsub.s32 %v2613, %v2615
      %v2617 = vrot.slane %v2372, %v2616
      %v2619 = vunpack.c.l.s4 1983009808
      %v2620 = vunpack.c.0.s8 %v2619
      %v2621 = vlaneseq
      %v2622 = vshrl.u32 %v2621, 7
      %v2623 = vsub.s32 %v2620, %v2622
      %v2624 = vrot.slane %v2610, %v2623
      %v2625 = vcombine.high %v2617, %v2617
      %v2626 = vcombine.high %v2624, %v2624
      %v2683 = vadd.f32 %v1682, %v2396
      %v2684 = vadd.f32 %v1690, %v2404
      %v2685 = vadd.f32 %v1689, %v2403
      %v2686 = vadd.f32 %v1691, %v2405
      %v2687 = vadd.f32 %v1699, %v2413
      %v2688 = vadd.f32 %v1707, %v2421
      %v2689 = vadd.f32 %v1706, %v2420
      %v2690 = vadd.f32 %v1708, %v2422
      %v2691 = vadd.f32 %v1716, %v2430
      %v2692 = vadd.f32 %v1724, %v2438
      %v2693 = vadd.f32 %v1723, %v2437
      %v2694 = vadd.f32 %v1725, %v2439
      %v2695 = vadd.f32 %v1733, %v2447
      %v2696 = vadd.f32 %v1741, %v2455
      %v2697 = vadd.f32 %v1740, %v2454
      %v2698 = vadd.f32 %v1742, %v2456
      %v2699 = vadd.f32 %v1750, %v2464
      %v2700 = vadd.f32 %v1758, %v2472
      %v2701 = vadd.f32 %v1757, %v2471
      %v2702 = vadd.f32 %v1759, %v2473
      %v2703 = vadd.f32 %v1767, %v2481
      %v2704 = vadd.f32 %v1775, %v2489
      %v2705 = vadd.f32 %v1774, %v2488
      %v2706 = vadd.f32 %v1776, %v2490
      %v2707 = vadd.f32 %v1784, %v2498
      %v2708 = vadd.f32 %v1792, %v2506
      %v2709 = vadd.f32 %v1791, %v2505
      %v2710 = vadd.f32 %v1793, %v2507
      %v2711 = vadd.f32 %v1801, %v2515
      %v2712 = vadd.f32 %v1809, %v2523
      %v2713 = vadd.f32 %v1808, %v2522
      %v2714 = vadd.f32 %v1810, %v2524
      %v2715 = vadd.f32 %v1818, %v2532
      %v2716 = vadd.f32 %v1826, %v2540
      %v2717 = vadd.f32 %v1825, %v2539
      %v2718 = vadd.f32 %v1827, %v2541
      %v2719 = vadd.f32 %v1835, %v2549
      %v2720 = vadd.f32 %v1843, %v2557
      %v2721 = vadd.f32 %v1842, %v2556
      %v2722 = vadd.f32 %v1844, %v2558
      %v2723 = vadd.f32 %v1852, %v2566
      %v2724 = vadd.f32 %v1860, %v2574
      %v2725 = vadd.f32 %v1859, %v2573
      %v2726 = vadd.f32 %v1861, %v2575
      %v2727 = vadd.f32 %v1869, %v2583
      %v2728 = vadd.f32 %v1877, %v2591
      %v2729 = vadd.f32 %v1876, %v2590
      %v2730 = vadd.f32 %v1878, %v2592
      %v2731 = vadd.f32 %v1886, %v2600
      %v2732 = vadd.f32 %v1894, %v2608
      %v2733 = vadd.f32 %v1893, %v2607
      %v2734 = vadd.f32 %v1895, %v2609
      %v2735 = vadd.f32 %v1903, %v2617
      %v2736 = vadd.f32 %v1911, %v2625
      %v2737 = vadd.f32 %v1910, %v2624
      %v2738 = vadd.f32 %v1912, %v2626
      %s2739 = scalar_lea.vmem %s2, 96
      %v2740 = vld [vmem:[%s2739] sm:$0xff]
      %v2741 = vld [vmem:[%s2739 + $0x8] sm:$0xff]
      %v2742 = vld [vmem:[%s2739 + $0x10] sm:$0xff]
      %v2743 = vld [vmem:[%s2739 + $0x18] sm:$0xff]
      %v2753 = vunpack.c.l.s4 1983009808
      %v2754 = vunpack.c.0.s8 %v2753
      %v2755 = vlaneseq
      %v2756 = vshrl.u32 %v2755, 7
      %v2757 = vsub.s32 %v2754, %v2756
      %v2758 = vrot.slane %v356, %v2757
      %v2760 = vunpack.c.l.s4 1983009808
      %v2761 = vunpack.c.0.s8 %v2760
      %v2762 = vlaneseq
      %v2763 = vshrl.u32 %v2762, 7
      %v2764 = vsub.s32 %v2761, %v2763
      %v2765 = vrot.slane %v359, %v2764
      %v2767 = vunpack.c.l.s4 1983009808
      %v2768 = vunpack.c.0.s8 %v2767
      %v2769 = vlaneseq
      %v2770 = vshrl.u32 %v2769, 7
      %v2771 = vsub.s32 %v2768, %v2770
      %v2772 = vrot.slane %v362, %v2771
      %v2774 = vunpack.c.l.s4 1983009808
      %v2775 = vunpack.c.0.s8 %v2774
      %v2776 = vlaneseq
      %v2777 = vshrl.u32 %v2776, 7
      %v2778 = vsub.s32 %v2775, %v2777
      %v2779 = vrot.slane %v365, %v2778
      %v2781 = vunpack.c.l.s4 1983009808
      %v2782 = vunpack.c.0.s8 %v2781
      %v2783 = vlaneseq
      %v2784 = vshrl.u32 %v2783, 7
      %v2785 = vsub.s32 %v2782, %v2784
      %v2786 = vrot.slane %v368, %v2785
      %v2788 = vunpack.c.l.s4 1983009808
      %v2789 = vunpack.c.0.s8 %v2788
      %v2790 = vlaneseq
      %v2791 = vshrl.u32 %v2790, 7
      %v2792 = vsub.s32 %v2789, %v2791
      %v2793 = vrot.slane %v371, %v2792
      %v2795 = vunpack.c.l.s4 1983009808
      %v2796 = vunpack.c.0.s8 %v2795
      %v2797 = vlaneseq
      %v2798 = vshrl.u32 %v2797, 7
      %v2799 = vsub.s32 %v2796, %v2798
      %v2800 = vrot.slane %v374, %v2799
      %v2802 = vunpack.c.l.s4 1983009808
      %v2803 = vunpack.c.0.s8 %v2802
      %v2804 = vlaneseq
      %v2805 = vshrl.u32 %v2804, 7
      %v2806 = vsub.s32 %v2803, %v2805
      %v2807 = vrot.slane %v377, %v2806
      %v2808 = vrot.slane %v702, 2
      %v2809 = vrot.slane %v2758, 7
      %v2810 = vsel %vm681, %v2808, %v2809
      %v2811 = vrot.slane %v724, 2
      %v2812 = vrot.slane %v2765, 7
      %v2813 = vsel %vm681, %v2811, %v2812
      %v2814 = vrot.slane %v746, 2
      %v2815 = vrot.slane %v2772, 7
      %v2816 = vsel %vm681, %v2814, %v2815
      %v2817 = vrot.slane %v768, 2
      %v2818 = vrot.slane %v2779, 7
      %v2819 = vsel %vm681, %v2817, %v2818
      %v2820 = vrot.slane %v790, 2
      %v2821 = vrot.slane %v2786, 7
      %v2822 = vsel %vm681, %v2820, %v2821
      %v2823 = vrot.slane %v812, 2
      %v2824 = vrot.slane %v2793, 7
      %v2825 = vsel %vm681, %v2823, %v2824
      %v2826 = vrot.slane %v834, 2
      %v2827 = vrot.slane %v2800, 7
      %v2828 = vsel %vm681, %v2826, %v2827
      %v2829 = vrot.slane %v856, 2
      %v2830 = vrot.slane %v2807, 7
      %v2831 = vsel %vm681, %v2829, %v2830
      %v2832 = vcombine.low %v688, %v691
      %v2833 = vcombine.low %v694, %v697
      %v2835 = vunpack.c.l.s4 1983009808
      %v2836 = vunpack.c.0.s8 %v2835
      %v2837 = vlaneseq
      %v2838 = vshrl.u32 %v2837, 7
      %v2839 = vsub.s32 %v2836, %v2838
      %v2840 = vrot.slane %v2832, %v2839
      %v2842 = vunpack.c.l.s4 1983009808
      %v2843 = vunpack.c.0.s8 %v2842
      %v2844 = vlaneseq
      %v2845 = vshrl.u32 %v2844, 7
      %v2846 = vsub.s32 %v2843, %v2845
      %v2847 = vrot.slane %v2833, %v2846
      %v2848 = vcombine.low %v2840, %v2847
      %v2849 = vcombine.low %v700, %v703
      %v2850 = vcombine.low %v2810, %v710
      %v2852 = vunpack.c.l.s4 1983009808
      %v2853 = vunpack.c.0.s8 %v2852
      %v2854 = vlaneseq
      %v2855 = vshrl.u32 %v2854, 7
      %v2856 = vsub.s32 %v2853, %v2855
      %v2857 = vrot.slane %v2849, %v2856
      %v2859 = vunpack.c.l.s4 1983009808
      %v2860 = vunpack.c.0.s8 %v2859
      %v2861 = vlaneseq
      %v2862 = vshrl.u32 %v2861, 7
      %v2863 = vsub.s32 %v2860, %v2862
      %v2864 = vrot.slane %v2850, %v2863
      %v2865 = vcombine.low %v2857, %v2864
      %v2866 = vcombine.low %v713, %v716
      %v2867 = vcombine.low %v719, %v722
      %v2869 = vunpack.c.l.s4 1983009808
      %v2870 = vunpack.c.0.s8 %v2869
      %v2871 = vlaneseq
      %v2872 = vshrl.u32 %v2871, 7
      %v2873 = vsub.s32 %v2870, %v2872
      %v2874 = vrot.slane %v2866, %v2873
      %v2876 = vunpack.c.l.s4 1983009808
      %v2877 = vunpack.c.0.s8 %v2876
      %v2878 = vlaneseq
      %v2879 = vshrl.u32 %v2878, 7
      %v2880 = vsub.s32 %v2877, %v2879
      %v2881 = vrot.slane %v2867, %v2880
      %v2882 = vcombine.low %v2874, %v2881
      %v2883 = vcombine.low %v725, %v2813
      %v2884 = vcombine.low %v732, %v735
      %v2886 = vunpack.c.l.s4 1983009808
      %v2887 = vunpack.c.0.s8 %v2886
      %v2888 = vlaneseq
      %v2889 = vshrl.u32 %v2888, 7
      %v2890 = vsub.s32 %v2887, %v2889
      %v2891 = vrot.slane %v2883, %v2890
      %v2893 = vunpack.c.l.s4 1983009808
      %v2894 = vunpack.c.0.s8 %v2893
      %v2895 = vlaneseq
      %v2896 = vshrl.u32 %v2895, 7
      %v2897 = vsub.s32 %v2894, %v2896
      %v2898 = vrot.slane %v2884, %v2897
      %v2899 = vcombine.low %v2891, %v2898
      %v2900 = vcombine.low %v738, %v741
      %v2901 = vcombine.low %v744, %v747
      %v2903 = vunpack.c.l.s4 1983009808
      %v2904 = vunpack.c.0.s8 %v2903
      %v2905 = vlaneseq
      %v2906 = vshrl.u32 %v2905, 7
      %v2907 = vsub.s32 %v2904, %v2906
      %v2908 = vrot.slane %v2900, %v2907
      %v2910 = vunpack.c.l.s4 1983009808
      %v2911 = vunpack.c.0.s8 %v2910
      %v2912 = vlaneseq
      %v2913 = vshrl.u32 %v2912, 7
      %v2914 = vsub.s32 %v2911, %v2913
      %v2915 = vrot.slane %v2901, %v2914
      %v2916 = vcombine.low %v2908, %v2915
      %v2917 = vcombine.low %v2816, %v754
      %v2918 = vcombine.low %v757, %v760
      %v2920 = vunpack.c.l.s4 1983009808
      %v2921 = vunpack.c.0.s8 %v2920
      %v2922 = vlaneseq
      %v2923 = vshrl.u32 %v2922, 7
      %v2924 = vsub.s32 %v2921, %v2923
      %v2925 = vrot.slane %v2917, %v2924
      %v2927 = vunpack.c.l.s4 1983009808
      %v2928 = vunpack.c.0.s8 %v2927
      %v2929 = vlaneseq
      %v2930 = vshrl.u32 %v2929, 7
      %v2931 = vsub.s32 %v2928, %v2930
      %v2932 = vrot.slane %v2918, %v2931
      %v2933 = vcombine.low %v2925, %v2932
      %v2934 = vcombine.low %v763, %v766
      %v2935 = vcombine.low %v769, %v2819
      %v2937 = vunpack.c.l.s4 1983009808
      %v2938 = vunpack.c.0.s8 %v2937
      %v2939 = vlaneseq
      %v2940 = vshrl.u32 %v2939, 7
      %v2941 = vsub.s32 %v2938, %v2940
      %v2942 = vrot.slane %v2934, %v2941
      %v2944 = vunpack.c.l.s4 1983009808
      %v2945 = vunpack.c.0.s8 %v2944
      %v2946 = vlaneseq
      %v2947 = vshrl.u32 %v2946, 7
      %v2948 = vsub.s32 %v2945, %v2947
      %v2949 = vrot.slane %v2935, %v2948
      %v2950 = vcombine.low %v2942, %v2949
      %v2951 = vcombine.low %v776, %v779
      %v2952 = vcombine.low %v782, %v785
      %v2954 = vunpack.c.l.s4 1983009808
      %v2955 = vunpack.c.0.s8 %v2954
      %v2956 = vlaneseq
      %v2957 = vshrl.u32 %v2956, 7
      %v2958 = vsub.s32 %v2955, %v2957
      %v2959 = vrot.slane %v2951, %v2958
      %v2961 = vunpack.c.l.s4 1983009808
      %v2962 = vunpack.c.0.s8 %v2961
      %v2963 = vlaneseq
      %v2964 = vshrl.u32 %v2963, 7
      %v2965 = vsub.s32 %v2962, %v2964
      %v2966 = vrot.slane %v2952, %v2965
      %v2967 = vcombine.low %v2959, %v2966
      %v2968 = vcombine.low %v788, %v791
      %v2969 = vcombine.low %v2822, %v798
      %v2971 = vunpack.c.l.s4 1983009808
      %v2972 = vunpack.c.0.s8 %v2971
      %v2973 = vlaneseq
      %v2974 = vshrl.u32 %v2973, 7
      %v2975 = vsub.s32 %v2972, %v2974
      %v2976 = vrot.slane %v2968, %v2975
      %v2978 = vunpack.c.l.s4 1983009808
      %v2979 = vunpack.c.0.s8 %v2978
      %v2980 = vlaneseq
      %v2981 = vshrl.u32 %v2980, 7
      %v2982 = vsub.s32 %v2979, %v2981
      %v2983 = vrot.slane %v2969, %v2982
      %v2984 = vcombine.low %v2976, %v2983
      %v2985 = vcombine.low %v801, %v804
      %v2986 = vcombine.low %v807, %v810
      %v2988 = vunpack.c.l.s4 1983009808
      %v2989 = vunpack.c.0.s8 %v2988
      %v2990 = vlaneseq
      %v2991 = vshrl.u32 %v2990, 7
      %v2992 = vsub.s32 %v2989, %v2991
      %v2993 = vrot.slane %v2985, %v2992
      %v2995 = vunpack.c.l.s4 1983009808
      %v2996 = vunpack.c.0.s8 %v2995
      %v2997 = vlaneseq
      %v2998 = vshrl.u32 %v2997, 7
      %v2999 = vsub.s32 %v2996, %v2998
      %v3000 = vrot.slane %v2986, %v2999
      %v3001 = vcombine.low %v2993, %v3000
      %v3002 = vcombine.low %v813, %v2825
      %v3003 = vcombine.low %v820, %v823
      %v3005 = vunpack.c.l.s4 1983009808
      %v3006 = vunpack.c.0.s8 %v3005
      %v3007 = vlaneseq
      %v3008 = vshrl.u32 %v3007, 7
      %v3009 = vsub.s32 %v3006, %v3008
      %v3010 = vrot.slane %v3002, %v3009
      %v3012 = vunpack.c.l.s4 1983009808
      %v3013 = vunpack.c.0.s8 %v3012
      %v3014 = vlaneseq
      %v3015 = vshrl.u32 %v3014, 7
      %v3016 = vsub.s32 %v3013, %v3015
      %v3017 = vrot.slane %v3003, %v3016
      %v3018 = vcombine.low %v3010, %v3017
      %v3019 = vcombine.low %v826, %v829
      %v3020 = vcombine.low %v832, %v835
      %v3022 = vunpack.c.l.s4 1983009808
      %v3023 = vunpack.c.0.s8 %v3022
      %v3024 = vlaneseq
      %v3025 = vshrl.u32 %v3024, 7
      %v3026 = vsub.s32 %v3023, %v3025
      %v3027 = vrot.slane %v3019, %v3026
      %v3029 = vunpack.c.l.s4 1983009808
      %v3030 = vunpack.c.0.s8 %v3029
      %v3031 = vlaneseq
      %v3032 = vshrl.u32 %v3031, 7
      %v3033 = vsub.s32 %v3030, %v3032
      %v3034 = vrot.slane %v3020, %v3033
      %v3035 = vcombine.low %v3027, %v3034
      %v3036 = vcombine.low %v2828, %v842
      %v3037 = vcombine.low %v845, %v848
      %v3039 = vunpack.c.l.s4 1983009808
      %v3040 = vunpack.c.0.s8 %v3039
      %v3041 = vlaneseq
      %v3042 = vshrl.u32 %v3041, 7
      %v3043 = vsub.s32 %v3040, %v3042
      %v3044 = vrot.slane %v3036, %v3043
      %v3046 = vunpack.c.l.s4 1983009808
      %v3047 = vunpack.c.0.s8 %v3046
      %v3048 = vlaneseq
      %v3049 = vshrl.u32 %v3048, 7
      %v3050 = vsub.s32 %v3047, %v3049
      %v3051 = vrot.slane %v3037, %v3050
      %v3052 = vcombine.low %v3044, %v3051
      %v3053 = vcombine.low %v851, %v854
      %v3054 = vcombine.low %v857, %v2831
      %v3056 = vunpack.c.l.s4 1983009808
      %v3057 = vunpack.c.0.s8 %v3056
      %v3058 = vlaneseq
      %v3059 = vshrl.u32 %v3058, 7
      %v3060 = vsub.s32 %v3057, %v3059
      %v3061 = vrot.slane %v3053, %v3060
      %v3063 = vunpack.c.l.s4 1983009808
      %v3064 = vunpack.c.0.s8 %v3063
      %v3065 = vlaneseq
      %v3066 = vshrl.u32 %v3065, 7
      %v3067 = vsub.s32 %v3064, %v3066
      %v3068 = vrot.slane %v3054, %v3067
      %v3069 = vcombine.low %v3061, %v3068
      %v3070 = vsel %vm1096, %v2848, 0
      %v3072 = vsel %vm1096, %v2865, 0
      %v3074 = vsel %vm1096, %v2882, 0
      %v3076 = vsel %vm1096, %v2899, 0
      %v3078 = vsel %vm1096, %v2916, 0
      %v3080 = vsel %vm1096, %v2933, 0
      %v3082 = vsel %vm1096, %v2950, 0
      %v3084 = vsel %vm1096, %v2967, 0
      %v3086 = vsel %vm1096, %v2984, 0
      %v3088 = vsel %vm1096, %v3001, 0
      %v3090 = vsel %vm1096, %v3018, 0
      %v3092 = vsel %vm1096, %v3035, 0
      %v3094 = vsel %vm1096, %v3052, 0
      %v3096 = vsel %vm1096, %v3069, 0
      %3098 = vmatprep.subr.mxu0 0.0
      %3099 = vmatpush1.msra.mxu0 %v2740
      %3100 = vmatprep.subr.mxu0 0.0
      %3101 = vmatpush1.msra.mxu0 %v2741
      %3102 = vmatprep.subr.mxu0 0.0
      %3103 = vmatpush1.msra.mxu0 %v2742
      %3104 = vmatprep.subr.mxu0 0.0
      %3105 = vmatpush1.msra.mxu0 %v2743
      %3106 = vmatprep.subr.mxu0 0.0
      %3107 = vmatpush1.msra.mxu0 0.0
      %3108 = vmatprep.subr.mxu0 0.0
      %3109 = vmatpush1.msra.mxu0 0.0
      %3110 = vmatprep.subr.mxu0 0.0
      %3111 = vmatpush1.msra.mxu0 0.0
      %3112 = vmatprep.subr.mxu0 0.0
      %3113 = vmatpush1.msra.mxu0 0.0
      %3114 = vmatprep.subr.mxu0 0.0
      %3115 = vmatpush1.msra.mxu0 0.0
      %3116 = vmatprep.subr.mxu0 0.0
      %3117 = vmatpush1.msra.mxu0 0.0
      %3118 = vmatprep.subr.mxu0 0.0
      %3119 = vmatpush1.msra.mxu0 0.0
      %3120 = vmatprep.subr.mxu0 0.0
      %3121 = vmatpush1.msra.mxu0 0.0
      %3122 = vmatprep.subr.mxu0 0.0
      %3123 = vmatpush1.msra.mxu0 0.0
      %3124 = vmatprep.subr.mxu0 0.0
      %3125 = vmatpush1.msra.mxu0 0.0
      %3126 = vmatprep.subr.mxu0 0.0
      %3127 = vmatpush1.msra.mxu0 0.0
      %3128 = vmatprep.subr.mxu0 0.0
      %3129 = vmatpush1.msra.mxu0 0.0
      %3130 = vmatprep.subr.mxu0 0.0
      %3131 = vmatpush1.msra.mxu0 0.0
      %3132 = vmatprep.subr.mxu0 0.0
      %3133 = vmatpush1.msra.mxu0 0.0
      %3134 = vmatprep.subr.mxu0 0.0
      %3135 = vmatpush1.msra.mxu0 0.0
      %3136 = vmatprep.subr.mxu0 0.0
      %3137 = vmatpush1.msra.mxu0 0.0
      %3138 = vmatprep.subr.mxu0 0.0
      %3139 = vmatpush1.msra.mxu0 0.0
      %3140 = vmatprep.subr.mxu0 0.0
      %3141 = vmatpush1.msra.mxu0 0.0
      %3142 = vmatprep.subr.mxu0 0.0
      %3143 = vmatpush1.msra.mxu0 0.0
      %3144 = vmatprep.subr.mxu0 0.0
      %3145 = vmatpush1.msra.mxu0 0.0
      %3146 = vmatprep.subr.mxu0 0.0
      %3147 = vmatpush1.msra.mxu0 0.0
      %3148 = vmatprep.subr.mxu0 0.0
      %3149 = vmatpush1.msra.mxu0 0.0
      %3150 = vmatprep.subr.mxu0 0.0
      %3151 = vmatpush1.msra.mxu0 0.0
      %3152 = vmatprep.subr.mxu0 0.0
      %3153 = vmatpush1.msra.mxu0 0.0
      %3154 = vmatprep.subr.mxu0 0.0
      %3155 = vmatpush1.msra.mxu0 0.0
      %3156 = vmatprep.subr.mxu0 0.0
      %3157 = vmatpush1.msra.mxu0 0.0
      %3158 = vmatprep.subr.mxu0 0.0
      %3159 = vmatpush1.msra.mxu0 0.0
      %3160 = vmatprep.subr.mxu0 0.0
      %3161 = vmatpush1.msra.mxu0 0.0
      %3162 = vmatprep.mubr.f32.mxu0 0.0
      %3163 = vmatmul.mubr.f32.gmra.mrb[0].mxu0 %v3070
      %v3164 = vpop.f32.mrb[0].mxu0
      %v3165 = vadd.f32 0.0, %v3164
      %v3166 = vpop.f32.mrb[0].mxu0
      %3167 = vmatprep.mubr.f32.mxu0 0.0
      %3168 = vmatmul.mubr.f32.gmra.mrb[0].mxu0 %v3072
      %v3169 = vpop.f32.mrb[0].mxu0
      %v3170 = vadd.f32 0.0, %v3169
      %v3171 = vpop.f32.mrb[0].mxu0
      %3172 = vmatprep.mubr.f32.mxu0 0.0
      %3173 = vmatmul.mubr.f32.gmra.mrb[0].mxu0 %v3074
      %v3174 = vpop.f32.mrb[0].mxu0
      %v3175 = vadd.f32 0.0, %v3174
      %v3176 = vpop.f32.mrb[0].mxu0
      %3177 = vmatprep.mubr.f32.mxu0 0.0
      %3178 = vmatmul.mubr.f32.gmra.mrb[0].mxu0 %v3076
      %v3179 = vpop.f32.mrb[0].mxu0
      %v3180 = vadd.f32 0.0, %v3179
      %v3181 = vpop.f32.mrb[0].mxu0
      %3182 = vmatprep.mubr.f32.mxu0 0.0
      %3183 = vmatmul.mubr.f32.gmra.mrb[0].mxu0 %v3078
      %v3184 = vpop.f32.mrb[0].mxu0
      %v3185 = vadd.f32 0.0, %v3184
      %v3186 = vpop.f32.mrb[0].mxu0
      %3187 = vmatprep.mubr.f32.mxu0 0.0
      %3188 = vmatmul.mubr.f32.gmra.mrb[0].mxu0 %v3080
      %v3189 = vpop.f32.mrb[0].mxu0
      %v3190 = vadd.f32 0.0, %v3189
      %v3191 = vpop.f32.mrb[0].mxu0
      %3192 = vmatprep.mubr.f32.mxu0 0.0
      %3193 = vmatmul.mubr.f32.gmra.mrb[0].mxu0 %v3082
      %v3194 = vpop.f32.mrb[0].mxu0
      %v3195 = vadd.f32 0.0, %v3194
      %v3196 = vpop.f32.mrb[0].mxu0
      %3197 = vmatprep.mubr.f32.mxu0 0.0
      %3198 = vmatmul.mubr.f32.gmra.mrb[0].mxu0 %v3084
      %v3199 = vpop.f32.mrb[0].mxu0
      %v3200 = vadd.f32 0.0, %v3199
      %v3201 = vpop.f32.mrb[0].mxu0
      %3202 = vmatprep.mubr.f32.mxu0 0.0
      %3203 = vmatmul.mubr.f32.gmra.mrb[0].mxu0 %v3086
      %v3204 = vpop.f32.mrb[0].mxu0
      %v3205 = vadd.f32 0.0, %v3204
      %v3206 = vpop.f32.mrb[0].mxu0
      %3207 = vmatprep.mubr.f32.mxu0 0.0
      %3208 = vmatmul.mubr.f32.gmra.mrb[0].mxu0 %v3088
      %v3209 = vpop.f32.mrb[0].mxu0
      %v3210 = vadd.f32 0.0, %v3209
      %v3211 = vpop.f32.mrb[0].mxu0
      %3212 = vmatprep.mubr.f32.mxu0 0.0
      %3213 = vmatmul.mubr.f32.gmra.mrb[0].mxu0 %v3090
      %v3214 = vpop.f32.mrb[0].mxu0
      %v3215 = vadd.f32 0.0, %v3214
      %v3216 = vpop.f32.mrb[0].mxu0
      %3217 = vmatprep.mubr.f32.mxu0 0.0
      %3218 = vmatmul.mubr.f32.gmra.mrb[0].mxu0 %v3092
      %v3219 = vpop.f32.mrb[0].mxu0
      %v3220 = vadd.f32 0.0, %v3219
      %v3221 = vpop.f32.mrb[0].mxu0
      %3222 = vmatprep.mubr.f32.mxu0 0.0
      %3223 = vmatmul.mubr.f32.gmra.mrb[0].mxu0 %v3094
      %v3224 = vpop.f32.mrb[0].mxu0
      %v3225 = vadd.f32 0.0, %v3224
      %v3226 = vpop.f32.mrb[0].mxu0
      %3227 = vmatprep.mubr.f32.mxu0 0.0
      %3228 = vmatmul.mubr.f32.gmra.mrb[0].mxu0 %v3096
      %v3229 = vpop.f32.mrb[0].mxu0
      %v3230 = vadd.f32 0.0, %v3229
      %v3231 = vpop.f32.mrb[0].mxu0
      %3232 = vdwg.mxu0
      %v3247 = vcombine.high %v3165, %v3165
      %v3249 = vunpack.c.l.s4 1983009808
      %v3250 = vunpack.c.0.s8 %v3249
      %v3251 = vlaneseq
      %v3252 = vshrl.u32 %v3251, 7
      %v3253 = vsub.s32 %v3250, %v3252
      %v3254 = vrot.slane %v3165, %v3253
      %v3256 = vunpack.c.l.s4 1983009808
      %v3257 = vunpack.c.0.s8 %v3256
      %v3258 = vlaneseq
      %v3259 = vshrl.u32 %v3258, 7
      %v3260 = vsub.s32 %v3257, %v3259
      %v3261 = vrot.slane %v3247, %v3260
      %v3262 = vcombine.high %v3254, %v3254
      %v3263 = vcombine.high %v3261, %v3261
      %v3264 = vcombine.high %v3170, %v3170
      %v3266 = vunpack.c.l.s4 1983009808
      %v3267 = vunpack.c.0.s8 %v3266
      %v3268 = vlaneseq
      %v3269 = vshrl.u32 %v3268, 7
      %v3270 = vsub.s32 %v3267, %v3269
      %v3271 = vrot.slane %v3170, %v3270
      %v3273 = vunpack.c.l.s4 1983009808
      %v3274 = vunpack.c.0.s8 %v3273
      %v3275 = vlaneseq
      %v3276 = vshrl.u32 %v3275, 7
      %v3277 = vsub.s32 %v3274, %v3276
      %v3278 = vrot.slane %v3264, %v3277
      %v3279 = vcombine.high %v3271, %v3271
      %v3280 = vcombine.high %v3278, %v3278
      %v3281 = vcombine.high %v3175, %v3175
      %v3283 = vunpack.c.l.s4 1983009808
      %v3284 = vunpack.c.0.s8 %v3283
      %v3285 = vlaneseq
      %v3286 = vshrl.u32 %v3285, 7
      %v3287 = vsub.s32 %v3284, %v3286
      %v3288 = vrot.slane %v3175, %v3287
      %v3290 = vunpack.c.l.s4 1983009808
      %v3291 = vunpack.c.0.s8 %v3290
      %v3292 = vlaneseq
      %v3293 = vshrl.u32 %v3292, 7
      %v3294 = vsub.s32 %v3291, %v3293
      %v3295 = vrot.slane %v3281, %v3294
      %v3296 = vcombine.high %v3288, %v3288
      %v3297 = vcombine.high %v3295, %v3295
      %v3298 = vcombine.high %v3180, %v3180
      %v3300 = vunpack.c.l.s4 1983009808
      %v3301 = vunpack.c.0.s8 %v3300
      %v3302 = vlaneseq
      %v3303 = vshrl.u32 %v3302, 7
      %v3304 = vsub.s32 %v3301, %v3303
      %v3305 = vrot.slane %v3180, %v3304
      %v3307 = vunpack.c.l.s4 1983009808
      %v3308 = vunpack.c.0.s8 %v3307
      %v3309 = vlaneseq
      %v3310 = vshrl.u32 %v3309, 7
      %v3311 = vsub.s32 %v3308, %v3310
      %v3312 = vrot.slane %v3298, %v3311
      %v3313 = vcombine.high %v3305, %v3305
      %v3314 = vcombine.high %v3312, %v3312
      %v3315 = vcombine.high %v3185, %v3185
      %v3317 = vunpack.c.l.s4 1983009808
      %v3318 = vunpack.c.0.s8 %v3317
      %v3319 = vlaneseq
      %v3320 = vshrl.u32 %v3319, 7
      %v3321 = vsub.s32 %v3318, %v3320
      %v3322 = vrot.slane %v3185, %v3321
      %v3324 = vunpack.c.l.s4 1983009808
      %v3325 = vunpack.c.0.s8 %v3324
      %v3326 = vlaneseq
      %v3327 = vshrl.u32 %v3326, 7
      %v3328 = vsub.s32 %v3325, %v3327
      %v3329 = vrot.slane %v3315, %v3328
      %v3330 = vcombine.high %v3322, %v3322
      %v3331 = vcombine.high %v3329, %v3329
      %v3332 = vcombine.high %v3190, %v3190
      %v3334 = vunpack.c.l.s4 1983009808
      %v3335 = vunpack.c.0.s8 %v3334
      %v3336 = vlaneseq
      %v3337 = vshrl.u32 %v3336, 7
      %v3338 = vsub.s32 %v3335, %v3337
      %v3339 = vrot.slane %v3190, %v3338
      %v3341 = vunpack.c.l.s4 1983009808
      %v3342 = vunpack.c.0.s8 %v3341
      %v3343 = vlaneseq
      %v3344 = vshrl.u32 %v3343, 7
      %v3345 = vsub.s32 %v3342, %v3344
      %v3346 = vrot.slane %v3332, %v3345
      %v3347 = vcombine.high %v3339, %v3339
      %v3348 = vcombine.high %v3346, %v3346
      %v3349 = vcombine.high %v3195, %v3195
      %v3351 = vunpack.c.l.s4 1983009808
      %v3352 = vunpack.c.0.s8 %v3351
      %v3353 = vlaneseq
      %v3354 = vshrl.u32 %v3353, 7
      %v3355 = vsub.s32 %v3352, %v3354
      %v3356 = vrot.slane %v3195, %v3355
      %v3358 = vunpack.c.l.s4 1983009808
      %v3359 = vunpack.c.0.s8 %v3358
      %v3360 = vlaneseq
      %v3361 = vshrl.u32 %v3360, 7
      %v3362 = vsub.s32 %v3359, %v3361
      %v3363 = vrot.slane %v3349, %v3362
      %v3364 = vcombine.high %v3356, %v3356
      %v3365 = vcombine.high %v3363, %v3363
      %v3366 = vcombine.high %v3200, %v3200
      %v3368 = vunpack.c.l.s4 1983009808
      %v3369 = vunpack.c.0.s8 %v3368
      %v3370 = vlaneseq
      %v3371 = vshrl.u32 %v3370, 7
      %v3372 = vsub.s32 %v3369, %v3371
      %v3373 = vrot.slane %v3200, %v3372
      %v3375 = vunpack.c.l.s4 1983009808
      %v3376 = vunpack.c.0.s8 %v3375
      %v3377 = vlaneseq
      %v3378 = vshrl.u32 %v3377, 7
      %v3379 = vsub.s32 %v3376, %v3378
      %v3380 = vrot.slane %v3366, %v3379
      %v3381 = vcombine.high %v3373, %v3373
      %v3382 = vcombine.high %v3380, %v3380
      %v3383 = vcombine.high %v3205, %v3205
      %v3385 = vunpack.c.l.s4 1983009808
      %v3386 = vunpack.c.0.s8 %v3385
      %v3387 = vlaneseq
      %v3388 = vshrl.u32 %v3387, 7
      %v3389 = vsub.s32 %v3386, %v3388
      %v3390 = vrot.slane %v3205, %v3389
      %v3392 = vunpack.c.l.s4 1983009808
      %v3393 = vunpack.c.0.s8 %v3392
      %v3394 = vlaneseq
      %v3395 = vshrl.u32 %v3394, 7
      %v3396 = vsub.s32 %v3393, %v3395
      %v3397 = vrot.slane %v3383, %v3396
      %v3398 = vcombine.high %v3390, %v3390
      %v3399 = vcombine.high %v3397, %v3397
      %v3400 = vcombine.high %v3210, %v3210
      %v3402 = vunpack.c.l.s4 1983009808
      %v3403 = vunpack.c.0.s8 %v3402
      %v3404 = vlaneseq
      %v3405 = vshrl.u32 %v3404, 7
      %v3406 = vsub.s32 %v3403, %v3405
      %v3407 = vrot.slane %v3210, %v3406
      %v3409 = vunpack.c.l.s4 1983009808
      %v3410 = vunpack.c.0.s8 %v3409
      %v3411 = vlaneseq
      %v3412 = vshrl.u32 %v3411, 7
      %v3413 = vsub.s32 %v3410, %v3412
      %v3414 = vrot.slane %v3400, %v3413
      %v3415 = vcombine.high %v3407, %v3407
      %v3416 = vcombine.high %v3414, %v3414
      %v3417 = vcombine.high %v3215, %v3215
      %v3419 = vunpack.c.l.s4 1983009808
      %v3420 = vunpack.c.0.s8 %v3419
      %v3421 = vlaneseq
      %v3422 = vshrl.u32 %v3421, 7
      %v3423 = vsub.s32 %v3420, %v3422
      %v3424 = vrot.slane %v3215, %v3423
      %v3426 = vunpack.c.l.s4 1983009808
      %v3427 = vunpack.c.0.s8 %v3426
      %v3428 = vlaneseq
      %v3429 = vshrl.u32 %v3428, 7
      %v3430 = vsub.s32 %v3427, %v3429
      %v3431 = vrot.slane %v3417, %v3430
      %v3432 = vcombine.high %v3424, %v3424
      %v3433 = vcombine.high %v3431, %v3431
      %v3434 = vcombine.high %v3220, %v3220
      %v3436 = vunpack.c.l.s4 1983009808
      %v3437 = vunpack.c.0.s8 %v3436
      %v3438 = vlaneseq
      %v3439 = vshrl.u32 %v3438, 7
      %v3440 = vsub.s32 %v3437, %v3439
      %v3441 = vrot.slane %v3220, %v3440
      %v3443 = vunpack.c.l.s4 1983009808
      %v3444 = vunpack.c.0.s8 %v3443
      %v3445 = vlaneseq
      %v3446 = vshrl.u32 %v3445, 7
      %v3447 = vsub.s32 %v3444, %v3446
      %v3448 = vrot.slane %v3434, %v3447
      %v3449 = vcombine.high %v3441, %v3441
      %v3450 = vcombine.high %v3448, %v3448
      %v3451 = vcombine.high %v3225, %v3225
      %v3453 = vunpack.c.l.s4 1983009808
      %v3454 = vunpack.c.0.s8 %v3453
      %v3455 = vlaneseq
      %v3456 = vshrl.u32 %v3455, 7
      %v3457 = vsub.s32 %v3454, %v3456
      %v3458 = vrot.slane %v3225, %v3457
      %v3460 = vunpack.c.l.s4 1983009808
      %v3461 = vunpack.c.0.s8 %v3460
      %v3462 = vlaneseq
      %v3463 = vshrl.u32 %v3462, 7
      %v3464 = vsub.s32 %v3461, %v3463
      %v3465 = vrot.slane %v3451, %v3464
      %v3466 = vcombine.high %v3458, %v3458
      %v3467 = vcombine.high %v3465, %v3465
      %v3468 = vcombine.high %v3230, %v3230
      %v3470 = vunpack.c.l.s4 1983009808
      %v3471 = vunpack.c.0.s8 %v3470
      %v3472 = vlaneseq
      %v3473 = vshrl.u32 %v3472, 7
      %v3474 = vsub.s32 %v3471, %v3473
      %v3475 = vrot.slane %v3230, %v3474
      %v3477 = vunpack.c.l.s4 1983009808
      %v3478 = vunpack.c.0.s8 %v3477
      %v3479 = vlaneseq
      %v3480 = vshrl.u32 %v3479, 7
      %v3481 = vsub.s32 %v3478, %v3480
      %v3482 = vrot.slane %v3468, %v3481
      %v3483 = vcombine.high %v3475, %v3475
      %v3484 = vcombine.high %v3482, %v3482
      %v3541 = vadd.f32 %v2683, %v3254
      %v3542 = vadd.f32 %v2684, %v3262
      %v3543 = vadd.f32 %v2685, %v3261
      %v3544 = vadd.f32 %v2686, %v3263
      %v3545 = vadd.f32 %v2687, %v3271
      %v3546 = vadd.f32 %v2688, %v3279
      %v3547 = vadd.f32 %v2689, %v3278
      %v3548 = vadd.f32 %v2690, %v3280
      %v3549 = vadd.f32 %v2691, %v3288
      %v3550 = vadd.f32 %v2692, %v3296
      %v3551 = vadd.f32 %v2693, %v3295
      %v3552 = vadd.f32 %v2694, %v3297
      %v3553 = vadd.f32 %v2695, %v3305
      %v3554 = vadd.f32 %v2696, %v3313
      %v3555 = vadd.f32 %v2697, %v3312
      %v3556 = vadd.f32 %v2698, %v3314
      %v3557 = vadd.f32 %v2699, %v3322
      %v3558 = vadd.f32 %v2700, %v3330
      %v3559 = vadd.f32 %v2701, %v3329
      %v3560 = vadd.f32 %v2702, %v3331
      %v3561 = vadd.f32 %v2703, %v3339
      %v3562 = vadd.f32 %v2704, %v3347
      %v3563 = vadd.f32 %v2705, %v3346
      %v3564 = vadd.f32 %v2706, %v3348
      %v3565 = vadd.f32 %v2707, %v3356
      %v3566 = vadd.f32 %v2708, %v3364
      %v3567 = vadd.f32 %v2709, %v3363
      %v3568 = vadd.f32 %v2710, %v3365
      %v3569 = vadd.f32 %v2711, %v3373
      %v3570 = vadd.f32 %v2712, %v3381
      %v3571 = vadd.f32 %v2713, %v3380
      %v3572 = vadd.f32 %v2714, %v3382
      %v3573 = vadd.f32 %v2715, %v3390
      %v3574 = vadd.f32 %v2716, %v3398
      %v3575 = vadd.f32 %v2717, %v3397
      %v3576 = vadd.f32 %v2718, %v3399
      %v3577 = vadd.f32 %v2719, %v3407
      %v3578 = vadd.f32 %v2720, %v3415
      %v3579 = vadd.f32 %v2721, %v3414
      %v3580 = vadd.f32 %v2722, %v3416
      %v3581 = vadd.f32 %v2723, %v3424
      %v3582 = vadd.f32 %v2724, %v3432
      %v3583 = vadd.f32 %v2725, %v3431
      %v3584 = vadd.f32 %v2726, %v3433
      %v3585 = vadd.f32 %v2727, %v3441
      %v3586 = vadd.f32 %v2728, %v3449
      %v3587 = vadd.f32 %v2729, %v3448
      %v3588 = vadd.f32 %v2730, %v3450
      %v3589 = vadd.f32 %v2731, %v3458
      %v3590 = vadd.f32 %v2732, %v3466
      %v3591 = vadd.f32 %v2733, %v3465
      %v3592 = vadd.f32 %v2734, %v3467
      %v3593 = vadd.f32 %v2735, %v3475
      %v3594 = vadd.f32 %v2736, %v3483
      %v3595 = vadd.f32 %v2737, %v3482
      %v3596 = vadd.f32 %v2738, %v3484
      %s3597 = scalar_lea.vmem %s2, 128
      %v3598 = vld [vmem:[%s3597] sm:$0xff]
      %v3599 = vld [vmem:[%s3597 + $0x8] sm:$0xff]
      %v3600 = vld [vmem:[%s3597 + $0x10] sm:$0xff]
      %v3601 = vld [vmem:[%s3597 + $0x18] sm:$0xff]
      %v3602 = vcombine.low %v1275, %v1285
      %v3603 = vcombine.low %v434, %v436
      %v3604 = vcombine.low %v2758, %v451
      %v3606 = vunpack.c.l.s4 1983009808
      %v3607 = vunpack.c.0.s8 %v3606
      %v3608 = vlaneseq
      %v3609 = vshrl.u32 %v3608, 7
      %v3610 = vsub.s32 %v3607, %v3609
      %v3611 = vrot.slane %v3603, %v3610
      %v3613 = vunpack.c.l.s4 1983009808
      %v3614 = vunpack.c.0.s8 %v3613
      %v3615 = vlaneseq
      %v3616 = vshrl.u32 %v3615, 7
      %v3617 = vsub.s32 %v3614, %v3616
      %v3618 = vrot.slane %v3604, %v3617
      %v3619 = vcombine.low %v3611, %v3618
      %v3620 = vcombine.low %v1309, %v1319
      %v3621 = vcombine.low %v470, %v2765
      %v3623 = vunpack.c.l.s4 1983009808
      %v3624 = vunpack.c.0.s8 %v3623
      %v3625 = vlaneseq
      %v3626 = vshrl.u32 %v3625, 7
      %v3627 = vsub.s32 %v3624, %v3626
      %v3628 = vrot.slane %v3621, %v3627
      %v3629 = vcombine.low %v3628, %v1336
      %v3630 = vcombine.low %v502, %v504
      %v3632 = vunpack.c.l.s4 1983009808
      %v3633 = vunpack.c.0.s8 %v3632
      %v3634 = vlaneseq
      %v3635 = vshrl.u32 %v3634, 7
      %v3636 = vsub.s32 %v3633, %v3635
      %v3637 = vrot.slane %v3630, %v3636
      %v3638 = vcombine.low %v1343, %v3637
      %v3639 = vcombine.low %v2772, %v519
      %v3641 = vunpack.c.l.s4 1983009808
      %v3642 = vunpack.c.0.s8 %v3641
      %v3643 = vlaneseq
      %v3644 = vshrl.u32 %v3643, 7
      %v3645 = vsub.s32 %v3642, %v3644
      %v3646 = vrot.slane %v3639, %v3645
      %v3647 = vcombine.low %v3646, %v1370
      %v3648 = vcombine.low %v538, %v2779
      %v3650 = vunpack.c.l.s4 1983009808
      %v3651 = vunpack.c.0.s8 %v3650
      %v3652 = vlaneseq
      %v3653 = vshrl.u32 %v3652, 7
      %v3654 = vsub.s32 %v3651, %v3653
      %v3655 = vrot.slane %v3648, %v3654
      %v3656 = vcombine.low %v1377, %v3655
      %v3657 = vcombine.low %v1394, %v1404
      %v3658 = vcombine.low %v570, %v572
      %v3659 = vcombine.low %v2786, %v587
      %v3661 = vunpack.c.l.s4 1983009808
      %v3662 = vunpack.c.0.s8 %v3661
      %v3663 = vlaneseq
      %v3664 = vshrl.u32 %v3663, 7
      %v3665 = vsub.s32 %v3662, %v3664
      %v3666 = vrot.slane %v3658, %v3665
      %v3668 = vunpack.c.l.s4 1983009808
      %v3669 = vunpack.c.0.s8 %v3668
      %v3670 = vlaneseq
      %v3671 = vshrl.u32 %v3670, 7
      %v3672 = vsub.s32 %v3669, %v3671
      %v3673 = vrot.slane %v3659, %v3672
      %v3674 = vcombine.low %v3666, %v3673
      %v3675 = vcombine.low %v1428, %v1438
      %v3676 = vcombine.low %v606, %v2793
      %v3678 = vunpack.c.l.s4 1983009808
      %v3679 = vunpack.c.0.s8 %v3678
      %v3680 = vlaneseq
      %v3681 = vshrl.u32 %v3680, 7
      %v3682 = vsub.s32 %v3679, %v3681
      %v3683 = vrot.slane %v3676, %v3682
      %v3684 = vcombine.low %v3683, %v1455
      %v3685 = vcombine.low %v638, %v640
      %v3687 = vunpack.c.l.s4 1983009808
      %v3688 = vunpack.c.0.s8 %v3687
      %v3689 = vlaneseq
      %v3690 = vshrl.u32 %v3689, 7
      %v3691 = vsub.s32 %v3688, %v3690
      %v3692 = vrot.slane %v3685, %v3691
      %v3693 = vcombine.low %v1462, %v3692
      %v3694 = vcombine.low %v2800, %v655
      %v3696 = vunpack.c.l.s4 1983009808
      %v3697 = vunpack.c.0.s8 %v3696
      %v3698 = vlaneseq
      %v3699 = vshrl.u32 %v3698, 7
      %v3700 = vsub.s32 %v3697, %v3699
      %v3701 = vrot.slane %v3694, %v3700
      %v3702 = vcombine.low %v3701, %v1489
      %v3703 = vcombine.low %v674, %v2807
      %v3705 = vunpack.c.l.s4 1983009808
      %v3706 = vunpack.c.0.s8 %v3705
      %v3707 = vlaneseq
      %v3708 = vshrl.u32 %v3707, 7
      %v3709 = vsub.s32 %v3706, %v3708
      %v3710 = vrot.slane %v3703, %v3709
      %v3711 = vcombine.low %v1496, %v3710
      %v3712 = vsel %vm1096, %v3602, 0
      %v3714 = vsel %vm1096, %v3619, 0
      %v3716 = vsel %vm1096, %v3620, 0
      %v3718 = vsel %vm1096, %v3629, 0
      %v3720 = vsel %vm1096, %v3638, 0
      %v3722 = vsel %vm1096, %v3647, 0
      %v3724 = vsel %vm1096, %v3656, 0
      %v3726 = vsel %vm1096, %v3657, 0
      %v3728 = vsel %vm1096, %v3674, 0
      %v3730 = vsel %vm1096, %v3675, 0
      %v3732 = vsel %vm1096, %v3684, 0
      %v3734 = vsel %vm1096, %v3693, 0
      %v3736 = vsel %vm1096, %v3702, 0
      %v3738 = vsel %vm1096, %v3711, 0
      %3740 = vmatprep.subr.mxu0 0.0
      %3741 = vmatpush1.msra.mxu0 %v3598
      %3742 = vmatprep.subr.mxu0 0.0
      %3743 = vmatpush1.msra.mxu0 %v3599
      %3744 = vmatprep.subr.mxu0 0.0
      %3745 = vmatpush1.msra.mxu0 %v3600
      %3746 = vmatprep.subr.mxu0 0.0
      %3747 = vmatpush1.msra.mxu0 %v3601
      %3748 = vmatprep.subr.mxu0 0.0
      %3749 = vmatpush1.msra.mxu0 0.0
      %3750 = vmatprep.subr.mxu0 0.0
      %3751 = vmatpush1.msra.mxu0 0.0
      %3752 = vmatprep.subr.mxu0 0.0
      %3753 = vmatpush1.msra.mxu0 0.0
      %3754 = vmatprep.subr.mxu0 0.0
      %3755 = vmatpush1.msra.mxu0 0.0
      %3756 = vmatprep.subr.mxu0 0.0
      %3757 = vmatpush1.msra.mxu0 0.0
      %3758 = vmatprep.subr.mxu0 0.0
      %3759 = vmatpush1.msra.mxu0 0.0
      %3760 = vmatprep.subr.mxu0 0.0
      %3761 = vmatpush1.msra.mxu0 0.0
      %3762 = vmatprep.subr.mxu0 0.0
      %3763 = vmatpush1.msra.mxu0 0.0
      %3764 = vmatprep.subr.mxu0 0.0
      %3765 = vmatpush1.msra.mxu0 0.0
      %3766 = vmatprep.subr.mxu0 0.0
      %3767 = vmatpush1.msra.mxu0 0.0
      %3768 = vmatprep.subr.mxu0 0.0
      %3769 = vmatpush1.msra.mxu0 0.0
      %3770 = vmatprep.subr.mxu0 0.0
      %3771 = vmatpush1.msra.mxu0 0.0
      %3772 = vmatprep.subr.mxu0 0.0
      %3773 = vmatpush1.msra.mxu0 0.0
      %3774 = vmatprep.subr.mxu0 0.0
      %3775 = vmatpush1.msra.mxu0 0.0
      %3776 = vmatprep.subr.mxu0 0.0
      %3777 = vmatpush1.msra.mxu0 0.0
      %3778 = vmatprep.subr.mxu0 0.0
      %3779 = vmatpush1.msra.mxu0 0.0
      %3780 = vmatprep.subr.mxu0 0.0
      %3781 = vmatpush1.msra.mxu0 0.0
      %3782 = vmatprep.subr.mxu0 0.0
      %3783 = vmatpush1.msra.mxu0 0.0
      %3784 = vmatprep.subr.mxu0 0.0
      %3785 = vmatpush1.msra.mxu0 0.0
      %3786 = vmatprep.subr.mxu0 0.0
      %3787 = vmatpush1.msra.mxu0 0.0
      %3788 = vmatprep.subr.mxu0 0.0
      %3789 = vmatpush1.msra.mxu0 0.0
      %3790 = vmatprep.subr.mxu0 0.0
      %3791 = vmatpush1.msra.mxu0 0.0
      %3792 = vmatprep.subr.mxu0 0.0
      %3793 = vmatpush1.msra.mxu0 0.0
      %3794 = vmatprep.subr.mxu0 0.0
      %3795 = vmatpush1.msra.mxu0 0.0
      %3796 = vmatprep.subr.mxu0 0.0
      %3797 = vmatpush1.msra.mxu0 0.0
      %3798 = vmatprep.subr.mxu0 0.0
      %3799 = vmatpush1.msra.mxu0 0.0
      %3800 = vmatprep.subr.mxu0 0.0
      %3801 = vmatpush1.msra.mxu0 0.0
      %3802 = vmatprep.subr.mxu0 0.0
      %3803 = vmatpush1.msra.mxu0 0.0
      %3804 = vmatprep.mubr.f32.mxu0 0.0
      %3805 = vmatmul.mubr.f32.gmra.mrb[0].mxu0 %v3712
      %v3806 = vpop.f32.mrb[0].mxu0
      %v3807 = vadd.f32 0.0, %v3806
      %v3808 = vpop.f32.mrb[0].mxu0
      %3809 = vmatprep.mubr.f32.mxu0 0.0
      %3810 = vmatmul.mubr.f32.gmra.mrb[0].mxu0 %v3714
      %v3811 = vpop.f32.mrb[0].mxu0
      %v3812 = vadd.f32 0.0, %v3811
      %v3813 = vpop.f32.mrb[0].mxu0
      %3814 = vmatprep.mubr.f32.mxu0 0.0
      %3815 = vmatmul.mubr.f32.gmra.mrb[0].mxu0 %v3716
      %v3816 = vpop.f32.mrb[0].mxu0
      %v3817 = vadd.f32 0.0, %v3816
      %v3818 = vpop.f32.mrb[0].mxu0
      %3819 = vmatprep.mubr.f32.mxu0 0.0
      %3820 = vmatmul.mubr.f32.gmra.mrb[0].mxu0 %v3718
      %v3821 = vpop.f32.mrb[0].mxu0
      %v3822 = vadd.f32 0.0, %v3821
      %v3823 = vpop.f32.mrb[0].mxu0
      %3824 = vmatprep.mubr.f32.mxu0 0.0
      %3825 = vmatmul.mubr.f32.gmra.mrb[0].mxu0 %v3720
      %v3826 = vpop.f32.mrb[0].mxu0
      %v3827 = vadd.f32 0.0, %v3826
      %v3828 = vpop.f32.mrb[0].mxu0
      %3829 = vmatprep.mubr.f32.mxu0 0.0
      %3830 = vmatmul.mubr.f32.gmra.mrb[0].mxu0 %v3722
      %v3831 = vpop.f32.mrb[0].mxu0
      %v3832 = vadd.f32 0.0, %v3831
      %v3833 = vpop.f32.mrb[0].mxu0
      %3834 = vmatprep.mubr.f32.mxu0 0.0
      %3835 = vmatmul.mubr.f32.gmra.mrb[0].mxu0 %v3724
      %v3836 = vpop.f32.mrb[0].mxu0
      %v3837 = vadd.f32 0.0, %v3836
      %v3838 = vpop.f32.mrb[0].mxu0
      %3839 = vmatprep.mubr.f32.mxu0 0.0
      %3840 = vmatmul.mubr.f32.gmra.mrb[0].mxu0 %v3726
      %v3841 = vpop.f32.mrb[0].mxu0
      %v3842 = vadd.f32 0.0, %v3841
      %v3843 = vpop.f32.mrb[0].mxu0
      %3844 = vmatprep.mubr.f32.mxu0 0.0
      %3845 = vmatmul.mubr.f32.gmra.mrb[0].mxu0 %v3728
      %v3846 = vpop.f32.mrb[0].mxu0
      %v3847 = vadd.f32 0.0, %v3846
      %v3848 = vpop.f32.mrb[0].mxu0
      %3849 = vmatprep.mubr.f32.mxu0 0.0
      %3850 = vmatmul.mubr.f32.gmra.mrb[0].mxu0 %v3730
      %v3851 = vpop.f32.mrb[0].mxu0
      %v3852 = vadd.f32 0.0, %v3851
      %v3853 = vpop.f32.mrb[0].mxu0
      %3854 = vmatprep.mubr.f32.mxu0 0.0
      %3855 = vmatmul.mubr.f32.gmra.mrb[0].mxu0 %v3732
      %v3856 = vpop.f32.mrb[0].mxu0
      %v3857 = vadd.f32 0.0, %v3856
      %v3858 = vpop.f32.mrb[0].mxu0
      %3859 = vmatprep.mubr.f32.mxu0 0.0
      %3860 = vmatmul.mubr.f32.gmra.mrb[0].mxu0 %v3734
      %v3861 = vpop.f32.mrb[0].mxu0
      %v3862 = vadd.f32 0.0, %v3861
      %v3863 = vpop.f32.mrb[0].mxu0
      %3864 = vmatprep.mubr.f32.mxu0 0.0
      %3865 = vmatmul.mubr.f32.gmra.mrb[0].mxu0 %v3736
      %v3866 = vpop.f32.mrb[0].mxu0
      %v3867 = vadd.f32 0.0, %v3866
      %v3868 = vpop.f32.mrb[0].mxu0
      %3869 = vmatprep.mubr.f32.mxu0 0.0
      %3870 = vmatmul.mubr.f32.gmra.mrb[0].mxu0 %v3738
      %v3871 = vpop.f32.mrb[0].mxu0
      %v3872 = vadd.f32 0.0, %v3871
      %v3873 = vpop.f32.mrb[0].mxu0
      %3874 = vdwg.mxu0
      %v3889 = vcombine.high %v3807, %v3807
      %v3891 = vunpack.c.l.s4 1983009808
      %v3892 = vunpack.c.0.s8 %v3891
      %v3893 = vlaneseq
      %v3894 = vshrl.u32 %v3893, 7
      %v3895 = vsub.s32 %v3892, %v3894
      %v3896 = vrot.slane %v3807, %v3895
      %v3898 = vunpack.c.l.s4 1983009808
      %v3899 = vunpack.c.0.s8 %v3898
      %v3900 = vlaneseq
      %v3901 = vshrl.u32 %v3900, 7
      %v3902 = vsub.s32 %v3899, %v3901
      %v3903 = vrot.slane %v3889, %v3902
      %v3904 = vcombine.high %v3896, %v3896
      %v3905 = vcombine.high %v3903, %v3903
      %v3906 = vcombine.high %v3812, %v3812
      %v3908 = vunpack.c.l.s4 1983009808
      %v3909 = vunpack.c.0.s8 %v3908
      %v3910 = vlaneseq
      %v3911 = vshrl.u32 %v3910, 7
      %v3912 = vsub.s32 %v3909, %v3911
      %v3913 = vrot.slane %v3812, %v3912
      %v3915 = vunpack.c.l.s4 1983009808
      %v3916 = vunpack.c.0.s8 %v3915
      %v3917 = vlaneseq
      %v3918 = vshrl.u32 %v3917, 7
      %v3919 = vsub.s32 %v3916, %v3918
      %v3920 = vrot.slane %v3906, %v3919
      %v3921 = vcombine.high %v3913, %v3913
      %v3922 = vcombine.high %v3920, %v3920
      %v3923 = vcombine.high %v3817, %v3817
      %v3925 = vunpack.c.l.s4 1983009808
      %v3926 = vunpack.c.0.s8 %v3925
      %v3927 = vlaneseq
      %v3928 = vshrl.u32 %v3927, 7
      %v3929 = vsub.s32 %v3926, %v3928
      %v3930 = vrot.slane %v3817, %v3929
      %v3932 = vunpack.c.l.s4 1983009808
      %v3933 = vunpack.c.0.s8 %v3932
      %v3934 = vlaneseq
      %v3935 = vshrl.u32 %v3934, 7
      %v3936 = vsub.s32 %v3933, %v3935
      %v3937 = vrot.slane %v3923, %v3936
      %v3938 = vcombine.high %v3930, %v3930
      %v3939 = vcombine.high %v3937, %v3937
      %v3940 = vcombine.high %v3822, %v3822
      %v3942 = vunpack.c.l.s4 1983009808
      %v3943 = vunpack.c.0.s8 %v3942
      %v3944 = vlaneseq
      %v3945 = vshrl.u32 %v3944, 7
      %v3946 = vsub.s32 %v3943, %v3945
      %v3947 = vrot.slane %v3822, %v3946
      %v3949 = vunpack.c.l.s4 1983009808
      %v3950 = vunpack.c.0.s8 %v3949
      %v3951 = vlaneseq
      %v3952 = vshrl.u32 %v3951, 7
      %v3953 = vsub.s32 %v3950, %v3952
      %v3954 = vrot.slane %v3940, %v3953
      %v3955 = vcombine.high %v3947, %v3947
      %v3956 = vcombine.high %v3954, %v3954
      %v3957 = vcombine.high %v3827, %v3827
      %v3959 = vunpack.c.l.s4 1983009808
      %v3960 = vunpack.c.0.s8 %v3959
      %v3961 = vlaneseq
      %v3962 = vshrl.u32 %v3961, 7
      %v3963 = vsub.s32 %v3960, %v3962
      %v3964 = vrot.slane %v3827, %v3963
      %v3966 = vunpack.c.l.s4 1983009808
      %v3967 = vunpack.c.0.s8 %v3966
      %v3968 = vlaneseq
      %v3969 = vshrl.u32 %v3968, 7
      %v3970 = vsub.s32 %v3967, %v3969
      %v3971 = vrot.slane %v3957, %v3970
      %v3972 = vcombine.high %v3964, %v3964
      %v3973 = vcombine.high %v3971, %v3971
      %v3974 = vcombine.high %v3832, %v3832
      %v3976 = vunpack.c.l.s4 1983009808
      %v3977 = vunpack.c.0.s8 %v3976
      %v3978 = vlaneseq
      %v3979 = vshrl.u32 %v3978, 7
      %v3980 = vsub.s32 %v3977, %v3979
      %v3981 = vrot.slane %v3832, %v3980
      %v3983 = vunpack.c.l.s4 1983009808
      %v3984 = vunpack.c.0.s8 %v3983
      %v3985 = vlaneseq
      %v3986 = vshrl.u32 %v3985, 7
      %v3987 = vsub.s32 %v3984, %v3986
      %v3988 = vrot.slane %v3974, %v3987
      %v3989 = vcombine.high %v3981, %v3981
      %v3990 = vcombine.high %v3988, %v3988
      %v3991 = vcombine.high %v3837, %v3837
      %v3993 = vunpack.c.l.s4 1983009808
      %v3994 = vunpack.c.0.s8 %v3993
      %v3995 = vlaneseq
      %v3996 = vshrl.u32 %v3995, 7
      %v3997 = vsub.s32 %v3994, %v3996
      %v3998 = vrot.slane %v3837, %v3997
      %v4000 = vunpack.c.l.s4 1983009808
      %v4001 = vunpack.c.0.s8 %v4000
      %v4002 = vlaneseq
      %v4003 = vshrl.u32 %v4002, 7
      %v4004 = vsub.s32 %v4001, %v4003
      %v4005 = vrot.slane %v3991, %v4004
      %v4006 = vcombine.high %v3998, %v3998
      %v4007 = vcombine.high %v4005, %v4005
      %v4008 = vcombine.high %v3842, %v3842
      %v4010 = vunpack.c.l.s4 1983009808
      %v4011 = vunpack.c.0.s8 %v4010
      %v4012 = vlaneseq
      %v4013 = vshrl.u32 %v4012, 7
      %v4014 = vsub.s32 %v4011, %v4013
      %v4015 = vrot.slane %v3842, %v4014
      %v4017 = vunpack.c.l.s4 1983009808
      %v4018 = vunpack.c.0.s8 %v4017
      %v4019 = vlaneseq
      %v4020 = vshrl.u32 %v4019, 7
      %v4021 = vsub.s32 %v4018, %v4020
      %v4022 = vrot.slane %v4008, %v4021
      %v4023 = vcombine.high %v4015, %v4015
      %v4024 = vcombine.high %v4022, %v4022
      %v4025 = vcombine.high %v3847, %v3847
      %v4027 = vunpack.c.l.s4 1983009808
      %v4028 = vunpack.c.0.s8 %v4027
      %v4029 = vlaneseq
      %v4030 = vshrl.u32 %v4029, 7
      %v4031 = vsub.s32 %v4028, %v4030
      %v4032 = vrot.slane %v3847, %v4031
      %v4034 = vunpack.c.l.s4 1983009808
      %v4035 = vunpack.c.0.s8 %v4034
      %v4036 = vlaneseq
      %v4037 = vshrl.u32 %v4036, 7
      %v4038 = vsub.s32 %v4035, %v4037
      %v4039 = vrot.slane %v4025, %v4038
      %v4040 = vcombine.high %v4032, %v4032
      %v4041 = vcombine.high %v4039, %v4039
      %v4042 = vcombine.high %v3852, %v3852
      %v4044 = vunpack.c.l.s4 1983009808
      %v4045 = vunpack.c.0.s8 %v4044
      %v4046 = vlaneseq
      %v4047 = vshrl.u32 %v4046, 7
      %v4048 = vsub.s32 %v4045, %v4047
      %v4049 = vrot.slane %v3852, %v4048
      %v4051 = vunpack.c.l.s4 1983009808
      %v4052 = vunpack.c.0.s8 %v4051
      %v4053 = vlaneseq
      %v4054 = vshrl.u32 %v4053, 7
      %v4055 = vsub.s32 %v4052, %v4054
      %v4056 = vrot.slane %v4042, %v4055
      %v4057 = vcombine.high %v4049, %v4049
      %v4058 = vcombine.high %v4056, %v4056
      %v4059 = vcombine.high %v3857, %v3857
      %v4061 = vunpack.c.l.s4 1983009808
      %v4062 = vunpack.c.0.s8 %v4061
      %v4063 = vlaneseq
      %v4064 = vshrl.u32 %v4063, 7
      %v4065 = vsub.s32 %v4062, %v4064
      %v4066 = vrot.slane %v3857, %v4065
      %v4068 = vunpack.c.l.s4 1983009808
      %v4069 = vunpack.c.0.s8 %v4068
      %v4070 = vlaneseq
      %v4071 = vshrl.u32 %v4070, 7
      %v4072 = vsub.s32 %v4069, %v4071
      %v4073 = vrot.slane %v4059, %v4072
      %v4074 = vcombine.high %v4066, %v4066
      %v4075 = vcombine.high %v4073, %v4073
      %v4076 = vcombine.high %v3862, %v3862
      %v4078 = vunpack.c.l.s4 1983009808
      %v4079 = vunpack.c.0.s8 %v4078
      %v4080 = vlaneseq
      %v4081 = vshrl.u32 %v4080, 7
      %v4082 = vsub.s32 %v4079, %v4081
      %v4083 = vrot.slane %v3862, %v4082
      %v4085 = vunpack.c.l.s4 1983009808
      %v4086 = vunpack.c.0.s8 %v4085
      %v4087 = vlaneseq
      %v4088 = vshrl.u32 %v4087, 7
      %v4089 = vsub.s32 %v4086, %v4088
      %v4090 = vrot.slane %v4076, %v4089
      %v4091 = vcombine.high %v4083, %v4083
      %v4092 = vcombine.high %v4090, %v4090
      %v4093 = vcombine.high %v3867, %v3867
      %v4095 = vunpack.c.l.s4 1983009808
      %v4096 = vunpack.c.0.s8 %v4095
      %v4097 = vlaneseq
      %v4098 = vshrl.u32 %v4097, 7
      %v4099 = vsub.s32 %v4096, %v4098
      %v4100 = vrot.slane %v3867, %v4099
      %v4102 = vunpack.c.l.s4 1983009808
      %v4103 = vunpack.c.0.s8 %v4102
      %v4104 = vlaneseq
      %v4105 = vshrl.u32 %v4104, 7
      %v4106 = vsub.s32 %v4103, %v4105
      %v4107 = vrot.slane %v4093, %v4106
      %v4108 = vcombine.high %v4100, %v4100
      %v4109 = vcombine.high %v4107, %v4107
      %v4110 = vcombine.high %v3872, %v3872
      %v4112 = vunpack.c.l.s4 1983009808
      %v4113 = vunpack.c.0.s8 %v4112
      %v4114 = vlaneseq
      %v4115 = vshrl.u32 %v4114, 7
      %v4116 = vsub.s32 %v4113, %v4115
      %v4117 = vrot.slane %v3872, %v4116
      %v4119 = vunpack.c.l.s4 1983009808
      %v4120 = vunpack.c.0.s8 %v4119
      %v4121 = vlaneseq
      %v4122 = vshrl.u32 %v4121, 7
      %v4123 = vsub.s32 %v4120, %v4122
      %v4124 = vrot.slane %v4110, %v4123
      %v4125 = vcombine.high %v4117, %v4117
      %v4126 = vcombine.high %v4124, %v4124
      %v4183 = vadd.f32 %v3541, %v3896
      %v4184 = vadd.f32 %v3542, %v3904
      %v4185 = vadd.f32 %v3543, %v3903
      %v4186 = vadd.f32 %v3544, %v3905
      %v4187 = vadd.f32 %v3545, %v3913
      %v4188 = vadd.f32 %v3546, %v3921
      %v4189 = vadd.f32 %v3547, %v3920
      %v4190 = vadd.f32 %v3548, %v3922
      %v4191 = vadd.f32 %v3549, %v3930
      %v4192 = vadd.f32 %v3550, %v3938
      %v4193 = vadd.f32 %v3551, %v3937
      %v4194 = vadd.f32 %v3552, %v3939
      %v4195 = vadd.f32 %v3553, %v3947
      %v4196 = vadd.f32 %v3554, %v3955
      %v4197 = vadd.f32 %v3555, %v3954
      %v4198 = vadd.f32 %v3556, %v3956
      %v4199 = vadd.f32 %v3557, %v3964
      %v4200 = vadd.f32 %v3558, %v3972
      %v4201 = vadd.f32 %v3559, %v3971
      %v4202 = vadd.f32 %v3560, %v3973
      %v4203 = vadd.f32 %v3561, %v3981
      %v4204 = vadd.f32 %v3562, %v3989
      %v4205 = vadd.f32 %v3563, %v3988
      %v4206 = vadd.f32 %v3564, %v3990
      %v4207 = vadd.f32 %v3565, %v3998
      %v4208 = vadd.f32 %v3566, %v4006
      %v4209 = vadd.f32 %v3567, %v4005
      %v4210 = vadd.f32 %v3568, %v4007
      %v4211 = vadd.f32 %v3569, %v4015
      %v4212 = vadd.f32 %v3570, %v4023
      %v4213 = vadd.f32 %v3571, %v4022
      %v4214 = vadd.f32 %v3572, %v4024
      %v4215 = vadd.f32 %v3573, %v4032
      %v4216 = vadd.f32 %v3574, %v4040
      %v4217 = vadd.f32 %v3575, %v4039
      %v4218 = vadd.f32 %v3576, %v4041
      %v4219 = vadd.f32 %v3577, %v4049
      %v4220 = vadd.f32 %v3578, %v4057
      %v4221 = vadd.f32 %v3579, %v4056
      %v4222 = vadd.f32 %v3580, %v4058
      %v4223 = vadd.f32 %v3581, %v4066
      %v4224 = vadd.f32 %v3582, %v4074
      %v4225 = vadd.f32 %v3583, %v4073
      %v4226 = vadd.f32 %v3584, %v4075
      %v4227 = vadd.f32 %v3585, %v4083
      %v4228 = vadd.f32 %v3586, %v4091
      %v4229 = vadd.f32 %v3587, %v4090
      %v4230 = vadd.f32 %v3588, %v4092
      %v4231 = vadd.f32 %v3589, %v4100
      %v4232 = vadd.f32 %v3590, %v4108
      %v4233 = vadd.f32 %v3591, %v4107
      %v4234 = vadd.f32 %v3592, %v4109
      %v4235 = vadd.f32 %v3593, %v4117
      %v4236 = vadd.f32 %v3594, %v4125
      %v4237 = vadd.f32 %v3595, %v4124
      %v4238 = vadd.f32 %v3596, %v4126
      %v4239 = vlaneseq
      %v4240 = vshrl.u32 %v4239, 7
      %v4241 = vadd.s32 %v4240, 8
      %v4242 = vlaneseq
      %v4243 = vand.u32 %v4242, 127
      %vm4244 = vcmp.ge.s32.totalorder %v4243, 0
      %vm4245 = vcmp.lt.s32.totalorder %v4243, 8
      %vm4246 = vmand %vm4244, %vm4245
      %v4247 = vsel %vm4246, 14, 0
      %vm4248 = vcmp.ge.s32.totalorder %v4243, 8
      %vm4249 = vcmp.lt.s32.totalorder %v4243, 16
      %vm4250 = vmand %vm4248, %vm4249
      %v4251 = vsel %vm4250, 13, %v4247
      %vm4252 = vcmp.ge.s32.totalorder %v4243, 16
      %vm4253 = vcmp.lt.s32.totalorder %v4243, 24
      %vm4254 = vmand %vm4252, %vm4253
      %v4255 = vsel %vm4254, 12, %v4251
      %vm4256 = vcmp.lt.s32.totalorder %v4240, %v4255
      %vm4257 = vcmp.lt.s32.totalorder %v4241, %v4255
      %v4258 = vsel %vm4256, 1, 0
      %v4259 = vsel %vm4257, 1, 0
      %vm4260 = vcmp.eq.s32.totalorder %v4258, 1
      %vm4261 = vcmp.eq.s32.totalorder %v4259, 1
      %v4318 = vcombine.low %v4183, %v4184
      %v4319 = vcombine.low %v4185, %v4186
      %v4321 = vunpack.c.l.s4 1983009808
      %v4322 = vunpack.c.0.s8 %v4321
      %v4323 = vlaneseq
      %v4324 = vshrl.u32 %v4323, 7
      %v4325 = vsub.s32 %v4322, %v4324
      %v4326 = vrot.slane %v4318, %v4325
      %v4328 = vunpack.c.l.s4 1983009808
      %v4329 = vunpack.c.0.s8 %v4328
      %v4330 = vlaneseq
      %v4331 = vshrl.u32 %v4330, 7
      %v4332 = vsub.s32 %v4329, %v4331
      %v4333 = vrot.slane %v4319, %v4332
      %v4334 = vcombine.low %v4326, %v4333
      %v4335 = vcombine.low %v4187, %v4188
      %v4337 = vunpack.c.l.s4 1983009808
      %v4338 = vunpack.c.0.s8 %v4337
      %v4339 = vlaneseq
      %v4340 = vshrl.u32 %v4339, 7
      %v4341 = vsub.s32 %v4338, %v4340
      %v4342 = vrot.slane %v4335, %v4341
      %v4344 = vunpack.c.l.s4 1983009808
      %v4345 = vunpack.c.0.s8 %v4344
      %v4346 = vlaneseq
      %v4347 = vshrl.u32 %v4346, 7
      %v4348 = vsub.s32 %v4345, %v4347
      %v4349 = vrot.slane %v4189, %v4348
      %v4350 = vcombine.low %v4342, %v4349
      %v4351 = vcombine.low %v4190, %v4191
      %v4352 = vcombine.low %v4192, %v4193
      %v4354 = vunpack.c.l.s4 1983009808
      %v4355 = vunpack.c.0.s8 %v4354
      %v4356 = vlaneseq
      %v4357 = vshrl.u32 %v4356, 7
      %v4358 = vsub.s32 %v4355, %v4357
      %v4359 = vrot.slane %v4351, %v4358
      %v4361 = vunpack.c.l.s4 1983009808
      %v4362 = vunpack.c.0.s8 %v4361
      %v4363 = vlaneseq
      %v4364 = vshrl.u32 %v4363, 7
      %v4365 = vsub.s32 %v4362, %v4364
      %v4366 = vrot.slane %v4352, %v4365
      %v4367 = vcombine.low %v4359, %v4366
      %v4368 = vcombine.low %v4194, %v4195
      %v4370 = vunpack.c.l.s4 1983009808
      %v4371 = vunpack.c.0.s8 %v4370
      %v4372 = vlaneseq
      %v4373 = vshrl.u32 %v4372, 7
      %v4374 = vsub.s32 %v4371, %v4373
      %v4375 = vrot.slane %v4368, %v4374
      %v4377 = vunpack.c.l.s4 1983009808
      %v4378 = vunpack.c.0.s8 %v4377
      %v4379 = vlaneseq
      %v4380 = vshrl.u32 %v4379, 7
      %v4381 = vsub.s32 %v4378, %v4380
      %v4382 = vrot.slane %v4196, %v4381
      %v4383 = vcombine.low %v4375, %v4382
      %v4384 = vcombine.low %v4197, %v4198
      %v4385 = vcombine.low %v4199, %v4200
      %v4387 = vunpack.c.l.s4 1983009808
      %v4388 = vunpack.c.0.s8 %v4387
      %v4389 = vlaneseq
      %v4390 = vshrl.u32 %v4389, 7
      %v4391 = vsub.s32 %v4388, %v4390
      %v4392 = vrot.slane %v4384, %v4391
      %v4394 = vunpack.c.l.s4 1983009808
      %v4395 = vunpack.c.0.s8 %v4394
      %v4396 = vlaneseq
      %v4397 = vshrl.u32 %v4396, 7
      %v4398 = vsub.s32 %v4395, %v4397
      %v4399 = vrot.slane %v4385, %v4398
      %v4400 = vcombine.low %v4392, %v4399
      %v4401 = vcombine.low %v4201, %v4202
      %v4403 = vunpack.c.l.s4 1983009808
      %v4404 = vunpack.c.0.s8 %v4403
      %v4405 = vlaneseq
      %v4406 = vshrl.u32 %v4405, 7
      %v4407 = vsub.s32 %v4404, %v4406
      %v4408 = vrot.slane %v4401, %v4407
      %v4410 = vunpack.c.l.s4 1983009808
      %v4411 = vunpack.c.0.s8 %v4410
      %v4412 = vlaneseq
      %v4413 = vshrl.u32 %v4412, 7
      %v4414 = vsub.s32 %v4411, %v4413
      %v4415 = vrot.slane %v4203, %v4414
      %v4416 = vcombine.low %v4408, %v4415
      %v4417 = vcombine.low %v4204, %v4205
      %v4418 = vcombine.low %v4206, %v4207
      %v4420 = vunpack.c.l.s4 1983009808
      %v4421 = vunpack.c.0.s8 %v4420
      %v4422 = vlaneseq
      %v4423 = vshrl.u32 %v4422, 7
      %v4424 = vsub.s32 %v4421, %v4423
      %v4425 = vrot.slane %v4417, %v4424
      %v4427 = vunpack.c.l.s4 1983009808
      %v4428 = vunpack.c.0.s8 %v4427
      %v4429 = vlaneseq
      %v4430 = vshrl.u32 %v4429, 7
      %v4431 = vsub.s32 %v4428, %v4430
      %v4432 = vrot.slane %v4418, %v4431
      %v4433 = vcombine.low %v4425, %v4432
      %v4434 = vcombine.low %v4208, %v4209
      %v4436 = vunpack.c.l.s4 1983009808
      %v4437 = vunpack.c.0.s8 %v4436
      %v4438 = vlaneseq
      %v4439 = vshrl.u32 %v4438, 7
      %v4440 = vsub.s32 %v4437, %v4439
      %v4441 = vrot.slane %v4434, %v4440
      %v4443 = vunpack.c.l.s4 1983009808
      %v4444 = vunpack.c.0.s8 %v4443
      %v4445 = vlaneseq
      %v4446 = vshrl.u32 %v4445, 7
      %v4447 = vsub.s32 %v4444, %v4446
      %v4448 = vrot.slane %v4210, %v4447
      %v4449 = vcombine.low %v4441, %v4448
      %v4450 = vcombine.low %v4211, %v4212
      %v4451 = vcombine.low %v4213, %v4214
      %v4453 = vunpack.c.l.s4 1983009808
      %v4454 = vunpack.c.0.s8 %v4453
      %v4455 = vlaneseq
      %v4456 = vshrl.u32 %v4455, 7
      %v4457 = vsub.s32 %v4454, %v4456
      %v4458 = vrot.slane %v4450, %v4457
      %v4460 = vunpack.c.l.s4 1983009808
      %v4461 = vunpack.c.0.s8 %v4460
      %v4462 = vlaneseq
      %v4463 = vshrl.u32 %v4462, 7
      %v4464 = vsub.s32 %v4461, %v4463
      %v4465 = vrot.slane %v4451, %v4464
      %v4466 = vcombine.low %v4458, %v4465
      %v4467 = vcombine.low %v4215, %v4216
      %v4469 = vunpack.c.l.s4 1983009808
      %v4470 = vunpack.c.0.s8 %v4469
      %v4471 = vlaneseq
      %v4472 = vshrl.u32 %v4471, 7
      %v4473 = vsub.s32 %v4470, %v4472
      %v4474 = vrot.slane %v4467, %v4473
      %v4476 = vunpack.c.l.s4 1983009808
      %v4477 = vunpack.c.0.s8 %v4476
      %v4478 = vlaneseq
      %v4479 = vshrl.u32 %v4478, 7
      %v4480 = vsub.s32 %v4477, %v4479
      %v4481 = vrot.slane %v4217, %v4480
      %v4482 = vcombine.low %v4474, %v4481
      %v4483 = vcombine.low %v4218, %v4219
      %v4484 = vcombine.low %v4220, %v4221
      %v4486 = vunpack.c.l.s4 1983009808
      %v4487 = vunpack.c.0.s8 %v4486
      %v4488 = vlaneseq
      %v4489 = vshrl.u32 %v4488, 7
      %v4490 = vsub.s32 %v4487, %v4489
      %v4491 = vrot.slane %v4483, %v4490
      %v4493 = vunpack.c.l.s4 1983009808
      %v4494 = vunpack.c.0.s8 %v4493
      %v4495 = vlaneseq
      %v4496 = vshrl.u32 %v4495, 7
      %v4497 = vsub.s32 %v4494, %v4496
      %v4498 = vrot.slane %v4484, %v4497
      %v4499 = vcombine.low %v4491, %v4498
      %v4500 = vcombine.low %v4222, %v4223
      %v4502 = vunpack.c.l.s4 1983009808
      %v4503 = vunpack.c.0.s8 %v4502
      %v4504 = vlaneseq
      %v4505 = vshrl.u32 %v4504, 7
      %v4506 = vsub.s32 %v4503, %v4505
      %v4507 = vrot.slane %v4500, %v4506
      %v4509 = vunpack.c.l.s4 1983009808
      %v4510 = vunpack.c.0.s8 %v4509
      %v4511 = vlaneseq
      %v4512 = vshrl.u32 %v4511, 7
      %v4513 = vsub.s32 %v4510, %v4512
      %v4514 = vrot.slane %v4224, %v4513
      %v4515 = vcombine.low %v4507, %v4514
      %v4516 = vcombine.low %v4225, %v4226
      %v4517 = vcombine.low %v4227, %v4228
      %v4519 = vunpack.c.l.s4 1983009808
      %v4520 = vunpack.c.0.s8 %v4519
      %v4521 = vlaneseq
      %v4522 = vshrl.u32 %v4521, 7
      %v4523 = vsub.s32 %v4520, %v4522
      %v4524 = vrot.slane %v4516, %v4523
      %v4526 = vunpack.c.l.s4 1983009808
      %v4527 = vunpack.c.0.s8 %v4526
      %v4528 = vlaneseq
      %v4529 = vshrl.u32 %v4528, 7
      %v4530 = vsub.s32 %v4527, %v4529
      %v4531 = vrot.slane %v4517, %v4530
      %v4532 = vcombine.low %v4524, %v4531
      %v4533 = vcombine.low %v4229, %v4230
      %v4535 = vunpack.c.l.s4 1983009808
      %v4536 = vunpack.c.0.s8 %v4535
      %v4537 = vlaneseq
      %v4538 = vshrl.u32 %v4537, 7
      %v4539 = vsub.s32 %v4536, %v4538
      %v4540 = vrot.slane %v4533, %v4539
      %v4542 = vunpack.c.l.s4 1983009808
      %v4543 = vunpack.c.0.s8 %v4542
      %v4544 = vlaneseq
      %v4545 = vshrl.u32 %v4544, 7
      %v4546 = vsub.s32 %v4543, %v4545
      %v4547 = vrot.slane %v4231, %v4546
      %v4548 = vcombine.low %v4540, %v4547
      %v4549 = vcombine.low %v4232, %v4233
      %v4550 = vcombine.low %v4234, %v4235
      %v4552 = vunpack.c.l.s4 1983009808
      %v4553 = vunpack.c.0.s8 %v4552
      %v4554 = vlaneseq
      %v4555 = vshrl.u32 %v4554, 7
      %v4556 = vsub.s32 %v4553, %v4555
      %v4557 = vrot.slane %v4549, %v4556
      %v4559 = vunpack.c.l.s4 1983009808
      %v4560 = vunpack.c.0.s8 %v4559
      %v4561 = vlaneseq
      %v4562 = vshrl.u32 %v4561, 7
      %v4563 = vsub.s32 %v4560, %v4562
      %v4564 = vrot.slane %v4550, %v4563
      %v4565 = vcombine.low %v4557, %v4564
      %v4566 = vcombine.low %v4236, %v4237
      %v4568 = vunpack.c.l.s4 1983009808
      %v4569 = vunpack.c.0.s8 %v4568
      %v4570 = vlaneseq
      %v4571 = vshrl.u32 %v4570, 7
      %v4572 = vsub.s32 %v4569, %v4571
      %v4573 = vrot.slane %v4566, %v4572
      %v4575 = vunpack.c.l.s4 1983009808
      %v4576 = vunpack.c.0.s8 %v4575
      %v4577 = vlaneseq
      %v4578 = vshrl.u32 %v4577, 7
      %v4579 = vsub.s32 %v4576, %v4578
      %v4580 = vrot.slane %v4238, %v4579
      %v4581 = vcombine.low %v4573, %v4580
      %v4598 = vsel %vm4260, %v4334, -1e+30
      %v4599 = vsel %vm4261, %v4350, -1e+30
      %v4600 = vsel %vm4260, %v4367, -1e+30
      %v4601 = vsel %vm4261, %v4383, -1e+30
      %v4602 = vsel %vm4260, %v4400, -1e+30
      %v4603 = vsel %vm4261, %v4416, -1e+30
      %v4604 = vsel %vm4260, %v4433, -1e+30
      %v4605 = vsel %vm4261, %v4449, -1e+30
      %v4606 = vsel %vm4260, %v4466, -1e+30
      %v4607 = vsel %vm4261, %v4482, -1e+30
      %v4608 = vsel %vm4260, %v4499, -1e+30
      %v4609 = vsel %vm4261, %v4515, -1e+30
      %v4610 = vsel %vm4260, %v4532, -1e+30
      %v4611 = vsel %vm4261, %v4548, -1e+30
      %v4612 = vsel %vm4260, %v4565, -1e+30
      %v4613 = vsel %vm4261, %v4581, -1e+30
      %vm4614 = vcmask 195584
      %v4615 = vsel %vm4614, %v4598, -inf
      %vm4616 = vcmask 193536
      %v4617 = vsel %vm4616, %v4599, -inf
      %v4618 = vmax.f32 %v4615, %v4617
      %v4619 = vrot.slane %v4618, 4
      %v4620 = vmax.f32 %v4618, %v4619
      %v4621 = vrot.slane %v4620, 2
      %v4622 = vmax.f32 %v4620, %v4621
      %v4623 = vrot.slane %v4622, 1
      %v4624 = vmax.f32 %v4622, %v4623
      %v4625 = vsel %vm4614, %v4600, -inf
      %v4626 = vsel %vm4616, %v4601, -inf
      %v4627 = vmax.f32 %v4625, %v4626
      %v4628 = vrot.slane %v4627, 4
      %v4629 = vmax.f32 %v4627, %v4628
      %v4630 = vrot.slane %v4629, 2
      %v4631 = vmax.f32 %v4629, %v4630
      %v4632 = vrot.slane %v4631, 1
      %v4633 = vmax.f32 %v4631, %v4632
      %v4634 = vsel %vm4614, %v4602, -inf
      %v4635 = vsel %vm4616, %v4603, -inf
      %v4636 = vmax.f32 %v4634, %v4635
      %v4637 = vrot.slane %v4636, 4
      %v4638 = vmax.f32 %v4636, %v4637
      %v4639 = vrot.slane %v4638, 2
      %v4640 = vmax.f32 %v4638, %v4639
      %v4641 = vrot.slane %v4640, 1
      %v4642 = vmax.f32 %v4640, %v4641
      %v4643 = vsel %vm4614, %v4604, -inf
      %v4644 = vsel %vm4616, %v4605, -inf
      %v4645 = vmax.f32 %v4643, %v4644
      %v4646 = vrot.slane %v4645, 4
      %v4647 = vmax.f32 %v4645, %v4646
      %v4648 = vrot.slane %v4647, 2
      %v4649 = vmax.f32 %v4647, %v4648
      %v4650 = vrot.slane %v4649, 1
      %v4651 = vmax.f32 %v4649, %v4650
      %v4652 = vsel %vm4614, %v4606, -inf
      %v4653 = vsel %vm4616, %v4607, -inf
      %v4654 = vmax.f32 %v4652, %v4653
      %v4655 = vrot.slane %v4654, 4
      %v4656 = vmax.f32 %v4654, %v4655
      %v4657 = vrot.slane %v4656, 2
      %v4658 = vmax.f32 %v4656, %v4657
      %v4659 = vrot.slane %v4658, 1
      %v4660 = vmax.f32 %v4658, %v4659
      %v4661 = vsel %vm4614, %v4608, -inf
      %v4662 = vsel %vm4616, %v4609, -inf
      %v4663 = vmax.f32 %v4661, %v4662
      %v4664 = vrot.slane %v4663, 4
      %v4665 = vmax.f32 %v4663, %v4664
      %v4666 = vrot.slane %v4665, 2
      %v4667 = vmax.f32 %v4665, %v4666
      %v4668 = vrot.slane %v4667, 1
      %v4669 = vmax.f32 %v4667, %v4668
      %v4670 = vsel %vm4614, %v4610, -inf
      %v4671 = vsel %vm4616, %v4611, -inf
      %v4672 = vmax.f32 %v4670, %v4671
      %v4673 = vrot.slane %v4672, 4
      %v4674 = vmax.f32 %v4672, %v4673
      %v4675 = vrot.slane %v4674, 2
      %v4676 = vmax.f32 %v4674, %v4675
      %v4677 = vrot.slane %v4676, 1
      %v4678 = vmax.f32 %v4676, %v4677
      %v4679 = vsel %vm4614, %v4612, -inf
      %v4680 = vsel %vm4616, %v4613, -inf
      %v4681 = vmax.f32 %v4679, %v4680
      %v4682 = vrot.slane %v4681, 4
      %v4683 = vmax.f32 %v4681, %v4682
      %v4684 = vrot.slane %v4683, 2
      %v4685 = vmax.f32 %v4683, %v4684
      %v4686 = vrot.slane %v4685, 1
      %v4687 = vmax.f32 %v4685, %v4686
      %v4688 = vld [vmem:[%s3] sm:$0x1]
      %v4690 = vlaneseq
      %v4691 = vshrl.u32 %v4690, 7
      %v4692 = vsub.s32 0, %v4691
      %v4693 = vrot.slane %v4688, %v4692
      %v4695 = vadd.f32 %v4624, %v4693
      %v4696 = vadd.f32 %v4633, %v4693
      %v4697 = vadd.f32 %v4642, %v4693
      %v4698 = vadd.f32 %v4651, %v4693
      %v4699 = vadd.f32 %v4660, %v4693
      %v4700 = vadd.f32 %v4669, %v4693
      %v4701 = vadd.f32 %v4678, %v4693
      %v4702 = vadd.f32 %v4687, %v4693
      %v4703 = vmax.f32 %v4695, 0.0
      %v4704 = vmax.f32 %v4696, 0.0
      %v4705 = vmax.f32 %v4697, 0.0
      %v4706 = vmax.f32 %v4698, 0.0
      %v4707 = vmax.f32 %v4699, 0.0
      %v4708 = vmax.f32 %v4700, 0.0
      %v4709 = vmax.f32 %v4701, 0.0
      %v4710 = vmax.f32 %v4702, 0.0
      %v4711 = vld [vmem:[%s4] sm:$0xff]
      %v4712 = vld [vmem:[%s4 + $0x8] sm:$0xff]
      %v4713 = vld [vmem:[%s4 + $0x10] sm:$0xff]
      %v4714 = vld [vmem:[%s5] sm:$0x1]
      %v4716 = vlaneseq
      %v4717 = vshrl.u32 %v4716, 7
      %v4718 = vsub.s32 0, %v4717
      %v4719 = vrot.slane %v4714, %v4718
      %v4729 = vrot.slane %v4704, 7
      %vm4730 = vcmask 1041409
      %v4731 = vsel %vm4730, %v4729, %v4703
      %v4732 = vrot.slane %v4705, 6
      %v4733 = vsel %vm676, %v4732, %v4731
      %v4734 = vrot.slane %v4706, 5
      %vm4735 = vcmask 1043459
      %v4736 = vsel %vm4735, %v4734, %v4733
      %v4737 = vrot.slane %v4707, 4
      %v4738 = vsel %vm678, %v4737, %v4736
      %v4739 = vrot.slane %v4708, 3
      %vm4740 = vcmask 1045509
      %v4741 = vsel %vm4740, %v4739, %v4738
      %v4742 = vrot.slane %v4709, 2
      %v4743 = vsel %vm680, %v4742, %v4741
      %v4744 = vrot.slane %v4710, 1
      %vm4745 = vcmask 1047559
      %v4746 = vsel %vm4745, %v4744, %v4743
      %v4747 = vsel %vm4614, %v4746, 0
      %4749 = vmatprep.subr.mxu0 0.0
      %4750 = vmatpush1.msra.mxu0 %v4711
      %4751 = vmatprep.subr.mxu0 0.0
      %4752 = vmatpush1.msra.mxu0 %v4712
      %4753 = vmatprep.subr.mxu0 0.0
      %4754 = vmatpush1.msra.mxu0 %v4713
      %4755 = vmatprep.subr.mxu0 0.0
      %4756 = vmatpush1.msra.mxu0 0.0
      %4757 = vmatprep.subr.mxu0 0.0
      %4758 = vmatpush1.msra.mxu0 0.0
      %4759 = vmatprep.subr.mxu0 0.0
      %4760 = vmatpush1.msra.mxu0 0.0
      %4761 = vmatprep.subr.mxu0 0.0
      %4762 = vmatpush1.msra.mxu0 0.0
      %4763 = vmatprep.subr.mxu0 0.0
      %4764 = vmatpush1.msra.mxu0 0.0
      %4765 = vmatprep.subr.mxu0 0.0
      %4766 = vmatpush1.msra.mxu0 0.0
      %4767 = vmatprep.subr.mxu0 0.0
      %4768 = vmatpush1.msra.mxu0 0.0
      %4769 = vmatprep.subr.mxu0 0.0
      %4770 = vmatpush1.msra.mxu0 0.0
      %4771 = vmatprep.subr.mxu0 0.0
      %4772 = vmatpush1.msra.mxu0 0.0
      %4773 = vmatprep.subr.mxu0 0.0
      %4774 = vmatpush1.msra.mxu0 0.0
      %4775 = vmatprep.subr.mxu0 0.0
      %4776 = vmatpush1.msra.mxu0 0.0
      %4777 = vmatprep.subr.mxu0 0.0
      %4778 = vmatpush1.msra.mxu0 0.0
      %4779 = vmatprep.subr.mxu0 0.0
      %4780 = vmatpush1.msra.mxu0 0.0
      %4781 = vmatprep.subr.mxu0 0.0
      %4782 = vmatpush1.msra.mxu0 0.0
      %4783 = vmatprep.subr.mxu0 0.0
      %4784 = vmatpush1.msra.mxu0 0.0
      %4785 = vmatprep.subr.mxu0 0.0
      %4786 = vmatpush1.msra.mxu0 0.0
      %4787 = vmatprep.subr.mxu0 0.0
      %4788 = vmatpush1.msra.mxu0 0.0
      %4789 = vmatprep.subr.mxu0 0.0
      %4790 = vmatpush1.msra.mxu0 0.0
      %4791 = vmatprep.subr.mxu0 0.0
      %4792 = vmatpush1.msra.mxu0 0.0
      %4793 = vmatprep.subr.mxu0 0.0
      %4794 = vmatpush1.msra.mxu0 0.0
      %4795 = vmatprep.subr.mxu0 0.0
      %4796 = vmatpush1.msra.mxu0 0.0
      %4797 = vmatprep.subr.mxu0 0.0
      %4798 = vmatpush1.msra.mxu0 0.0
      %4799 = vmatprep.subr.mxu0 0.0
      %4800 = vmatpush1.msra.mxu0 0.0
      %4801 = vmatprep.subr.mxu0 0.0
      %4802 = vmatpush1.msra.mxu0 0.0
      %4803 = vmatprep.subr.mxu0 0.0
      %4804 = vmatpush1.msra.mxu0 0.0
      %4805 = vmatprep.subr.mxu0 0.0
      %4806 = vmatpush1.msra.mxu0 0.0
      %4807 = vmatprep.subr.mxu0 0.0
      %4808 = vmatpush1.msra.mxu0 0.0
      %4809 = vmatprep.subr.mxu0 0.0
      %4810 = vmatpush1.msra.mxu0 0.0
      %4811 = vmatprep.subr.mxu0 0.0
      %4812 = vmatpush1.msra.mxu0 0.0
      %4813 = vmatprep.mubr.f32.mxu0 0.0
      %4814 = vmatmul.mubr.f32.gmra.mrb[0].mxu0 %v4747
      %v4815 = vpop.f32.mrb[0].mxu0
      %v4816 = vadd.f32 %v4719, %v4815
      %v4817 = vpop.f32.mrb[0].mxu0
      %4818 = vdwg.mxu0
      %vm4819 = vcmask 23552
      %4820 = vst.msk [vmem:[%s273] sm:$0xff] %vm4819, %v4816
      %p4821 = scmp.lt.s32.totalorder %s17, 1
      %s4822 = scalar_select %p4821, %s17, 1
      %s4823 = smul.addr %s4822, 8
      %s4824 = scalar_lea.vmem %s6, %s4823
      // Predicated region
      $region45: #{tpu_custom_call.1} parent=43 // pred_check
        %p4825 = pneg %p171
      $region46: #{tpu_custom_call.1} parent=43 // pred_check_branch
        %4827 = sbr.rel (%p4825) target = $region48
      $region47: #{tpu_custom_call.1} parent=43 // pred_region
        _
      $region48: #{tpu_custom_call.1} parent=43 // pred_fallthru
        _
    $region44: #{tpu_custom_call.1} parent=5 // pred_fallthru
      _
    %p4828 = scmp.le.s32.totalorder 2, %s12
    // Predicated region
    $region49: #{tpu_custom_call.1} parent=5 // pred_check
      %p4829 = pneg %p4828
    $region50: #{tpu_custom_call.1} parent=5 // pred_check_branch
      %4831 = sbr.rel (%p4829) target = $region52
    $region51: #{tpu_custom_call.1} parent=5 // pred_region
      %s4832 = ssub.s32 %s12, 2
      // Predicated region
      $region53: #{tpu_custom_call.1} parent=51 // pred_check
        %p4833 = pneg %p177
      $region54: #{tpu_custom_call.1} parent=51 // pred_check_branch
        %4835 = sbr.rel (%p4833) target = $region56
      $region55: #{tpu_custom_call.1} parent=51 // pred_region
        %p4836 = scmp.lt.s32.totalorder %s18, 1
        %s4837 = scalar_select %p4836, %s18, 1
        %s4838 = smul.addr %s4837, 8
        %s4839 = scalar_lea.vmem %s6, %s4838
      $region56: #{tpu_custom_call.1} parent=51 // pred_fallthru
        _
    $region52: #{tpu_custom_call.1} parent=5 // pred_fallthru
      _
  $region6: #{tpu_custom_call.1} parent=0 // loop_footer
    %s16 = sadd.s32 1, %s12
  $region7: #{tpu_custom_call.1} parent=0 // loop_footer_branch
    %11 = sbr.rel target = $region3
  $region8: #{tpu_custom_call.1} parent=0 // loop_exit
    _

</llo_original>
